<compile_context>
chip_gen: v7x
topology: tpu7x:2x2x1
jax: 0.10.0
libtpu: 0.0.40
codegen_flags: <defaults>
</compile_context>

<pallas_src>
import math
import numpy as np
import jax
import jax.numpy as jnp
from jax.experimental import pallas as pl
from jax.experimental.pallas import tpu as pltpu

# ----------------- small deterministic VAR config (mirrors VAR.__init__) -----------------
B = 2
NUM_CLASSES = 10
DEPTH = 2
C = 32                        # embed_dim == cond dim D
NUM_HEADS = 4
HEAD_DIM = C // NUM_HEADS
MLP_RATIO = 4.0
HIDDEN = round(C * MLP_RATIO)
CVAE = 8                      # vae_local.Cvae
VOCAB = 64                    # vae_local.vocab_size
VOCAB_PAD = 128               # lane-dense head output (zero cols sliced off outside)
PATCH_NUMS = (1, 2, 3)
L = sum(pn * pn for pn in PATCH_NUMS)          # 14 real tokens
L_PAD = 16                                     # sublane-aligned token axis
FIRST_L = PATCH_NUMS[0] ** 2                   # 1
BLP = B * L_PAD                                # 32 flat (padded) token rows
BHL = B * NUM_HEADS * L_PAD                    # 128 expanded (batch, head, key) rows
NORM_EPS = 1e-6
COND_DROP_RATE = 0.1
ATTN_SCALE = 0.25 / math.sqrt(HEAD_DIM)        # VAR SelfAttention (attn_l2_norm=False)
NEG_INF = -1e30                                # finite "-inf": exp() underflows to exactly 0
DENOM_EPS = 1e-20                              # keeps fully-masked (cross-batch) segments at 0
MM_DTYPE = jnp.bfloat16                        # MXU input dtype (f32 accumulation)

# TODO(synk): class/level embedding gathers and the cond-drop coin flip use plain JAX
# (torch.Generator RNG stream is not reproducible in JAX); semantics are otherwise identical.


# ----------------- shared math (traced inside the Pallas kernel AND used as reference) ----
def _layernorm(x, eps=NORM_EPS):
    # nn.LayerNorm(C, eps, elementwise_affine=False), f32
    mu = jnp.mean(x, axis=-1, keepdims=True)
    xc = x - mu
    var = jnp.mean(xc * xc, axis=-1, keepdims=True)
    return xc * jax.lax.rsqrt(var + eps)


def _mm(x, w):
    # bf16 MXU inputs, f32 accumulation
    return jnp.dot(x.astype(MM_DTYPE), w.astype(MM_DTYPE),
                   preferred_element_type=jnp.float32)


def _mm_nt(x, w):
    # x @ w.T without materializing the transpose (contract both minor axes)
    return jax.lax.dot_general(x.astype(MM_DTYPE), w.astype(MM_DTYPE),
                               (((1,), (1,)), ((), ())),
                               preferred_element_type=jnp.float32)


def _block(x, silu, bias_full, expand, headmask, segsum, blk, approx_recip):
    """One AdaLNSelfAttn block (shared_aln=False, no dropout / drop_path); x: (BLP, C)."""
    # adaLN modulation: SiLU(cond) -> six separate (C, C) matmuls (no lane slicing).
    # unbind order: gamma1, gamma2, scale1, scale2, shift1, shift2
    g1  = _mm(silu, blk['ada_w'][0]) + blk['ada_b'][0]
    g2  = _mm(silu, blk['ada_w'][1]) + blk['ada_b'][1]
    s1  = _mm(silu, blk['ada_w'][2]) + blk['ada_b'][2]
    s2  = _mm(silu, blk['ada_w'][3]) + blk['ada_b'][3]
    sh1 = _mm(silu, blk['ada_w'][4]) + blk['ada_b'][4]
    sh2 = _mm(silu, blk['ada_w'][5]) + blk['ada_b'][5]

    # ---- self-attention branch (packed block-diagonal over batch x head) ----
    h = _layernorm(x) * (s1 + 1.0) + sh1
    q = (_mm(h, blk['q_w']) + blk['q_b']) * ATTN_SCALE          # (BLP, C)  query.mul(scale)
    k = _mm(h, blk['k_w']) + blk['k_b']                         # (BLP, C)
    v = _mm(h, blk['v_w']) + blk['v_b']                         # (BLP, C)
    kx = _mm(expand, k) * headmask                              # (BHL, C): row (b,h,j) = k[b,j] on head-h lanes
    vx = _mm(expand, v) * headmask                              # (BHL, C)
    s = _mm_nt(q, kx) + bias_full                               # (BLP, BHL) per-head logits + mask
    p = jnp.exp(s)                                              # masked entries -> exactly 0
    denom = _mm(p, segsum) + DENOM_EPS                          # per-(batch,head) segment sums
    if approx_recip:
        p = p * pl.reciprocal(denom, approx=True)
    else:
        p = p / denom
    attn = _mm(p, vx)                                           # (BLP, C), heads land on their lanes
    attn = _mm(attn, blk['proj_w']) + blk['proj_b']
    x = x + attn * g1

    # ---- FFN branch: fc1 -> GELU(approximate='tanh') -> fc2 ----
    h2 = _layernorm(x) * (s2 + 1.0) + sh2
    f = _mm(h2, blk['fc1_w']) + blk['fc1_b']
    f = jax.nn.gelu(f, approximate=True)
    f = _mm(f, blk['fc2_w']) + blk['fc2_b']
    return x + f * g2


def _forward_core(base, xin, cond_rows, bias_full, expand, headmask, segsum,
                  word_w, blocks, head_nm_w, head_nm_b, head_w, head_b, *, approx_recip):
    """word_embed + DEPTH AdaLN blocks + AdaLNBeforeHead + head.  Returns (BLP, VOCAB_PAD)."""
    # word_embed's bias and the sos/lvl/pos terms are pre-folded into `base`, so one matmul
    # over the (padded) token slab reconstructs x_BLC exactly.  Padded rows are zero.
    x = base + _mm(xin, word_w)                                 # (BLP, C)
    silu = cond_rows * jax.nn.sigmoid(cond_rows)                # SiLU once (row-replicated cond)
    for blk in blocks:
        x = _block(x, silu, bias_full, expand, headmask, segsum, blk, approx_recip)
    # AdaLNBeforeHead (scale / shift as two (C,C) matmuls) + head Linear(C, V padded)
    sc = _mm(silu, head_nm_w[0]) + head_nm_b[0]
    sh = _mm(silu, head_nm_w[1]) + head_nm_b[1]
    h = _layernorm(x) * (sc + 1.0) + sh
    return _mm(h, head_w) + head_b                              # (BLP, VOCAB_PAD)


# ----------------- fused Pallas kernel -----------------------------------------------------
def _var_fused_kernel(base_ref, xin_ref, cond_ref, bias_ref, expand_ref, hmask_ref, seg_ref,
                      word_w_ref,
                      ada_w_ref, ada_b_ref,
                      q_w_ref, q_b_ref, k_w_ref, k_b_ref, v_w_ref, v_b_ref,
                      proj_w_ref, proj_b_ref, fc1_w_ref, fc1_b_ref, fc2_w_ref, fc2_b_ref,
                      head_nm_w_ref, head_nm_b_ref, head_w_ref, head_b_ref,
                      out_ref):
    blocks = []
    for d in range(DEPTH):                      # static index into stacked weights
        blocks.append(dict(
            ada_w=[ada_w_ref[d, j] for j in range(6)],
            ada_b=[ada_b_ref[d, j] for j in range(6)],
            q_w=q_w_ref[d], q_b=q_b_ref[d],
            k_w=k_w_ref[d], k_b=k_b_ref[d],
            v_w=v_w_ref[d], v_b=v_b_ref[d],
            proj_w=proj_w_ref[d], proj_b=proj_b_ref[d],
            fc1_w=fc1_w_ref[d], fc1_b=fc1_b_ref[d],
            fc2_w=fc2_w_ref[d], fc2_b=fc2_b_ref[d]))
    out_ref[...] = _forward_core(
        base_ref[...], xin_ref[...], cond_ref[...], bias_ref[...],
        expand_ref[...], hmask_ref[...], seg_ref[...],
        word_w_ref[...], blocks,
        [head_nm_w_ref[0], head_nm_w_ref[1]],
        [head_nm_b_ref[0], head_nm_b_ref[1]],
        head_w_ref[...], head_b_ref[...],
        approx_recip=True)


def _full_spec(shape):
    nd = len(shape)
    return pl.BlockSpec(shape, lambda i, _nd=nd: (0,) * _nd)


def _cost_estimate(args):
    mm = lambda m, k, n: 2 * m * k * n
    per_block = (6 * mm(BLP, C, C)              # adaLN modulation
                 + 3 * mm(BLP, C, C)            # q, k, v
                 + 2 * mm(BHL, BLP, C)          # k / v block-diagonal expansion
                 + mm(BLP, C, BHL)              # logits
                 + mm(BLP, BHL, BHL)            # segment-sum denominator
                 + mm(BLP, BHL, C)              # P @ V
                 + mm(BLP, C, C)                # proj
                 + mm(BLP, C, HIDDEN) + mm(BLP, HIDDEN, C))
    flops = mm(BLP, CVAE, C) + DEPTH * per_block + 2 * mm(BLP, C, C) + mm(BLP, C, VOCAB_PAD)
    transcendentals = BLP * C + DEPTH * (BLP * BHL + BLP * HIDDEN)
    bytes_accessed = sum(int(np.prod(a.shape)) * a.dtype.itemsize for a in args)
    bytes_accessed += BLP * VOCAB_PAD * 4
    return pl.CostEstimate(flops=int(flops), transcendentals=int(transcendentals),
                           bytes_accessed=int(bytes_accessed))


# ----------------- parameters / buffers ----------------------------------------------------
def init_params(key):
    keys = iter(jax.random.split(key, 256))

    def trunc(shape, std, dtype=jnp.float32):
        return (std * jax.random.truncated_normal(next(keys), -2.0, 2.0, shape,
                                                  jnp.float32)).astype(dtype)

    init_std = math.sqrt(1.0 / C / 3.0)
    p = {
        'class_emb': trunc((NUM_CLASSES + 1, C), init_std),    # nn.Embedding(num_classes+1, C)
        'pos_start': trunc((1, FIRST_L, C), init_std),
        'pos_1LC':   trunc((1, L, C), init_std),
        'lvl_emb':   trunc((len(PATCH_NUMS), C), init_std),
        # matmul weights stored pre-transposed (Din, Dout) and in bf16; biases stay f32
        'word_w':    trunc((CVAE, C), 0.02, MM_DTYPE),
        'word_b':    jnp.zeros((1, C), jnp.float32),
        # AdaLNBeforeHead ada_lin Linear(D, 2C) split into scale / shift (C,C) stacks
        'head_nm_w': jnp.stack([trunc((C, C), 0.02, MM_DTYPE) for _ in range(2)]),
        'head_nm_b': jnp.zeros((2, 1, C), jnp.float32),
    }
    head_w = trunc((C, VOCAB), 0.02)                            # head: Linear(C, V)
    p['head_w'] = jnp.pad(head_w, ((0, 0), (0, VOCAB_PAD - VOCAB))).astype(MM_DTYPE)
    p['head_b'] = jnp.zeros((1, VOCAB_PAD), jnp.float32)

    # per-block weights: ada_lin Linear(D, 6C) split into 6 (C,C); qkv split into 3 (C,C)
    p['ada_w'] = jnp.stack([jnp.stack([trunc((C, C), 0.02, MM_DTYPE) for _ in range(6)])
                            for _ in range(DEPTH)])             # (DEPTH, 6, C, C)
    p['ada_b'] = jnp.zeros((DEPTH, 6, 1, C), jnp.float32)
    for name in ('q', 'k', 'v'):
        p[f'{name}_w'] = jnp.stack([trunc((C, C), 0.02, MM_DTYPE) for _ in range(DEPTH)])
        p[f'{name}_b'] = jnp.zeros((DEPTH, 1, C), jnp.float32)  # q_bias / zero_k_bias / v_bias
    p['proj_w'] = jnp.stack([(trunc((C, C), 0.02) / math.sqrt(2 * DEPTH)).astype(MM_DTYPE)
                             for _ in range(DEPTH)])
    p['proj_b'] = jnp.zeros((DEPTH, 1, C), jnp.float32)
    p['fc1_w'] = jnp.stack([trunc((C, HIDDEN), 0.02, MM_DTYPE) for _ in range(DEPTH)])
    p['fc1_b'] = jnp.zeros((DEPTH, 1, HIDDEN), jnp.float32)
    p['fc2_w'] = jnp.stack([(trunc((HIDDEN, C), 0.02) / math.sqrt(2 * DEPTH)).astype(MM_DTYPE)
                            for _ in range(DEPTH)])
    p['fc2_b'] = jnp.zeros((DEPTH, 1, C), jnp.float32)
    return p


def make_buffers():
    """lvl_1L + precomputed attention layout constants for the packed formulation."""
    d = np.concatenate([np.full((pn * pn,), i, dtype=np.int32)
                        for i, pn in enumerate(PATCH_NUMS)])                    # (L,)
    lvl_1L = d
    # padded levels: phantom rows get level = n_levels so real queries never attend to them,
    # while phantom queries attend to everything (keeps their softmax denominator > 0).
    d_pad = np.concatenate([d, np.full((L_PAD - L,), len(PATCH_NUMS), np.int32)])
    mask16 = np.where(d_pad[:, None] >= d_pad[None, :], 0.0, NEG_INF).astype(np.float32)

    bias_full = np.full((BLP, BHL), NEG_INF, np.float32)   # block-diag over batch, tiled heads
    expand = np.zeros((BHL, BLP), np.float32)              # one-hot row gather (b,h,j)<-(b,j)
    headmask = np.zeros((BHL, C), np.float32)              # keep only head-h channels
    segsum = np.zeros((BHL, BHL), np.float32)              # per-(b,h) 16-key segment sums
    for b in range(B):
        for h in range(NUM_HEADS):
            seg = (b * NUM_HEADS + h) * L_PAD
            bias_full[b * L_PAD:(b + 1) * L_PAD, seg:seg + L_PAD] = mask16
            segsum[seg:seg + L_PAD, seg:seg + L_PAD] = 1.0
            headmask[seg:seg + L_PAD, h * HEAD_DIM:(h + 1) * HEAD_DIM] = 1.0
            for j in range(L_PAD):
                expand[seg + j, b * L_PAD + j] = 1.0
    return (jnp.asarray(lvl_1L), jnp.asarray(bias_full),
            jnp.asarray(expand, dtype=MM_DTYPE), jnp.asarray(headmask),
            jnp.asarray(segsum, dtype=MM_DTYPE))


# ----------------- forward ------------------------------------------------------------------
def _prologue_glue(params, label_B, x_wo, drop_key, lvl_1L):
    """Embedding gathers + cond-drop + padded flat-token slab construction (glue, runs in XLA)."""
    drop = jax.random.uniform(drop_key, (B,)) < COND_DROP_RATE
    label = jnp.where(drop, NUM_CLASSES, label_B)
    sos = cond_BD = jnp.take(params['class_emb'], label, axis=0)                  # (B, C)
    sos_tok = sos[:, None, :] + params['pos_start']                               # (B, first_l, C)
    lvl_pos = jnp.take(params['lvl_emb'], lvl_1L, axis=0) + params['pos_1LC'][0]  # (L, C)
    word_b = params['word_b']                                                     # (1, C)
    # base rows: first_l rows = sos (no word bias; their xin is zero), remaining real rows
    # carry word_embed's bias; all real rows carry lvl_embed + pos_1LC; padded rows are zero.
    base_real = jnp.concatenate(
        [sos_tok, jnp.broadcast_to(word_b[None, :, :], (B, L - FIRST_L, C))], axis=1)
    base_real = base_real + lvl_pos[None, :, :]
    base = jnp.concatenate(
        [base_real, jnp.zeros((B, L_PAD - L, C), jnp.float32)], axis=1).reshape(BLP, C)
    xin = jnp.concatenate(
        [jnp.zeros((B, FIRST_L, CVAE), jnp.float32), x_wo.astype(jnp.float32),
         jnp.zeros((B, L_PAD - L, CVAE), jnp.float32)], axis=1
    ).reshape(BLP, CVAE).astype(MM_DTYPE)
    cond_rows = jnp.broadcast_to(cond_BD[:, None, :], (B, L_PAD, C)).reshape(BLP, C)
    return base, xin, cond_rows


def _block_dicts_from_params(params):
    return [dict(ada_w=[params['ada_w'][d, j] for j in range(6)],
                 ada_b=[params['ada_b'][d, j] for j in range(6)],
                 q_w=params['q_w'][d], q_b=params['q_b'][d],
                 k_w=params['k_w'][d], k_b=params['k_b'][d],
                 v_w=params['v_w'][d], v_b=params['v_b'][d],
                 proj_w=params['proj_w'][d], proj_b=params['proj_b'][d],
                 fc1_w=params['fc1_w'][d], fc1_b=params['fc1_b'][d],
                 fc2_w=params['fc2_w'][d], fc2_b=params['fc2_b'][d])
            for d in range(DEPTH)]


def var_forward_pallas(params, label_B, x_wo, drop_key, buffers):
    lvl_1L, bias_full, expand, headmask, segsum = buffers
    base, xin, cond_rows = _prologue_glue(params, label_B, x_wo, drop_key, lvl_1L)
    args = (base, xin, cond_rows, bias_full, expand, headmask, segsum,
            params['word_w'],
            params['ada_w'], params['ada_b'],
            params['q_w'], params['q_b'], params['k_w'], params['k_b'],
            params['v_w'], params['v_b'],
            params['proj_w'], params['proj_b'],
            params['fc1_w'], params['fc1_b'], params['fc2_w'], params['fc2_b'],
            params['head_nm_w'], params['head_nm_b'], params['head_w'], params['head_b'])
    logits_pad = pl.pallas_call(
        _var_fused_kernel,
        out_shape=jax.ShapeDtypeStruct((BLP, VOCAB_PAD), jnp.float32),
        grid=(1,),
        in_specs=[_full_spec(a.shape) for a in args],
        out_specs=_full_spec((BLP, VOCAB_PAD)),
        compiler_params=pltpu.CompilerParams(dimension_semantics=("arbitrary",)),
        cost_estimate=_cost_estimate(args),
    )(*args)
    # drop padded token rows and the zero-padded vocab lanes
    return logits_pad.reshape(B, L_PAD, VOCAB_PAD)[:, :L, :VOCAB]                # (B, L, V) f32


def var_forward_ref(params, label_B, x_wo, drop_key, buffers):
    lvl_1L, bias_full, expand, headmask, segsum = buffers
    base, xin, cond_rows = _prologue_glue(params, label_B, x_wo, drop_key, lvl_1L)
    logits_pad = _forward_core(
        base, xin, cond_rows, bias_full, expand, headmask, segsum,
        params['word_w'], _block_dicts_from_params(params),
        [params['head_nm_w'][0], params['head_nm_w'][1]],
        [params['head_nm_b'][0], params['head_nm_b'][1]],
        params['head_w'], params['head_b'],
        approx_recip=False)
    return logits_pad.reshape(B, L_PAD, VOCAB_PAD)[:, :L, :VOCAB]


if __name__ == "__main__":
    root = jax.random.PRNGKey(0)
    k_param, k_label, k_x, k_drop = jax.random.split(root, 4)

    params = init_params(k_param)
    buffers = make_buffers()

    # forward() inputs: label_B (B,), x_BLCv_wo_first_l (B, L-first_l, Cvae)
    label_B = jax.random.randint(k_label, (B,), 0, NUM_CLASSES)
    x_wo = jax.random.normal(k_x, (B, L - FIRST_L, CVAE), jnp.float32)

    fwd = jax.jit(var_forward_pallas)
    logits = jax.block_until_ready(fwd(params, label_B, x_wo, k_drop, buffers))

    ref = jax.block_until_ready(
        jax.jit(var_forward_ref)(params, label_B, x_wo, k_drop, buffers))

    assert logits.shape == (B, L, VOCAB) and logits.dtype == jnp.float32
    # kernel and reference share bf16 matmul inputs / f32 accumulation and the identical
    # packed-attention math; the only delta is the approximate softmax reciprocal.
    err = float(np.max(np.abs(np.asarray(logits) - np.asarray(ref))))
    assert np.allclose(np.asarray(logits), np.asarray(ref), rtol=3e-3, atol=3e-3), \
        f"max|diff|={err}"

    print("KERNEL_OK")
</pallas_src>

<mosaic_0001>
module attributes {stable_mosaic.version = 11 : i64} {
  func.func @_var_fused_kernel(%arg0: i32, %arg1: memref<32x32xf32, #tpu.memory_space<vmem>>, %arg2: memref<32x8xbf16, #tpu.memory_space<vmem>>, %arg3: memref<32x32xf32, #tpu.memory_space<vmem>>, %arg4: memref<32x128xf32, #tpu.memory_space<vmem>>, %arg5: memref<128x32xbf16, #tpu.memory_space<vmem>>, %arg6: memref<128x32xf32, #tpu.memory_space<vmem>>, %arg7: memref<128x128xbf16, #tpu.memory_space<vmem>>, %arg8: memref<8x32xbf16, #tpu.memory_space<vmem>>, %arg9: memref<2x6x32x32xbf16, #tpu.memory_space<vmem>>, %arg10: memref<2x6x1x32xf32, #tpu.memory_space<vmem>>, %arg11: memref<2x32x32xbf16, #tpu.memory_space<vmem>>, %arg12: memref<2x1x32xf32, #tpu.memory_space<vmem>>, %arg13: memref<2x32x32xbf16, #tpu.memory_space<vmem>>, %arg14: memref<2x1x32xf32, #tpu.memory_space<vmem>>, %arg15: memref<2x32x32xbf16, #tpu.memory_space<vmem>>, %arg16: memref<2x1x32xf32, #tpu.memory_space<vmem>>, %arg17: memref<2x32x32xbf16, #tpu.memory_space<vmem>>, %arg18: memref<2x1x32xf32, #tpu.memory_space<vmem>>, %arg19: memref<2x32x128xbf16, #tpu.memory_space<vmem>>, %arg20: memref<2x1x128xf32, #tpu.memory_space<vmem>>, %arg21: memref<2x128x32xbf16, #tpu.memory_space<vmem>>, %arg22: memref<2x1x32xf32, #tpu.memory_space<vmem>>, %arg23: memref<2x32x32xbf16, #tpu.memory_space<vmem>>, %arg24: memref<2x1x32xf32, #tpu.memory_space<vmem>>, %arg25: memref<32x128xbf16, #tpu.memory_space<vmem>>, %arg26: memref<1x128xf32, #tpu.memory_space<vmem>>, %arg27: memref<32x128xf32, #tpu.memory_space<vmem>>) attributes {dimension_semantics = [#tpu.dimension_semantics<arbitrary>], iteration_bounds = array<i64: 1>, scalar_prefetch = 0 : i64, scratch_operands = 0 : i64, tpu.core_type = #tpu.core_type<tc>, window_params = [{pipeline_mode = #tpu.pipeline_mode<synchronous>, transform_indices = @transform_0, window_bounds = array<i64: 32, 32>}, {pipeline_mode = #tpu.pipeline_mode<synchronous>, transform_indices = @transform_1, window_bounds = array<i64: 32, 8>}, {pipeline_mode = #tpu.pipeline_mode<synchronous>, transform_indices = @transform_2, window_bounds = array<i64: 32, 32>}, {pipeline_mode = #tpu.pipeline_mode<synchronous>, transform_indices = @transform_3, window_bounds = array<i64: 32, 128>}, {pipeline_mode = #tpu.pipeline_mode<synchronous>, transform_indices = @transform_4, window_bounds = array<i64: 128, 32>}, {pipeline_mode = #tpu.pipeline_mode<synchronous>, transform_indices = @transform_5, window_bounds = array<i64: 128, 32>}, {pipeline_mode = #tpu.pipeline_mode<synchronous>, transform_indices = @transform_6, window_bounds = array<i64: 128, 128>}, {pipeline_mode = #tpu.pipeline_mode<synchronous>, transform_indices = @transform_7, window_bounds = array<i64: 8, 32>}, {pipeline_mode = #tpu.pipeline_mode<synchronous>, transform_indices = @transform_8, window_bounds = array<i64: 2, 6, 32, 32>}, {pipeline_mode = #tpu.pipeline_mode<synchronous>, transform_indices = @transform_9, window_bounds = array<i64: 2, 6, 1, 32>}, {pipeline_mode = #tpu.pipeline_mode<synchronous>, transform_indices = @transform_10, window_bounds = array<i64: 2, 32, 32>}, {pipeline_mode = #tpu.pipeline_mode<synchronous>, transform_indices = @transform_11, window_bounds = array<i64: 2, 1, 32>}, {pipeline_mode = #tpu.pipeline_mode<synchronous>, transform_indices = @transform_12, window_bounds = array<i64: 2, 32, 32>}, {pipeline_mode = #tpu.pipeline_mode<synchronous>, transform_indices = @transform_13, window_bounds = array<i64: 2, 1, 32>}, {pipeline_mode = #tpu.pipeline_mode<synchronous>, transform_indices = @transform_14, window_bounds = array<i64: 2, 32, 32>}, {pipeline_mode = #tpu.pipeline_mode<synchronous>, transform_indices = @transform_15, window_bounds = array<i64: 2, 1, 32>}, {pipeline_mode = #tpu.pipeline_mode<synchronous>, transform_indices = @transform_16, window_bounds = array<i64: 2, 32, 32>}, {pipeline_mode = #tpu.pipeline_mode<synchronous>, transform_indices = @transform_17, window_bounds = array<i64: 2, 1, 32>}, {pipeline_mode = #tpu.pipeline_mode<synchronous>, transform_indices = @transform_18, window_bounds = array<i64: 2, 32, 128>}, {pipeline_mode = #tpu.pipeline_mode<synchronous>, transform_indices = @transform_19, window_bounds = array<i64: 2, 1, 128>}, {pipeline_mode = #tpu.pipeline_mode<synchronous>, transform_indices = @transform_20, window_bounds = array<i64: 2, 128, 32>}, {pipeline_mode = #tpu.pipeline_mode<synchronous>, transform_indices = @transform_21, window_bounds = array<i64: 2, 1, 32>}, {pipeline_mode = #tpu.pipeline_mode<synchronous>, transform_indices = @transform_22, window_bounds = array<i64: 2, 32, 32>}, {pipeline_mode = #tpu.pipeline_mode<synchronous>, transform_indices = @transform_23, window_bounds = array<i64: 2, 1, 32>}, {pipeline_mode = #tpu.pipeline_mode<synchronous>, transform_indices = @transform_24, window_bounds = array<i64: 32, 128>}, {pipeline_mode = #tpu.pipeline_mode<synchronous>, transform_indices = @transform_25, window_bounds = array<i64: 1, 128>}, {pipeline_mode = #tpu.pipeline_mode<synchronous>, transform_indices = @transform_26, window_bounds = array<i64: 32, 128>}]} {
    %c0 = arith.constant 0 : index
    %c0_0 = arith.constant 0 : index
    %c0_1 = arith.constant 0 : index
    %c0_2 = arith.constant 0 : index
    %0 = vector.load %arg9[%c0, %c0_0, %c0_1, %c0_2] : memref<2x6x32x32xbf16, #tpu.memory_space<vmem>>, vector<1x1x32x32xbf16>
    %1 = vector.shape_cast %0 : vector<1x1x32x32xbf16> to vector<32x32xbf16>
    %c0_3 = arith.constant 0 : index
    %c1 = arith.constant 1 : index
    %c0_4 = arith.constant 0 : index
    %c0_5 = arith.constant 0 : index
    %2 = vector.load %arg9[%c0_3, %c1, %c0_4, %c0_5] : memref<2x6x32x32xbf16, #tpu.memory_space<vmem>>, vector<1x1x32x32xbf16>
    %3 = vector.shape_cast %2 : vector<1x1x32x32xbf16> to vector<32x32xbf16>
    %c0_6 = arith.constant 0 : index
    %c2 = arith.constant 2 : index
    %c0_7 = arith.constant 0 : index
    %c0_8 = arith.constant 0 : index
    %4 = vector.load %arg9[%c0_6, %c2, %c0_7, %c0_8] : memref<2x6x32x32xbf16, #tpu.memory_space<vmem>>, vector<1x1x32x32xbf16>
    %5 = vector.shape_cast %4 : vector<1x1x32x32xbf16> to vector<32x32xbf16>
    %c0_9 = arith.constant 0 : index
    %c3 = arith.constant 3 : index
    %c0_10 = arith.constant 0 : index
    %c0_11 = arith.constant 0 : index
    %6 = vector.load %arg9[%c0_9, %c3, %c0_10, %c0_11] : memref<2x6x32x32xbf16, #tpu.memory_space<vmem>>, vector<1x1x32x32xbf16>
    %7 = vector.shape_cast %6 : vector<1x1x32x32xbf16> to vector<32x32xbf16>
    %c0_12 = arith.constant 0 : index
    %c4 = arith.constant 4 : index
    %c0_13 = arith.constant 0 : index
    %c0_14 = arith.constant 0 : index
    %8 = vector.load %arg9[%c0_12, %c4, %c0_13, %c0_14] : memref<2x6x32x32xbf16, #tpu.memory_space<vmem>>, vector<1x1x32x32xbf16>
    %9 = vector.shape_cast %8 : vector<1x1x32x32xbf16> to vector<32x32xbf16>
    %c0_15 = arith.constant 0 : index
    %c5 = arith.constant 5 : index
    %c0_16 = arith.constant 0 : index
    %c0_17 = arith.constant 0 : index
    %10 = vector.load %arg9[%c0_15, %c5, %c0_16, %c0_17] : memref<2x6x32x32xbf16, #tpu.memory_space<vmem>>, vector<1x1x32x32xbf16>
    %11 = vector.shape_cast %10 : vector<1x1x32x32xbf16> to vector<32x32xbf16>
    %c0_18 = arith.constant 0 : index
    %c0_19 = arith.constant 0 : index
    %c0_20 = arith.constant 0 : index
    %c0_21 = arith.constant 0 : index
    %12 = vector.load %arg10[%c0_18, %c0_19, %c0_20, %c0_21] : memref<2x6x1x32xf32, #tpu.memory_space<vmem>>, vector<1x1x1x32xf32>
    %13 = vector.shape_cast %12 : vector<1x1x1x32xf32> to vector<1x32xf32>
    %c0_22 = arith.constant 0 : index
    %c1_23 = arith.constant 1 : index
    %c0_24 = arith.constant 0 : index
    %c0_25 = arith.constant 0 : index
    %14 = vector.load %arg10[%c0_22, %c1_23, %c0_24, %c0_25] : memref<2x6x1x32xf32, #tpu.memory_space<vmem>>, vector<1x1x1x32xf32>
    %15 = vector.shape_cast %14 : vector<1x1x1x32xf32> to vector<1x32xf32>
    %c0_26 = arith.constant 0 : index
    %c2_27 = arith.constant 2 : index
    %c0_28 = arith.constant 0 : index
    %c0_29 = arith.constant 0 : index
    %16 = vector.load %arg10[%c0_26, %c2_27, %c0_28, %c0_29] : memref<2x6x1x32xf32, #tpu.memory_space<vmem>>, vector<1x1x1x32xf32>
    %17 = vector.shape_cast %16 : vector<1x1x1x32xf32> to vector<1x32xf32>
    %c0_30 = arith.constant 0 : index
    %c3_31 = arith.constant 3 : index
    %c0_32 = arith.constant 0 : index
    %c0_33 = arith.constant 0 : index
    %18 = vector.load %arg10[%c0_30, %c3_31, %c0_32, %c0_33] : memref<2x6x1x32xf32, #tpu.memory_space<vmem>>, vector<1x1x1x32xf32>
    %19 = vector.shape_cast %18 : vector<1x1x1x32xf32> to vector<1x32xf32>
    %c0_34 = arith.constant 0 : index
    %c4_35 = arith.constant 4 : index
    %c0_36 = arith.constant 0 : index
    %c0_37 = arith.constant 0 : index
    %20 = vector.load %arg10[%c0_34, %c4_35, %c0_36, %c0_37] : memref<2x6x1x32xf32, #tpu.memory_space<vmem>>, vector<1x1x1x32xf32>
    %21 = vector.shape_cast %20 : vector<1x1x1x32xf32> to vector<1x32xf32>
    %c0_38 = arith.constant 0 : index
    %c5_39 = arith.constant 5 : index
    %c0_40 = arith.constant 0 : index
    %c0_41 = arith.constant 0 : index
    %22 = vector.load %arg10[%c0_38, %c5_39, %c0_40, %c0_41] : memref<2x6x1x32xf32, #tpu.memory_space<vmem>>, vector<1x1x1x32xf32>
    %23 = vector.shape_cast %22 : vector<1x1x1x32xf32> to vector<1x32xf32>
    %c0_42 = arith.constant 0 : index
    %c0_43 = arith.constant 0 : index
    %c0_44 = arith.constant 0 : index
    %24 = vector.load %arg11[%c0_42, %c0_43, %c0_44] : memref<2x32x32xbf16, #tpu.memory_space<vmem>>, vector<1x32x32xbf16>
    %25 = vector.shape_cast %24 : vector<1x32x32xbf16> to vector<32x32xbf16>
    %c0_45 = arith.constant 0 : index
    %c0_46 = arith.constant 0 : index
    %c0_47 = arith.constant 0 : index
    %26 = vector.load %arg12[%c0_45, %c0_46, %c0_47] : memref<2x1x32xf32, #tpu.memory_space<vmem>>, vector<1x1x32xf32>
    %27 = vector.shape_cast %26 : vector<1x1x32xf32> to vector<1x32xf32>
    %c0_48 = arith.constant 0 : index
    %c0_49 = arith.constant 0 : index
    %c0_50 = arith.constant 0 : index
    %28 = vector.load %arg13[%c0_48, %c0_49, %c0_50] : memref<2x32x32xbf16, #tpu.memory_space<vmem>>, vector<1x32x32xbf16>
    %29 = vector.shape_cast %28 : vector<1x32x32xbf16> to vector<32x32xbf16>
    %c0_51 = arith.constant 0 : index
    %c0_52 = arith.constant 0 : index
    %c0_53 = arith.constant 0 : index
    %30 = vector.load %arg14[%c0_51, %c0_52, %c0_53] : memref<2x1x32xf32, #tpu.memory_space<vmem>>, vector<1x1x32xf32>
    %31 = vector.shape_cast %30 : vector<1x1x32xf32> to vector<1x32xf32>
    %c0_54 = arith.constant 0 : index
    %c0_55 = arith.constant 0 : index
    %c0_56 = arith.constant 0 : index
    %32 = vector.load %arg15[%c0_54, %c0_55, %c0_56] : memref<2x32x32xbf16, #tpu.memory_space<vmem>>, vector<1x32x32xbf16>
    %33 = vector.shape_cast %32 : vector<1x32x32xbf16> to vector<32x32xbf16>
    %c0_57 = arith.constant 0 : index
    %c0_58 = arith.constant 0 : index
    %c0_59 = arith.constant 0 : index
    %34 = vector.load %arg16[%c0_57, %c0_58, %c0_59] : memref<2x1x32xf32, #tpu.memory_space<vmem>>, vector<1x1x32xf32>
    %35 = vector.shape_cast %34 : vector<1x1x32xf32> to vector<1x32xf32>
    %c0_60 = arith.constant 0 : index
    %c0_61 = arith.constant 0 : index
    %c0_62 = arith.constant 0 : index
    %36 = vector.load %arg17[%c0_60, %c0_61, %c0_62] : memref<2x32x32xbf16, #tpu.memory_space<vmem>>, vector<1x32x32xbf16>
    %37 = vector.shape_cast %36 : vector<1x32x32xbf16> to vector<32x32xbf16>
    %c0_63 = arith.constant 0 : index
    %c0_64 = arith.constant 0 : index
    %c0_65 = arith.constant 0 : index
    %38 = vector.load %arg18[%c0_63, %c0_64, %c0_65] : memref<2x1x32xf32, #tpu.memory_space<vmem>>, vector<1x1x32xf32>
    %39 = vector.shape_cast %38 : vector<1x1x32xf32> to vector<1x32xf32>
    %c0_66 = arith.constant 0 : index
    %c0_67 = arith.constant 0 : index
    %c0_68 = arith.constant 0 : index
    %40 = vector.load %arg19[%c0_66, %c0_67, %c0_68] : memref<2x32x128xbf16, #tpu.memory_space<vmem>>, vector<1x32x128xbf16>
    %41 = vector.shape_cast %40 : vector<1x32x128xbf16> to vector<32x128xbf16>
    %c0_69 = arith.constant 0 : index
    %c0_70 = arith.constant 0 : index
    %c0_71 = arith.constant 0 : index
    %42 = vector.load %arg20[%c0_69, %c0_70, %c0_71] : memref<2x1x128xf32, #tpu.memory_space<vmem>>, vector<1x1x128xf32>
    %43 = vector.shape_cast %42 : vector<1x1x128xf32> to vector<1x128xf32>
    %c0_72 = arith.constant 0 : index
    %c0_73 = arith.constant 0 : index
    %c0_74 = arith.constant 0 : index
    %44 = vector.load %arg21[%c0_72, %c0_73, %c0_74] : memref<2x128x32xbf16, #tpu.memory_space<vmem>>, vector<1x128x32xbf16>
    %45 = vector.shape_cast %44 : vector<1x128x32xbf16> to vector<128x32xbf16>
    %c0_75 = arith.constant 0 : index
    %c0_76 = arith.constant 0 : index
    %c0_77 = arith.constant 0 : index
    %46 = vector.load %arg22[%c0_75, %c0_76, %c0_77] : memref<2x1x32xf32, #tpu.memory_space<vmem>>, vector<1x1x32xf32>
    %47 = vector.shape_cast %46 : vector<1x1x32xf32> to vector<1x32xf32>
    %c1_78 = arith.constant 1 : index
    %c0_79 = arith.constant 0 : index
    %c0_80 = arith.constant 0 : index
    %c0_81 = arith.constant 0 : index
    %48 = vector.load %arg9[%c1_78, %c0_79, %c0_80, %c0_81] : memref<2x6x32x32xbf16, #tpu.memory_space<vmem>>, vector<1x1x32x32xbf16>
    %49 = vector.shape_cast %48 : vector<1x1x32x32xbf16> to vector<32x32xbf16>
    %c1_82 = arith.constant 1 : index
    %c1_83 = arith.constant 1 : index
    %c0_84 = arith.constant 0 : index
    %c0_85 = arith.constant 0 : index
    %50 = vector.load %arg9[%c1_82, %c1_83, %c0_84, %c0_85] : memref<2x6x32x32xbf16, #tpu.memory_space<vmem>>, vector<1x1x32x32xbf16>
    %51 = vector.shape_cast %50 : vector<1x1x32x32xbf16> to vector<32x32xbf16>
    %c1_86 = arith.constant 1 : index
    %c2_87 = arith.constant 2 : index
    %c0_88 = arith.constant 0 : index
    %c0_89 = arith.constant 0 : index
    %52 = vector.load %arg9[%c1_86, %c2_87, %c0_88, %c0_89] : memref<2x6x32x32xbf16, #tpu.memory_space<vmem>>, vector<1x1x32x32xbf16>
    %53 = vector.shape_cast %52 : vector<1x1x32x32xbf16> to vector<32x32xbf16>
    %c1_90 = arith.constant 1 : index
    %c3_91 = arith.constant 3 : index
    %c0_92 = arith.constant 0 : index
    %c0_93 = arith.constant 0 : index
    %54 = vector.load %arg9[%c1_90, %c3_91, %c0_92, %c0_93] : memref<2x6x32x32xbf16, #tpu.memory_space<vmem>>, vector<1x1x32x32xbf16>
    %55 = vector.shape_cast %54 : vector<1x1x32x32xbf16> to vector<32x32xbf16>
    %c1_94 = arith.constant 1 : index
    %c4_95 = arith.constant 4 : index
    %c0_96 = arith.constant 0 : index
    %c0_97 = arith.constant 0 : index
    %56 = vector.load %arg9[%c1_94, %c4_95, %c0_96, %c0_97] : memref<2x6x32x32xbf16, #tpu.memory_space<vmem>>, vector<1x1x32x32xbf16>
    %57 = vector.shape_cast %56 : vector<1x1x32x32xbf16> to vector<32x32xbf16>
    %c1_98 = arith.constant 1 : index
    %c5_99 = arith.constant 5 : index
    %c0_100 = arith.constant 0 : index
    %c0_101 = arith.constant 0 : index
    %58 = vector.load %arg9[%c1_98, %c5_99, %c0_100, %c0_101] : memref<2x6x32x32xbf16, #tpu.memory_space<vmem>>, vector<1x1x32x32xbf16>
    %59 = vector.shape_cast %58 : vector<1x1x32x32xbf16> to vector<32x32xbf16>
    %c1_102 = arith.constant 1 : index
    %c0_103 = arith.constant 0 : index
    %c0_104 = arith.constant 0 : index
    %c0_105 = arith.constant 0 : index
    %60 = vector.load %arg10[%c1_102, %c0_103, %c0_104, %c0_105] : memref<2x6x1x32xf32, #tpu.memory_space<vmem>>, vector<1x1x1x32xf32>
    %61 = vector.shape_cast %60 : vector<1x1x1x32xf32> to vector<1x32xf32>
    %c1_106 = arith.constant 1 : index
    %c1_107 = arith.constant 1 : index
    %c0_108 = arith.constant 0 : index
    %c0_109 = arith.constant 0 : index
    %62 = vector.load %arg10[%c1_106, %c1_107, %c0_108, %c0_109] : memref<2x6x1x32xf32, #tpu.memory_space<vmem>>, vector<1x1x1x32xf32>
    %63 = vector.shape_cast %62 : vector<1x1x1x32xf32> to vector<1x32xf32>
    %c1_110 = arith.constant 1 : index
    %c2_111 = arith.constant 2 : index
    %c0_112 = arith.constant 0 : index
    %c0_113 = arith.constant 0 : index
    %64 = vector.load %arg10[%c1_110, %c2_111, %c0_112, %c0_113] : memref<2x6x1x32xf32, #tpu.memory_space<vmem>>, vector<1x1x1x32xf32>
    %65 = vector.shape_cast %64 : vector<1x1x1x32xf32> to vector<1x32xf32>
    %c1_114 = arith.constant 1 : index
    %c3_115 = arith.constant 3 : index
    %c0_116 = arith.constant 0 : index
    %c0_117 = arith.constant 0 : index
    %66 = vector.load %arg10[%c1_114, %c3_115, %c0_116, %c0_117] : memref<2x6x1x32xf32, #tpu.memory_space<vmem>>, vector<1x1x1x32xf32>
    %67 = vector.shape_cast %66 : vector<1x1x1x32xf32> to vector<1x32xf32>
    %c1_118 = arith.constant 1 : index
    %c4_119 = arith.constant 4 : index
    %c0_120 = arith.constant 0 : index
    %c0_121 = arith.constant 0 : index
    %68 = vector.load %arg10[%c1_118, %c4_119, %c0_120, %c0_121] : memref<2x6x1x32xf32, #tpu.memory_space<vmem>>, vector<1x1x1x32xf32>
    %69 = vector.shape_cast %68 : vector<1x1x1x32xf32> to vector<1x32xf32>
    %c1_122 = arith.constant 1 : index
    %c5_123 = arith.constant 5 : index
    %c0_124 = arith.constant 0 : index
    %c0_125 = arith.constant 0 : index
    %70 = vector.load %arg10[%c1_122, %c5_123, %c0_124, %c0_125] : memref<2x6x1x32xf32, #tpu.memory_space<vmem>>, vector<1x1x1x32xf32>
    %71 = vector.shape_cast %70 : vector<1x1x1x32xf32> to vector<1x32xf32>
    %c1_126 = arith.constant 1 : index
    %c0_127 = arith.constant 0 : index
    %c0_128 = arith.constant 0 : index
    %72 = vector.load %arg11[%c1_126, %c0_127, %c0_128] : memref<2x32x32xbf16, #tpu.memory_space<vmem>>, vector<1x32x32xbf16>
    %73 = vector.shape_cast %72 : vector<1x32x32xbf16> to vector<32x32xbf16>
    %c1_129 = arith.constant 1 : index
    %c0_130 = arith.constant 0 : index
    %c0_131 = arith.constant 0 : index
    %74 = vector.load %arg12[%c1_129, %c0_130, %c0_131] : memref<2x1x32xf32, #tpu.memory_space<vmem>>, vector<1x1x32xf32>
    %75 = vector.shape_cast %74 : vector<1x1x32xf32> to vector<1x32xf32>
    %c1_132 = arith.constant 1 : index
    %c0_133 = arith.constant 0 : index
    %c0_134 = arith.constant 0 : index
    %76 = vector.load %arg13[%c1_132, %c0_133, %c0_134] : memref<2x32x32xbf16, #tpu.memory_space<vmem>>, vector<1x32x32xbf16>
    %77 = vector.shape_cast %76 : vector<1x32x32xbf16> to vector<32x32xbf16>
    %c1_135 = arith.constant 1 : index
    %c0_136 = arith.constant 0 : index
    %c0_137 = arith.constant 0 : index
    %78 = vector.load %arg14[%c1_135, %c0_136, %c0_137] : memref<2x1x32xf32, #tpu.memory_space<vmem>>, vector<1x1x32xf32>
    %79 = vector.shape_cast %78 : vector<1x1x32xf32> to vector<1x32xf32>
    %c1_138 = arith.constant 1 : index
    %c0_139 = arith.constant 0 : index
    %c0_140 = arith.constant 0 : index
    %80 = vector.load %arg15[%c1_138, %c0_139, %c0_140] : memref<2x32x32xbf16, #tpu.memory_space<vmem>>, vector<1x32x32xbf16>
    %81 = vector.shape_cast %80 : vector<1x32x32xbf16> to vector<32x32xbf16>
    %c1_141 = arith.constant 1 : index
    %c0_142 = arith.constant 0 : index
    %c0_143 = arith.constant 0 : index
    %82 = vector.load %arg16[%c1_141, %c0_142, %c0_143] : memref<2x1x32xf32, #tpu.memory_space<vmem>>, vector<1x1x32xf32>
    %83 = vector.shape_cast %82 : vector<1x1x32xf32> to vector<1x32xf32>
    %c1_144 = arith.constant 1 : index
    %c0_145 = arith.constant 0 : index
    %c0_146 = arith.constant 0 : index
    %84 = vector.load %arg17[%c1_144, %c0_145, %c0_146] : memref<2x32x32xbf16, #tpu.memory_space<vmem>>, vector<1x32x32xbf16>
    %85 = vector.shape_cast %84 : vector<1x32x32xbf16> to vector<32x32xbf16>
    %c1_147 = arith.constant 1 : index
    %c0_148 = arith.constant 0 : index
    %c0_149 = arith.constant 0 : index
    %86 = vector.load %arg18[%c1_147, %c0_148, %c0_149] : memref<2x1x32xf32, #tpu.memory_space<vmem>>, vector<1x1x32xf32>
    %87 = vector.shape_cast %86 : vector<1x1x32xf32> to vector<1x32xf32>
    %c1_150 = arith.constant 1 : index
    %c0_151 = arith.constant 0 : index
    %c0_152 = arith.constant 0 : index
    %88 = vector.load %arg19[%c1_150, %c0_151, %c0_152] : memref<2x32x128xbf16, #tpu.memory_space<vmem>>, vector<1x32x128xbf16>
    %89 = vector.shape_cast %88 : vector<1x32x128xbf16> to vector<32x128xbf16>
    %c1_153 = arith.constant 1 : index
    %c0_154 = arith.constant 0 : index
    %c0_155 = arith.constant 0 : index
    %90 = vector.load %arg20[%c1_153, %c0_154, %c0_155] : memref<2x1x128xf32, #tpu.memory_space<vmem>>, vector<1x1x128xf32>
    %91 = vector.shape_cast %90 : vector<1x1x128xf32> to vector<1x128xf32>
    %c1_156 = arith.constant 1 : index
    %c0_157 = arith.constant 0 : index
    %c0_158 = arith.constant 0 : index
    %92 = vector.load %arg21[%c1_156, %c0_157, %c0_158] : memref<2x128x32xbf16, #tpu.memory_space<vmem>>, vector<1x128x32xbf16>
    %93 = vector.shape_cast %92 : vector<1x128x32xbf16> to vector<128x32xbf16>
    %c1_159 = arith.constant 1 : index
    %c0_160 = arith.constant 0 : index
    %c0_161 = arith.constant 0 : index
    %94 = vector.load %arg22[%c1_159, %c0_160, %c0_161] : memref<2x1x32xf32, #tpu.memory_space<vmem>>, vector<1x1x32xf32>
    %95 = vector.shape_cast %94 : vector<1x1x32xf32> to vector<1x32xf32>
    %c0_162 = arith.constant 0 : index
    %c0_163 = arith.constant 0 : index
    %96 = vector.load %arg1[%c0_162, %c0_163] : memref<32x32xf32, #tpu.memory_space<vmem>>, vector<32x32xf32>
    %c0_164 = arith.constant 0 : index
    %c0_165 = arith.constant 0 : index
    %97 = vector.load %arg2[%c0_164, %c0_165] : memref<32x8xbf16, #tpu.memory_space<vmem>>, vector<32x8xbf16>
    %c0_166 = arith.constant 0 : index
    %c0_167 = arith.constant 0 : index
    %98 = vector.load %arg3[%c0_166, %c0_167] : memref<32x32xf32, #tpu.memory_space<vmem>>, vector<32x32xf32>
    %c0_168 = arith.constant 0 : index
    %c0_169 = arith.constant 0 : index
    %99 = vector.load %arg4[%c0_168, %c0_169] : memref<32x128xf32, #tpu.memory_space<vmem>>, vector<32x128xf32>
    %c0_170 = arith.constant 0 : index
    %c0_171 = arith.constant 0 : index
    %100 = vector.load %arg5[%c0_170, %c0_171] : memref<128x32xbf16, #tpu.memory_space<vmem>>, vector<128x32xbf16>
    %c0_172 = arith.constant 0 : index
    %c0_173 = arith.constant 0 : index
    %101 = vector.load %arg6[%c0_172, %c0_173] : memref<128x32xf32, #tpu.memory_space<vmem>>, vector<128x32xf32>
    %c0_174 = arith.constant 0 : index
    %c0_175 = arith.constant 0 : index
    %102 = vector.load %arg7[%c0_174, %c0_175] : memref<128x128xbf16, #tpu.memory_space<vmem>>, vector<128x128xbf16>
    %c0_176 = arith.constant 0 : index
    %c0_177 = arith.constant 0 : index
    %103 = vector.load %arg8[%c0_176, %c0_177] : memref<8x32xbf16, #tpu.memory_space<vmem>>, vector<8x32xbf16>
    %c0_178 = arith.constant 0 : index
    %c0_179 = arith.constant 0 : index
    %c0_180 = arith.constant 0 : index
    %104 = vector.load %arg23[%c0_178, %c0_179, %c0_180] : memref<2x32x32xbf16, #tpu.memory_space<vmem>>, vector<1x32x32xbf16>
    %105 = vector.shape_cast %104 : vector<1x32x32xbf16> to vector<32x32xbf16>
    %c1_181 = arith.constant 1 : index
    %c0_182 = arith.constant 0 : index
    %c0_183 = arith.constant 0 : index
    %106 = vector.load %arg23[%c1_181, %c0_182, %c0_183] : memref<2x32x32xbf16, #tpu.memory_space<vmem>>, vector<1x32x32xbf16>
    %107 = vector.shape_cast %106 : vector<1x32x32xbf16> to vector<32x32xbf16>
    %c0_184 = arith.constant 0 : index
    %c0_185 = arith.constant 0 : index
    %c0_186 = arith.constant 0 : index
    %108 = vector.load %arg24[%c0_184, %c0_185, %c0_186] : memref<2x1x32xf32, #tpu.memory_space<vmem>>, vector<1x1x32xf32>
    %109 = vector.shape_cast %108 : vector<1x1x32xf32> to vector<1x32xf32>
    %c1_187 = arith.constant 1 : index
    %c0_188 = arith.constant 0 : index
    %c0_189 = arith.constant 0 : index
    %110 = vector.load %arg24[%c1_187, %c0_188, %c0_189] : memref<2x1x32xf32, #tpu.memory_space<vmem>>, vector<1x1x32xf32>
    %111 = vector.shape_cast %110 : vector<1x1x32xf32> to vector<1x32xf32>
    %c0_190 = arith.constant 0 : index
    %c0_191 = arith.constant 0 : index
    %112 = vector.load %arg25[%c0_190, %c0_191] : memref<32x128xbf16, #tpu.memory_space<vmem>>, vector<32x128xbf16>
    %c0_192 = arith.constant 0 : index
    %c0_193 = arith.constant 0 : index
    %113 = vector.load %arg26[%c0_192, %c0_193] : memref<1x128xf32, #tpu.memory_space<vmem>>, vector<1x128xf32>
    %cst = arith.constant dense<0.000000e+00> : vector<32x32xf32>
    %114 = tpu.matmul %97, %103, %cst {dimension_numbers = #tpu.dot_dimension_numbers<[1], [0], [0], [1], [0, 0, 1, 1], [], []>} : vector<32x8xbf16>, vector<8x32xbf16>, vector<32x32xf32> -> vector<32x32xf32>
    %115 = arith.addf %96, %114 : vector<32x32xf32>
    %116 = arith.negf %98 : vector<32x32xf32>
    %117 = math.exp %116 : vector<32x32xf32>
    %cst_194 = arith.constant 1.000000e+00 : f32
    %118 = vector.broadcast %cst_194 : f32 to vector<32x32xf32>
    %119 = arith.addf %118, %117 : vector<32x32xf32>
    %120 = arith.divf %118, %119 : vector<32x32xf32>
    %121 = arith.mulf %98, %120 : vector<32x32xf32>
    %122 = arith.truncf %121 : vector<32x32xf32> to vector<32x32xbf16>
    %cst_195 = arith.constant dense<0.000000e+00> : vector<32x32xf32>
    %123 = tpu.matmul %122, %1, %cst_195 {dimension_numbers = #tpu.dot_dimension_numbers<[1], [0], [0], [1], [0, 0, 1, 1], [], []>} : vector<32x32xbf16>, vector<32x32xbf16>, vector<32x32xf32> -> vector<32x32xf32>
    %124 = vector.broadcast %13 : vector<1x32xf32> to vector<32x32xf32>
    %125 = arith.addf %123, %124 : vector<32x32xf32>
    %126 = arith.truncf %121 : vector<32x32xf32> to vector<32x32xbf16>
    %cst_196 = arith.constant dense<0.000000e+00> : vector<32x32xf32>
    %127 = tpu.matmul %126, %3, %cst_196 {dimension_numbers = #tpu.dot_dimension_numbers<[1], [0], [0], [1], [0, 0, 1, 1], [], []>} : vector<32x32xbf16>, vector<32x32xbf16>, vector<32x32xf32> -> vector<32x32xf32>
    %128 = vector.broadcast %15 : vector<1x32xf32> to vector<32x32xf32>
    %129 = arith.addf %127, %128 : vector<32x32xf32>
    %130 = arith.truncf %121 : vector<32x32xf32> to vector<32x32xbf16>
    %cst_197 = arith.constant dense<0.000000e+00> : vector<32x32xf32>
    %131 = tpu.matmul %130, %5, %cst_197 {dimension_numbers = #tpu.dot_dimension_numbers<[1], [0], [0], [1], [0, 0, 1, 1], [], []>} : vector<32x32xbf16>, vector<32x32xbf16>, vector<32x32xf32> -> vector<32x32xf32>
    %132 = vector.broadcast %17 : vector<1x32xf32> to vector<32x32xf32>
    %133 = arith.addf %131, %132 : vector<32x32xf32>
    %134 = arith.truncf %121 : vector<32x32xf32> to vector<32x32xbf16>
    %cst_198 = arith.constant dense<0.000000e+00> : vector<32x32xf32>
    %135 = tpu.matmul %134, %7, %cst_198 {dimension_numbers = #tpu.dot_dimension_numbers<[1], [0], [0], [1], [0, 0, 1, 1], [], []>} : vector<32x32xbf16>, vector<32x32xbf16>, vector<32x32xf32> -> vector<32x32xf32>
    %136 = vector.broadcast %19 : vector<1x32xf32> to vector<32x32xf32>
    %137 = arith.addf %135, %136 : vector<32x32xf32>
    %138 = arith.truncf %121 : vector<32x32xf32> to vector<32x32xbf16>
    %cst_199 = arith.constant dense<0.000000e+00> : vector<32x32xf32>
    %139 = tpu.matmul %138, %9, %cst_199 {dimension_numbers = #tpu.dot_dimension_numbers<[1], [0], [0], [1], [0, 0, 1, 1], [], []>} : vector<32x32xbf16>, vector<32x32xbf16>, vector<32x32xf32> -> vector<32x32xf32>
    %140 = vector.broadcast %21 : vector<1x32xf32> to vector<32x32xf32>
    %141 = arith.addf %139, %140 : vector<32x32xf32>
    %142 = arith.truncf %121 : vector<32x32xf32> to vector<32x32xbf16>
    %cst_200 = arith.constant dense<0.000000e+00> : vector<32x32xf32>
    %143 = tpu.matmul %142, %11, %cst_200 {dimension_numbers = #tpu.dot_dimension_numbers<[1], [0], [0], [1], [0, 0, 1, 1], [], []>} : vector<32x32xbf16>, vector<32x32xbf16>, vector<32x32xf32> -> vector<32x32xf32>
    %144 = vector.broadcast %23 : vector<1x32xf32> to vector<32x32xf32>
    %145 = arith.addf %143, %144 : vector<32x32xf32>
    %cst_201 = arith.constant dense<0.000000e+00> : vector<32xf32>
    %146 = vector.multi_reduction <add>, %115, %cst_201 [1] : vector<32x32xf32> to vector<32xf32>
    %147 = vector.shape_cast %146 : vector<32xf32> to vector<32x1xf32>
    %cst_202 = arith.constant 3.200000e+01 : f32
    %148 = vector.broadcast %cst_202 : f32 to vector<32x1xf32>
    %149 = arith.divf %147, %148 : vector<32x1xf32>
    %150 = vector.broadcast %149 : vector<32x1xf32> to vector<32x32xf32>
    %151 = arith.subf %115, %150 : vector<32x32xf32>
    %152 = arith.mulf %151, %151 : vector<32x32xf32>
    %cst_203 = arith.constant dense<0.000000e+00> : vector<32xf32>
    %153 = vector.multi_reduction <add>, %152, %cst_203 [1] : vector<32x32xf32> to vector<32xf32>
    %154 = vector.shape_cast %153 : vector<32xf32> to vector<32x1xf32>
    %cst_204 = arith.constant 3.200000e+01 : f32
    %155 = vector.broadcast %cst_204 : f32 to vector<32x1xf32>
    %156 = arith.divf %154, %155 : vector<32x1xf32>
    %cst_205 = arith.constant 9.99999997E-7 : f32
    %157 = vector.broadcast %cst_205 : f32 to vector<32x1xf32>
    %158 = arith.addf %156, %157 : vector<32x1xf32>
    %159 = math.rsqrt %158 : vector<32x1xf32>
    %160 = vector.broadcast %159 : vector<32x1xf32> to vector<32x32xf32>
    %161 = arith.mulf %151, %160 : vector<32x32xf32>
    %cst_206 = arith.constant 1.000000e+00 : f32
    %162 = vector.broadcast %cst_206 : f32 to vector<32x32xf32>
    %163 = arith.addf %133, %162 : vector<32x32xf32>
    %164 = arith.mulf %161, %163 : vector<32x32xf32>
    %165 = arith.addf %164, %141 : vector<32x32xf32>
    %166 = arith.truncf %165 : vector<32x32xf32> to vector<32x32xbf16>
    %cst_207 = arith.constant dense<0.000000e+00> : vector<32x32xf32>
    %167 = tpu.matmul %166, %25, %cst_207 {dimension_numbers = #tpu.dot_dimension_numbers<[1], [0], [0], [1], [0, 0, 1, 1], [], []>} : vector<32x32xbf16>, vector<32x32xbf16>, vector<32x32xf32> -> vector<32x32xf32>
    %168 = vector.broadcast %27 : vector<1x32xf32> to vector<32x32xf32>
    %169 = arith.addf %167, %168 : vector<32x32xf32>
    %cst_208 = arith.constant 0.0883883461 : f32
    %170 = vector.broadcast %cst_208 : f32 to vector<32x32xf32>
    %171 = arith.mulf %169, %170 : vector<32x32xf32>
    %172 = arith.truncf %165 : vector<32x32xf32> to vector<32x32xbf16>
    %cst_209 = arith.constant dense<0.000000e+00> : vector<32x32xf32>
    %173 = tpu.matmul %172, %29, %cst_209 {dimension_numbers = #tpu.dot_dimension_numbers<[1], [0], [0], [1], [0, 0, 1, 1], [], []>} : vector<32x32xbf16>, vector<32x32xbf16>, vector<32x32xf32> -> vector<32x32xf32>
    %174 = vector.broadcast %31 : vector<1x32xf32> to vector<32x32xf32>
    %175 = arith.addf %173, %174 : vector<32x32xf32>
    %176 = arith.truncf %165 : vector<32x32xf32> to vector<32x32xbf16>
    %cst_210 = arith.constant dense<0.000000e+00> : vector<32x32xf32>
    %177 = tpu.matmul %176, %33, %cst_210 {dimension_numbers = #tpu.dot_dimension_numbers<[1], [0], [0], [1], [0, 0, 1, 1], [], []>} : vector<32x32xbf16>, vector<32x32xbf16>, vector<32x32xf32> -> vector<32x32xf32>
    %178 = vector.broadcast %35 : vector<1x32xf32> to vector<32x32xf32>
    %179 = arith.addf %177, %178 : vector<32x32xf32>
    %180 = arith.truncf %175 : vector<32x32xf32> to vector<32x32xbf16>
    %cst_211 = arith.constant dense<0.000000e+00> : vector<128x32xf32>
    %181 = tpu.matmul %100, %180, %cst_211 {dimension_numbers = #tpu.dot_dimension_numbers<[1], [0], [0], [1], [0, 0, 1, 1], [], []>} : vector<128x32xbf16>, vector<32x32xbf16>, vector<128x32xf32> -> vector<128x32xf32>
    %182 = arith.mulf %181, %101 : vector<128x32xf32>
    %183 = arith.truncf %179 : vector<32x32xf32> to vector<32x32xbf16>
    %cst_212 = arith.constant dense<0.000000e+00> : vector<128x32xf32>
    %184 = tpu.matmul %100, %183, %cst_212 {dimension_numbers = #tpu.dot_dimension_numbers<[1], [0], [0], [1], [0, 0, 1, 1], [], []>} : vector<128x32xbf16>, vector<32x32xbf16>, vector<128x32xf32> -> vector<128x32xf32>
    %185 = arith.mulf %184, %101 : vector<128x32xf32>
    %186 = arith.truncf %171 : vector<32x32xf32> to vector<32x32xbf16>
    %187 = arith.truncf %182 : vector<128x32xf32> to vector<128x32xbf16>
    %cst_213 = arith.constant dense<0.000000e+00> : vector<32x128xf32>
    %188 = tpu.matmul %186, %187, %cst_213 {dimension_numbers = #tpu.dot_dimension_numbers<[1], [1], [0], [0], [0, 0, 1, 0], [], []>} : vector<32x32xbf16>, vector<128x32xbf16>, vector<32x128xf32> -> vector<32x128xf32>
    %189 = arith.addf %188, %99 : vector<32x128xf32>
    %190 = math.exp %189 : vector<32x128xf32>
    %191 = arith.truncf %190 : vector<32x128xf32> to vector<32x128xbf16>
    %cst_214 = arith.constant dense<0.000000e+00> : vector<32x128xf32>
    %192 = tpu.matmul %191, %102, %cst_214 {dimension_numbers = #tpu.dot_dimension_numbers<[1], [0], [0], [1], [0, 0, 1, 1], [], []>} : vector<32x128xbf16>, vector<128x128xbf16>, vector<32x128xf32> -> vector<32x128xf32>
    %cst_215 = arith.constant 9.99999968E-21 : f32
    %193 = vector.broadcast %cst_215 : f32 to vector<32x128xf32>
    %194 = arith.addf %192, %193 : vector<32x128xf32>
    %195 = tpu.reciprocal %194 {approx = true} : vector<32x128xf32> -> vector<32x128xf32>
    %196 = arith.mulf %190, %195 : vector<32x128xf32>
    %197 = arith.truncf %196 : vector<32x128xf32> to vector<32x128xbf16>
    %198 = arith.truncf %185 : vector<128x32xf32> to vector<128x32xbf16>
    %cst_216 = arith.constant dense<0.000000e+00> : vector<32x32xf32>
    %199 = tpu.matmul %197, %198, %cst_216 {dimension_numbers = #tpu.dot_dimension_numbers<[1], [0], [0], [1], [0, 0, 1, 1], [], []>} : vector<32x128xbf16>, vector<128x32xbf16>, vector<32x32xf32> -> vector<32x32xf32>
    %200 = arith.truncf %199 : vector<32x32xf32> to vector<32x32xbf16>
    %cst_217 = arith.constant dense<0.000000e+00> : vector<32x32xf32>
    %201 = tpu.matmul %200, %37, %cst_217 {dimension_numbers = #tpu.dot_dimension_numbers<[1], [0], [0], [1], [0, 0, 1, 1], [], []>} : vector<32x32xbf16>, vector<32x32xbf16>, vector<32x32xf32> -> vector<32x32xf32>
    %202 = vector.broadcast %39 : vector<1x32xf32> to vector<32x32xf32>
    %203 = arith.addf %201, %202 : vector<32x32xf32>
    %204 = arith.mulf %203, %125 : vector<32x32xf32>
    %205 = arith.addf %115, %204 : vector<32x32xf32>
    %cst_218 = arith.constant dense<0.000000e+00> : vector<32xf32>
    %206 = vector.multi_reduction <add>, %205, %cst_218 [1] : vector<32x32xf32> to vector<32xf32>
    %207 = vector.shape_cast %206 : vector<32xf32> to vector<32x1xf32>
    %cst_219 = arith.constant 3.200000e+01 : f32
    %208 = vector.broadcast %cst_219 : f32 to vector<32x1xf32>
    %209 = arith.divf %207, %208 : vector<32x1xf32>
    %210 = vector.broadcast %209 : vector<32x1xf32> to vector<32x32xf32>
    %211 = arith.subf %205, %210 : vector<32x32xf32>
    %212 = arith.mulf %211, %211 : vector<32x32xf32>
    %cst_220 = arith.constant dense<0.000000e+00> : vector<32xf32>
    %213 = vector.multi_reduction <add>, %212, %cst_220 [1] : vector<32x32xf32> to vector<32xf32>
    %214 = vector.shape_cast %213 : vector<32xf32> to vector<32x1xf32>
    %cst_221 = arith.constant 3.200000e+01 : f32
    %215 = vector.broadcast %cst_221 : f32 to vector<32x1xf32>
    %216 = arith.divf %214, %215 : vector<32x1xf32>
    %cst_222 = arith.constant 9.99999997E-7 : f32
    %217 = vector.broadcast %cst_222 : f32 to vector<32x1xf32>
    %218 = arith.addf %216, %217 : vector<32x1xf32>
    %219 = math.rsqrt %218 : vector<32x1xf32>
    %220 = vector.broadcast %219 : vector<32x1xf32> to vector<32x32xf32>
    %221 = arith.mulf %211, %220 : vector<32x32xf32>
    %cst_223 = arith.constant 1.000000e+00 : f32
    %222 = vector.broadcast %cst_223 : f32 to vector<32x32xf32>
    %223 = arith.addf %137, %222 : vector<32x32xf32>
    %224 = arith.mulf %221, %223 : vector<32x32xf32>
    %225 = arith.addf %224, %145 : vector<32x32xf32>
    %226 = arith.truncf %225 : vector<32x32xf32> to vector<32x32xbf16>
    %cst_224 = arith.constant dense<0.000000e+00> : vector<32x128xf32>
    %227 = tpu.matmul %226, %41, %cst_224 {dimension_numbers = #tpu.dot_dimension_numbers<[1], [0], [0], [1], [0, 0, 1, 1], [], []>} : vector<32x32xbf16>, vector<32x128xbf16>, vector<32x128xf32> -> vector<32x128xf32>
    %228 = vector.broadcast %43 : vector<1x128xf32> to vector<32x128xf32>
    %229 = arith.addf %227, %228 : vector<32x128xf32>
    %230 = arith.mulf %229, %229 : vector<32x128xf32>
    %231 = arith.mulf %229, %230 : vector<32x128xf32>
    %cst_225 = arith.constant 4.471500e-02 : f32
    %232 = vector.broadcast %cst_225 : f32 to vector<32x128xf32>
    %233 = arith.mulf %232, %231 : vector<32x128xf32>
    %234 = arith.addf %229, %233 : vector<32x128xf32>
    %cst_226 = arith.constant 0.797884583 : f32
    %235 = vector.broadcast %cst_226 : f32 to vector<32x128xf32>
    %236 = arith.mulf %235, %234 : vector<32x128xf32>
    %237 = math.tanh %236 : vector<32x128xf32>
    %cst_227 = arith.constant 1.000000e+00 : f32
    %238 = vector.broadcast %cst_227 : f32 to vector<32x128xf32>
    %239 = arith.addf %238, %237 : vector<32x128xf32>
    %cst_228 = arith.constant 5.000000e-01 : f32
    %240 = vector.broadcast %cst_228 : f32 to vector<32x128xf32>
    %241 = arith.mulf %240, %239 : vector<32x128xf32>
    %242 = arith.mulf %229, %241 : vector<32x128xf32>
    %243 = arith.truncf %242 : vector<32x128xf32> to vector<32x128xbf16>
    %cst_229 = arith.constant dense<0.000000e+00> : vector<32x32xf32>
    %244 = tpu.matmul %243, %45, %cst_229 {dimension_numbers = #tpu.dot_dimension_numbers<[1], [0], [0], [1], [0, 0, 1, 1], [], []>} : vector<32x128xbf16>, vector<128x32xbf16>, vector<32x32xf32> -> vector<32x32xf32>
    %245 = vector.broadcast %47 : vector<1x32xf32> to vector<32x32xf32>
    %246 = arith.addf %244, %245 : vector<32x32xf32>
    %247 = arith.mulf %246, %129 : vector<32x32xf32>
    %248 = arith.addf %205, %247 : vector<32x32xf32>
    %249 = arith.truncf %121 : vector<32x32xf32> to vector<32x32xbf16>
    %cst_230 = arith.constant dense<0.000000e+00> : vector<32x32xf32>
    %250 = tpu.matmul %249, %49, %cst_230 {dimension_numbers = #tpu.dot_dimension_numbers<[1], [0], [0], [1], [0, 0, 1, 1], [], []>} : vector<32x32xbf16>, vector<32x32xbf16>, vector<32x32xf32> -> vector<32x32xf32>
    %251 = vector.broadcast %61 : vector<1x32xf32> to vector<32x32xf32>
    %252 = arith.addf %250, %251 : vector<32x32xf32>
    %253 = arith.truncf %121 : vector<32x32xf32> to vector<32x32xbf16>
    %cst_231 = arith.constant dense<0.000000e+00> : vector<32x32xf32>
    %254 = tpu.matmul %253, %51, %cst_231 {dimension_numbers = #tpu.dot_dimension_numbers<[1], [0], [0], [1], [0, 0, 1, 1], [], []>} : vector<32x32xbf16>, vector<32x32xbf16>, vector<32x32xf32> -> vector<32x32xf32>
    %255 = vector.broadcast %63 : vector<1x32xf32> to vector<32x32xf32>
    %256 = arith.addf %254, %255 : vector<32x32xf32>
    %257 = arith.truncf %121 : vector<32x32xf32> to vector<32x32xbf16>
    %cst_232 = arith.constant dense<0.000000e+00> : vector<32x32xf32>
    %258 = tpu.matmul %257, %53, %cst_232 {dimension_numbers = #tpu.dot_dimension_numbers<[1], [0], [0], [1], [0, 0, 1, 1], [], []>} : vector<32x32xbf16>, vector<32x32xbf16>, vector<32x32xf32> -> vector<32x32xf32>
    %259 = vector.broadcast %65 : vector<1x32xf32> to vector<32x32xf32>
    %260 = arith.addf %258, %259 : vector<32x32xf32>
    %261 = arith.truncf %121 : vector<32x32xf32> to vector<32x32xbf16>
    %cst_233 = arith.constant dense<0.000000e+00> : vector<32x32xf32>
    %262 = tpu.matmul %261, %55, %cst_233 {dimension_numbers = #tpu.dot_dimension_numbers<[1], [0], [0], [1], [0, 0, 1, 1], [], []>} : vector<32x32xbf16>, vector<32x32xbf16>, vector<32x32xf32> -> vector<32x32xf32>
    %263 = vector.broadcast %67 : vector<1x32xf32> to vector<32x32xf32>
    %264 = arith.addf %262, %263 : vector<32x32xf32>
    %265 = arith.truncf %121 : vector<32x32xf32> to vector<32x32xbf16>
    %cst_234 = arith.constant dense<0.000000e+00> : vector<32x32xf32>
    %266 = tpu.matmul %265, %57, %cst_234 {dimension_numbers = #tpu.dot_dimension_numbers<[1], [0], [0], [1], [0, 0, 1, 1], [], []>} : vector<32x32xbf16>, vector<32x32xbf16>, vector<32x32xf32> -> vector<32x32xf32>
    %267 = vector.broadcast %69 : vector<1x32xf32> to vector<32x32xf32>
    %268 = arith.addf %266, %267 : vector<32x32xf32>
    %269 = arith.truncf %121 : vector<32x32xf32> to vector<32x32xbf16>
    %cst_235 = arith.constant dense<0.000000e+00> : vector<32x32xf32>
    %270 = tpu.matmul %269, %59, %cst_235 {dimension_numbers = #tpu.dot_dimension_numbers<[1], [0], [0], [1], [0, 0, 1, 1], [], []>} : vector<32x32xbf16>, vector<32x32xbf16>, vector<32x32xf32> -> vector<32x32xf32>
    %271 = vector.broadcast %71 : vector<1x32xf32> to vector<32x32xf32>
    %272 = arith.addf %270, %271 : vector<32x32xf32>
    %cst_236 = arith.constant dense<0.000000e+00> : vector<32xf32>
    %273 = vector.multi_reduction <add>, %248, %cst_236 [1] : vector<32x32xf32> to vector<32xf32>
    %274 = vector.shape_cast %273 : vector<32xf32> to vector<32x1xf32>
    %cst_237 = arith.constant 3.200000e+01 : f32
    %275 = vector.broadcast %cst_237 : f32 to vector<32x1xf32>
    %276 = arith.divf %274, %275 : vector<32x1xf32>
    %277 = vector.broadcast %276 : vector<32x1xf32> to vector<32x32xf32>
    %278 = arith.subf %248, %277 : vector<32x32xf32>
    %279 = arith.mulf %278, %278 : vector<32x32xf32>
    %cst_238 = arith.constant dense<0.000000e+00> : vector<32xf32>
    %280 = vector.multi_reduction <add>, %279, %cst_238 [1] : vector<32x32xf32> to vector<32xf32>
    %281 = vector.shape_cast %280 : vector<32xf32> to vector<32x1xf32>
    %cst_239 = arith.constant 3.200000e+01 : f32
    %282 = vector.broadcast %cst_239 : f32 to vector<32x1xf32>
    %283 = arith.divf %281, %282 : vector<32x1xf32>
    %cst_240 = arith.constant 9.99999997E-7 : f32
    %284 = vector.broadcast %cst_240 : f32 to vector<32x1xf32>
    %285 = arith.addf %283, %284 : vector<32x1xf32>
    %286 = math.rsqrt %285 : vector<32x1xf32>
    %287 = vector.broadcast %286 : vector<32x1xf32> to vector<32x32xf32>
    %288 = arith.mulf %278, %287 : vector<32x32xf32>
    %cst_241 = arith.constant 1.000000e+00 : f32
    %289 = vector.broadcast %cst_241 : f32 to vector<32x32xf32>
    %290 = arith.addf %260, %289 : vector<32x32xf32>
    %291 = arith.mulf %288, %290 : vector<32x32xf32>
    %292 = arith.addf %291, %268 : vector<32x32xf32>
    %293 = arith.truncf %292 : vector<32x32xf32> to vector<32x32xbf16>
    %cst_242 = arith.constant dense<0.000000e+00> : vector<32x32xf32>
    %294 = tpu.matmul %293, %73, %cst_242 {dimension_numbers = #tpu.dot_dimension_numbers<[1], [0], [0], [1], [0, 0, 1, 1], [], []>} : vector<32x32xbf16>, vector<32x32xbf16>, vector<32x32xf32> -> vector<32x32xf32>
    %295 = vector.broadcast %75 : vector<1x32xf32> to vector<32x32xf32>
    %296 = arith.addf %294, %295 : vector<32x32xf32>
    %cst_243 = arith.constant 0.0883883461 : f32
    %297 = vector.broadcast %cst_243 : f32 to vector<32x32xf32>
    %298 = arith.mulf %296, %297 : vector<32x32xf32>
    %299 = arith.truncf %292 : vector<32x32xf32> to vector<32x32xbf16>
    %cst_244 = arith.constant dense<0.000000e+00> : vector<32x32xf32>
    %300 = tpu.matmul %299, %77, %cst_244 {dimension_numbers = #tpu.dot_dimension_numbers<[1], [0], [0], [1], [0, 0, 1, 1], [], []>} : vector<32x32xbf16>, vector<32x32xbf16>, vector<32x32xf32> -> vector<32x32xf32>
    %301 = vector.broadcast %79 : vector<1x32xf32> to vector<32x32xf32>
    %302 = arith.addf %300, %301 : vector<32x32xf32>
    %303 = arith.truncf %292 : vector<32x32xf32> to vector<32x32xbf16>
    %cst_245 = arith.constant dense<0.000000e+00> : vector<32x32xf32>
    %304 = tpu.matmul %303, %81, %cst_245 {dimension_numbers = #tpu.dot_dimension_numbers<[1], [0], [0], [1], [0, 0, 1, 1], [], []>} : vector<32x32xbf16>, vector<32x32xbf16>, vector<32x32xf32> -> vector<32x32xf32>
    %305 = vector.broadcast %83 : vector<1x32xf32> to vector<32x32xf32>
    %306 = arith.addf %304, %305 : vector<32x32xf32>
    %307 = arith.truncf %302 : vector<32x32xf32> to vector<32x32xbf16>
    %cst_246 = arith.constant dense<0.000000e+00> : vector<128x32xf32>
    %308 = tpu.matmul %100, %307, %cst_246 {dimension_numbers = #tpu.dot_dimension_numbers<[1], [0], [0], [1], [0, 0, 1, 1], [], []>} : vector<128x32xbf16>, vector<32x32xbf16>, vector<128x32xf32> -> vector<128x32xf32>
    %309 = arith.mulf %308, %101 : vector<128x32xf32>
    %310 = arith.truncf %306 : vector<32x32xf32> to vector<32x32xbf16>
    %cst_247 = arith.constant dense<0.000000e+00> : vector<128x32xf32>
    %311 = tpu.matmul %100, %310, %cst_247 {dimension_numbers = #tpu.dot_dimension_numbers<[1], [0], [0], [1], [0, 0, 1, 1], [], []>} : vector<128x32xbf16>, vector<32x32xbf16>, vector<128x32xf32> -> vector<128x32xf32>
    %312 = arith.mulf %311, %101 : vector<128x32xf32>
    %313 = arith.truncf %298 : vector<32x32xf32> to vector<32x32xbf16>
    %314 = arith.truncf %309 : vector<128x32xf32> to vector<128x32xbf16>
    %cst_248 = arith.constant dense<0.000000e+00> : vector<32x128xf32>
    %315 = tpu.matmul %313, %314, %cst_248 {dimension_numbers = #tpu.dot_dimension_numbers<[1], [1], [0], [0], [0, 0, 1, 0], [], []>} : vector<32x32xbf16>, vector<128x32xbf16>, vector<32x128xf32> -> vector<32x128xf32>
    %316 = arith.addf %315, %99 : vector<32x128xf32>
    %317 = math.exp %316 : vector<32x128xf32>
    %318 = arith.truncf %317 : vector<32x128xf32> to vector<32x128xbf16>
    %cst_249 = arith.constant dense<0.000000e+00> : vector<32x128xf32>
    %319 = tpu.matmul %318, %102, %cst_249 {dimension_numbers = #tpu.dot_dimension_numbers<[1], [0], [0], [1], [0, 0, 1, 1], [], []>} : vector<32x128xbf16>, vector<128x128xbf16>, vector<32x128xf32> -> vector<32x128xf32>
    %cst_250 = arith.constant 9.99999968E-21 : f32
    %320 = vector.broadcast %cst_250 : f32 to vector<32x128xf32>
    %321 = arith.addf %319, %320 : vector<32x128xf32>
    %322 = tpu.reciprocal %321 {approx = true} : vector<32x128xf32> -> vector<32x128xf32>
    %323 = arith.mulf %317, %322 : vector<32x128xf32>
    %324 = arith.truncf %323 : vector<32x128xf32> to vector<32x128xbf16>
    %325 = arith.truncf %312 : vector<128x32xf32> to vector<128x32xbf16>
    %cst_251 = arith.constant dense<0.000000e+00> : vector<32x32xf32>
    %326 = tpu.matmul %324, %325, %cst_251 {dimension_numbers = #tpu.dot_dimension_numbers<[1], [0], [0], [1], [0, 0, 1, 1], [], []>} : vector<32x128xbf16>, vector<128x32xbf16>, vector<32x32xf32> -> vector<32x32xf32>
    %327 = arith.truncf %326 : vector<32x32xf32> to vector<32x32xbf16>
    %cst_252 = arith.constant dense<0.000000e+00> : vector<32x32xf32>
    %328 = tpu.matmul %327, %85, %cst_252 {dimension_numbers = #tpu.dot_dimension_numbers<[1], [0], [0], [1], [0, 0, 1, 1], [], []>} : vector<32x32xbf16>, vector<32x32xbf16>, vector<32x32xf32> -> vector<32x32xf32>
    %329 = vector.broadcast %87 : vector<1x32xf32> to vector<32x32xf32>
    %330 = arith.addf %328, %329 : vector<32x32xf32>
    %331 = arith.mulf %330, %252 : vector<32x32xf32>
    %332 = arith.addf %248, %331 : vector<32x32xf32>
    %cst_253 = arith.constant dense<0.000000e+00> : vector<32xf32>
    %333 = vector.multi_reduction <add>, %332, %cst_253 [1] : vector<32x32xf32> to vector<32xf32>
    %334 = vector.shape_cast %333 : vector<32xf32> to vector<32x1xf32>
    %cst_254 = arith.constant 3.200000e+01 : f32
    %335 = vector.broadcast %cst_254 : f32 to vector<32x1xf32>
    %336 = arith.divf %334, %335 : vector<32x1xf32>
    %337 = vector.broadcast %336 : vector<32x1xf32> to vector<32x32xf32>
    %338 = arith.subf %332, %337 : vector<32x32xf32>
    %339 = arith.mulf %338, %338 : vector<32x32xf32>
    %cst_255 = arith.constant dense<0.000000e+00> : vector<32xf32>
    %340 = vector.multi_reduction <add>, %339, %cst_255 [1] : vector<32x32xf32> to vector<32xf32>
    %341 = vector.shape_cast %340 : vector<32xf32> to vector<32x1xf32>
    %cst_256 = arith.constant 3.200000e+01 : f32
    %342 = vector.broadcast %cst_256 : f32 to vector<32x1xf32>
    %343 = arith.divf %341, %342 : vector<32x1xf32>
    %cst_257 = arith.constant 9.99999997E-7 : f32
    %344 = vector.broadcast %cst_257 : f32 to vector<32x1xf32>
    %345 = arith.addf %343, %344 : vector<32x1xf32>
    %346 = math.rsqrt %345 : vector<32x1xf32>
    %347 = vector.broadcast %346 : vector<32x1xf32> to vector<32x32xf32>
    %348 = arith.mulf %338, %347 : vector<32x32xf32>
    %cst_258 = arith.constant 1.000000e+00 : f32
    %349 = vector.broadcast %cst_258 : f32 to vector<32x32xf32>
    %350 = arith.addf %264, %349 : vector<32x32xf32>
    %351 = arith.mulf %348, %350 : vector<32x32xf32>
    %352 = arith.addf %351, %272 : vector<32x32xf32>
    %353 = arith.truncf %352 : vector<32x32xf32> to vector<32x32xbf16>
    %cst_259 = arith.constant dense<0.000000e+00> : vector<32x128xf32>
    %354 = tpu.matmul %353, %89, %cst_259 {dimension_numbers = #tpu.dot_dimension_numbers<[1], [0], [0], [1], [0, 0, 1, 1], [], []>} : vector<32x32xbf16>, vector<32x128xbf16>, vector<32x128xf32> -> vector<32x128xf32>
    %355 = vector.broadcast %91 : vector<1x128xf32> to vector<32x128xf32>
    %356 = arith.addf %354, %355 : vector<32x128xf32>
    %357 = arith.mulf %356, %356 : vector<32x128xf32>
    %358 = arith.mulf %356, %357 : vector<32x128xf32>
    %cst_260 = arith.constant 4.471500e-02 : f32
    %359 = vector.broadcast %cst_260 : f32 to vector<32x128xf32>
    %360 = arith.mulf %359, %358 : vector<32x128xf32>
    %361 = arith.addf %356, %360 : vector<32x128xf32>
    %cst_261 = arith.constant 0.797884583 : f32
    %362 = vector.broadcast %cst_261 : f32 to vector<32x128xf32>
    %363 = arith.mulf %362, %361 : vector<32x128xf32>
    %364 = math.tanh %363 : vector<32x128xf32>
    %cst_262 = arith.constant 1.000000e+00 : f32
    %365 = vector.broadcast %cst_262 : f32 to vector<32x128xf32>
    %366 = arith.addf %365, %364 : vector<32x128xf32>
    %cst_263 = arith.constant 5.000000e-01 : f32
    %367 = vector.broadcast %cst_263 : f32 to vector<32x128xf32>
    %368 = arith.mulf %367, %366 : vector<32x128xf32>
    %369 = arith.mulf %356, %368 : vector<32x128xf32>
    %370 = arith.truncf %369 : vector<32x128xf32> to vector<32x128xbf16>
    %cst_264 = arith.constant dense<0.000000e+00> : vector<32x32xf32>
    %371 = tpu.matmul %370, %93, %cst_264 {dimension_numbers = #tpu.dot_dimension_numbers<[1], [0], [0], [1], [0, 0, 1, 1], [], []>} : vector<32x128xbf16>, vector<128x32xbf16>, vector<32x32xf32> -> vector<32x32xf32>
    %372 = vector.broadcast %95 : vector<1x32xf32> to vector<32x32xf32>
    %373 = arith.addf %371, %372 : vector<32x32xf32>
    %374 = arith.mulf %373, %256 : vector<32x32xf32>
    %375 = arith.addf %332, %374 : vector<32x32xf32>
    %376 = arith.truncf %121 : vector<32x32xf32> to vector<32x32xbf16>
    %cst_265 = arith.constant dense<0.000000e+00> : vector<32x32xf32>
    %377 = tpu.matmul %376, %105, %cst_265 {dimension_numbers = #tpu.dot_dimension_numbers<[1], [0], [0], [1], [0, 0, 1, 1], [], []>} : vector<32x32xbf16>, vector<32x32xbf16>, vector<32x32xf32> -> vector<32x32xf32>
    %378 = vector.broadcast %109 : vector<1x32xf32> to vector<32x32xf32>
    %379 = arith.addf %377, %378 : vector<32x32xf32>
    %380 = arith.truncf %121 : vector<32x32xf32> to vector<32x32xbf16>
    %cst_266 = arith.constant dense<0.000000e+00> : vector<32x32xf32>
    %381 = tpu.matmul %380, %107, %cst_266 {dimension_numbers = #tpu.dot_dimension_numbers<[1], [0], [0], [1], [0, 0, 1, 1], [], []>} : vector<32x32xbf16>, vector<32x32xbf16>, vector<32x32xf32> -> vector<32x32xf32>
    %382 = vector.broadcast %111 : vector<1x32xf32> to vector<32x32xf32>
    %383 = arith.addf %381, %382 : vector<32x32xf32>
    %cst_267 = arith.constant dense<0.000000e+00> : vector<32xf32>
    %384 = vector.multi_reduction <add>, %375, %cst_267 [1] : vector<32x32xf32> to vector<32xf32>
    %385 = vector.shape_cast %384 : vector<32xf32> to vector<32x1xf32>
    %cst_268 = arith.constant 3.200000e+01 : f32
    %386 = vector.broadcast %cst_268 : f32 to vector<32x1xf32>
    %387 = arith.divf %385, %386 : vector<32x1xf32>
    %388 = vector.broadcast %387 : vector<32x1xf32> to vector<32x32xf32>
    %389 = arith.subf %375, %388 : vector<32x32xf32>
    %390 = arith.mulf %389, %389 : vector<32x32xf32>
    %cst_269 = arith.constant dense<0.000000e+00> : vector<32xf32>
    %391 = vector.multi_reduction <add>, %390, %cst_269 [1] : vector<32x32xf32> to vector<32xf32>
    %392 = vector.shape_cast %391 : vector<32xf32> to vector<32x1xf32>
    %cst_270 = arith.constant 3.200000e+01 : f32
    %393 = vector.broadcast %cst_270 : f32 to vector<32x1xf32>
    %394 = arith.divf %392, %393 : vector<32x1xf32>
    %cst_271 = arith.constant 9.99999997E-7 : f32
    %395 = vector.broadcast %cst_271 : f32 to vector<32x1xf32>
    %396 = arith.addf %394, %395 : vector<32x1xf32>
    %397 = math.rsqrt %396 : vector<32x1xf32>
    %398 = vector.broadcast %397 : vector<32x1xf32> to vector<32x32xf32>
    %399 = arith.mulf %389, %398 : vector<32x32xf32>
    %cst_272 = arith.constant 1.000000e+00 : f32
    %400 = vector.broadcast %cst_272 : f32 to vector<32x32xf32>
    %401 = arith.addf %379, %400 : vector<32x32xf32>
    %402 = arith.mulf %399, %401 : vector<32x32xf32>
    %403 = arith.addf %402, %383 : vector<32x32xf32>
    %404 = arith.truncf %403 : vector<32x32xf32> to vector<32x32xbf16>
    %cst_273 = arith.constant dense<0.000000e+00> : vector<32x128xf32>
    %405 = tpu.matmul %404, %112, %cst_273 {dimension_numbers = #tpu.dot_dimension_numbers<[1], [0], [0], [1], [0, 0, 1, 1], [], []>} : vector<32x32xbf16>, vector<32x128xbf16>, vector<32x128xf32> -> vector<32x128xf32>
    %406 = vector.broadcast %113 : vector<1x128xf32> to vector<32x128xf32>
    %407 = arith.addf %405, %406 : vector<32x128xf32>
    %c0_274 = arith.constant 0 : index
    %c0_275 = arith.constant 0 : index
    %408 = vector.load %arg27[%c0_274, %c0_275] : memref<32x128xf32, #tpu.memory_space<vmem>>, vector<32x128xf32>
    tpu.vector_store %arg27[%c0_274, %c0_275], %407 {strides = array<i32>} : memref<32x128xf32, #tpu.memory_space<vmem>>, vector<32x128xf32>,
    return
  }
  func.func @transform_0(%arg0: i32) -> (i32, i32) {
    %c0_i32 = arith.constant 0 : i32
    %c0_i32_0 = arith.constant 0 : i32
    %c0_i32_1 = arith.constant 0 : i32
    return %c0_i32, %c0_i32_0 : i32, i32
  }
  func.func @transform_1(%arg0: i32) -> (i32, i32) {
    %c0_i32 = arith.constant 0 : i32
    %c0_i32_0 = arith.constant 0 : i32
    %c0_i32_1 = arith.constant 0 : i32
    return %c0_i32, %c0_i32_0 : i32, i32
  }
  func.func @transform_2(%arg0: i32) -> (i32, i32) {
    %c0_i32 = arith.constant 0 : i32
    %c0_i32_0 = arith.constant 0 : i32
    %c0_i32_1 = arith.constant 0 : i32
    return %c0_i32, %c0_i32_0 : i32, i32
  }
  func.func @transform_3(%arg0: i32) -> (i32, i32) {
    %c0_i32 = arith.constant 0 : i32
    %c0_i32_0 = arith.constant 0 : i32
    %c0_i32_1 = arith.constant 0 : i32
    return %c0_i32, %c0_i32_0 : i32, i32
  }
  func.func @transform_4(%arg0: i32) -> (i32, i32) {
    %c0_i32 = arith.constant 0 : i32
    %c0_i32_0 = arith.constant 0 : i32
    %c0_i32_1 = arith.constant 0 : i32
    return %c0_i32, %c0_i32_0 : i32, i32
  }
  func.func @transform_5(%arg0: i32) -> (i32, i32) {
    %c0_i32 = arith.constant 0 : i32
    %c0_i32_0 = arith.constant 0 : i32
    %c0_i32_1 = arith.constant 0 : i32
    return %c0_i32, %c0_i32_0 : i32, i32
  }
  func.func @transform_6(%arg0: i32) -> (i32, i32) {
    %c0_i32 = arith.constant 0 : i32
    %c0_i32_0 = arith.constant 0 : i32
    %c0_i32_1 = arith.constant 0 : i32
    return %c0_i32, %c0_i32_0 : i32, i32
  }
  func.func @transform_7(%arg0: i32) -> (i32, i32) {
    %c0_i32 = arith.constant 0 : i32
    %c0_i32_0 = arith.constant 0 : i32
    %c0_i32_1 = arith.constant 0 : i32
    return %c0_i32, %c0_i32_0 : i32, i32
  }
  func.func @transform_8(%arg0: i32) -> (i32, i32, i32, i32) {
    %c0_i32 = arith.constant 0 : i32
    %c0_i32_0 = arith.constant 0 : i32
    %c0_i32_1 = arith.constant 0 : i32
    %c0_i32_2 = arith.constant 0 : i32
    %c0_i32_3 = arith.constant 0 : i32
    return %c0_i32, %c0_i32_0, %c0_i32_1, %c0_i32_2 : i32, i32, i32, i32
  }
  func.func @transform_9(%arg0: i32) -> (i32, i32, i32, i32) {
    %c0_i32 = arith.constant 0 : i32
    %c0_i32_0 = arith.constant 0 : i32
    %c0_i32_1 = arith.constant 0 : i32
    %c0_i32_2 = arith.constant 0 : i32
    %c0_i32_3 = arith.constant 0 : i32
    return %c0_i32, %c0_i32_0, %c0_i32_1, %c0_i32_2 : i32, i32, i32, i32
  }
  func.func @transform_10(%arg0: i32) -> (i32, i32, i32) {
    %c0_i32 = arith.constant 0 : i32
    %c0_i32_0 = arith.constant 0 : i32
    %c0_i32_1 = arith.constant 0 : i32
    %c0_i32_2 = arith.constant 0 : i32
    return %c0_i32, %c0_i32_0, %c0_i32_1 : i32, i32, i32
  }
  func.func @transform_11(%arg0: i32) -> (i32, i32, i32) {
    %c0_i32 = arith.constant 0 : i32
    %c0_i32_0 = arith.constant 0 : i32
    %c0_i32_1 = arith.constant 0 : i32
    %c0_i32_2 = arith.constant 0 : i32
    return %c0_i32, %c0_i32_0, %c0_i32_1 : i32, i32, i32
  }
  func.func @transform_12(%arg0: i32) -> (i32, i32, i32) {
    %c0_i32 = arith.constant 0 : i32
    %c0_i32_0 = arith.constant 0 : i32
    %c0_i32_1 = arith.constant 0 : i32
    %c0_i32_2 = arith.constant 0 : i32
    return %c0_i32, %c0_i32_0, %c0_i32_1 : i32, i32, i32
  }
  func.func @transform_13(%arg0: i32) -> (i32, i32, i32) {
    %c0_i32 = arith.constant 0 : i32
    %c0_i32_0 = arith.constant 0 : i32
    %c0_i32_1 = arith.constant 0 : i32
    %c0_i32_2 = arith.constant 0 : i32
    return %c0_i32, %c0_i32_0, %c0_i32_1 : i32, i32, i32
  }
  func.func @transform_14(%arg0: i32) -> (i32, i32, i32) {
    %c0_i32 = arith.constant 0 : i32
    %c0_i32_0 = arith.constant 0 : i32
    %c0_i32_1 = arith.constant 0 : i32
    %c0_i32_2 = arith.constant 0 : i32
    return %c0_i32, %c0_i32_0, %c0_i32_1 : i32, i32, i32
  }
  func.func @transform_15(%arg0: i32) -> (i32, i32, i32) {
    %c0_i32 = arith.constant 0 : i32
    %c0_i32_0 = arith.constant 0 : i32
    %c0_i32_1 = arith.constant 0 : i32
    %c0_i32_2 = arith.constant 0 : i32
    return %c0_i32, %c0_i32_0, %c0_i32_1 : i32, i32, i32
  }
  func.func @transform_16(%arg0: i32) -> (i32, i32, i32) {
    %c0_i32 = arith.constant 0 : i32
    %c0_i32_0 = arith.constant 0 : i32
    %c0_i32_1 = arith.constant 0 : i32
    %c0_i32_2 = arith.constant 0 : i32
    return %c0_i32, %c0_i32_0, %c0_i32_1 : i32, i32, i32
  }
  func.func @transform_17(%arg0: i32) -> (i32, i32, i32) {
    %c0_i32 = arith.constant 0 : i32
    %c0_i32_0 = arith.constant 0 : i32
    %c0_i32_1 = arith.constant 0 : i32
    %c0_i32_2 = arith.constant 0 : i32
    return %c0_i32, %c0_i32_0, %c0_i32_1 : i32, i32, i32
  }
  func.func @transform_18(%arg0: i32) -> (i32, i32, i32) {
    %c0_i32 = arith.constant 0 : i32
    %c0_i32_0 = arith.constant 0 : i32
    %c0_i32_1 = arith.constant 0 : i32
    %c0_i32_2 = arith.constant 0 : i32
    return %c0_i32, %c0_i32_0, %c0_i32_1 : i32, i32, i32
  }
  func.func @transform_19(%arg0: i32) -> (i32, i32, i32) {
    %c0_i32 = arith.constant 0 : i32
    %c0_i32_0 = arith.constant 0 : i32
    %c0_i32_1 = arith.constant 0 : i32
    %c0_i32_2 = arith.constant 0 : i32
    return %c0_i32, %c0_i32_0, %c0_i32_1 : i32, i32, i32
  }
  func.func @transform_20(%arg0: i32) -> (i32, i32, i32) {
    %c0_i32 = arith.constant 0 : i32
    %c0_i32_0 = arith.constant 0 : i32
    %c0_i32_1 = arith.constant 0 : i32
    %c0_i32_2 = arith.constant 0 : i32
    return %c0_i32, %c0_i32_0, %c0_i32_1 : i32, i32, i32
  }
  func.func @transform_21(%arg0: i32) -> (i32, i32, i32) {
    %c0_i32 = arith.constant 0 : i32
    %c0_i32_0 = arith.constant 0 : i32
    %c0_i32_1 = arith.constant 0 : i32
    %c0_i32_2 = arith.constant 0 : i32
    return %c0_i32, %c0_i32_0, %c0_i32_1 : i32, i32, i32
  }
  func.func @transform_22(%arg0: i32) -> (i32, i32, i32) {
    %c0_i32 = arith.constant 0 : i32
    %c0_i32_0 = arith.constant 0 : i32
    %c0_i32_1 = arith.constant 0 : i32
    %c0_i32_2 = arith.constant 0 : i32
    return %c0_i32, %c0_i32_0, %c0_i32_1 : i32, i32, i32
  }
  func.func @transform_23(%arg0: i32) -> (i32, i32, i32) {
    %c0_i32 = arith.constant 0 : i32
    %c0_i32_0 = arith.constant 0 : i32
    %c0_i32_1 = arith.constant 0 : i32
    %c0_i32_2 = arith.constant 0 : i32
    return %c0_i32, %c0_i32_0, %c0_i32_1 : i32, i32, i32
  }
  func.func @transform_24(%arg0: i32) -> (i32, i32) {
    %c0_i32 = arith.constant 0 : i32
    %c0_i32_0 = arith.constant 0 : i32
    %c0_i32_1 = arith.constant 0 : i32
    return %c0_i32, %c0_i32_0 : i32, i32
  }
  func.func @transform_25(%arg0: i32) -> (i32, i32) {
    %c0_i32 = arith.constant 0 : i32
    %c0_i32_0 = arith.constant 0 : i32
    %c0_i32_1 = arith.constant 0 : i32
    return %c0_i32, %c0_i32_0 : i32, i32
  }
  func.func @transform_26(%arg0: i32) -> (i32, i32) {
    %c0_i32 = arith.constant 0 : i32
    %c0_i32_0 = arith.constant 0 : i32
    %c0_i32_1 = arith.constant 0 : i32
    return %c0_i32, %c0_i32_0 : i32, i32
  }
}

</mosaic_0001>

<llo_original>
// kernel: var_forward_pallas.1
$region0: #{var_forward_pallas.1}
  #allocation0 [shape = 'u32[]', space=smem, size = 0x4, offset = 0x4, fixed_abs, tag = 'smem constant byte address 0x4 - core index']
  #allocation1 [shape = 'u32[144,128]{1,0:T(1,128)}', space=vmem, size = 0x12000, scoped, tag = 'internal scratch']
  %s0 = inlined_call_operand.vmem [shape: f32[32,32], index: 0, kind: input, shape index: {}]
  %s1 = inlined_call_operand.vmem [shape: bf16[32,8], index: 1, kind: input, shape index: {}]
  %s2 = inlined_call_operand.vmem [shape: f32[32,32], index: 2, kind: input, shape index: {}]
  %s3 = inlined_call_operand.vmem [shape: f32[32,128], index: 3, kind: input, shape index: {}]
  %s4 = inlined_call_operand.vmem [shape: bf16[128,32], index: 4, kind: input, shape index: {}]
  %s5 = inlined_call_operand.vmem [shape: f32[128,32], index: 5, kind: input, shape index: {}]
  %s6 = inlined_call_operand.vmem [shape: bf16[128,128], index: 6, kind: input, shape index: {}]
  %s7 = inlined_call_operand.vmem [shape: bf16[8,32], index: 7, kind: input, shape index: {}]
  %s8 = inlined_call_operand.vmem [shape: bf16[2,6,32,32], index: 8, kind: input, shape index: {}]
  %s9 = inlined_call_operand.vmem [shape: f32[2,6,1,32], index: 9, kind: input, shape index: {}]
  %s10 = inlined_call_operand.vmem [shape: bf16[2,32,32], index: 10, kind: input, shape index: {}]
  %s11 = inlined_call_operand.vmem [shape: f32[2,1,32], index: 11, kind: input, shape index: {}]
  %s12 = inlined_call_operand.vmem [shape: bf16[2,32,32], index: 12, kind: input, shape index: {}]
  %s13 = inlined_call_operand.vmem [shape: f32[2,1,32], index: 13, kind: input, shape index: {}]
  %s14 = inlined_call_operand.vmem [shape: bf16[2,32,32], index: 14, kind: input, shape index: {}]
  %s15 = inlined_call_operand.vmem [shape: f32[2,1,32], index: 15, kind: input, shape index: {}]
  %s16 = inlined_call_operand.vmem [shape: bf16[2,32,32], index: 16, kind: input, shape index: {}]
  %s17 = inlined_call_operand.vmem [shape: f32[2,1,32], index: 17, kind: input, shape index: {}]
  %s18 = inlined_call_operand.vmem [shape: bf16[2,32,128], index: 18, kind: input, shape index: {}]
  %s19 = inlined_call_operand.vmem [shape: f32[2,1,128], index: 19, kind: input, shape index: {}]
  %s20 = inlined_call_operand.vmem [shape: bf16[2,128,32], index: 20, kind: input, shape index: {}]
  %s21 = inlined_call_operand.vmem [shape: f32[2,1,32], index: 21, kind: input, shape index: {}]
  %s22 = inlined_call_operand.vmem [shape: bf16[2,32,32], index: 22, kind: input, shape index: {}]
  %s23 = inlined_call_operand.vmem [shape: f32[2,1,32], index: 23, kind: input, shape index: {}]
  %s24 = inlined_call_operand.vmem [shape: bf16[32,128], index: 24, kind: input, shape index: {}]
  %s25 = inlined_call_operand.vmem [shape: f32[1,128], index: 25, kind: input, shape index: {}]
  %s26 = inlined_call_operand.vmem [shape: f32[32,128], index: 26, kind: output, shape index: {}]
  %s27 = sld [smem:[#allocation0]]
  $region114: #{var_forward_pallas.1} parent=0
    _
  %s29 = ssub.s32 1, %s27
  %s30 = scalar_select 0, %s29, %s27
  // Predicated region
  $region2: #{var_forward_pallas.1} parent=0 // pred_check
    _
  $region3: #{var_forward_pallas.1} parent=0 // pred_check_branch
    %32 = sbr.rel (0) target = $region5
  $region4: #{var_forward_pallas.1} parent=0 // pred_region
    _
  $region5: #{var_forward_pallas.1} parent=0 // pred_fallthru
    _
  // Predicated region
  $region6: #{var_forward_pallas.1} parent=0 // pred_check
    _
  $region7: #{var_forward_pallas.1} parent=0 // pred_check_branch
    %34 = sbr.rel (0) target = $region9
  $region8: #{var_forward_pallas.1} parent=0 // pred_region
    _
  $region9: #{var_forward_pallas.1} parent=0 // pred_fallthru
    _
  // Predicated region
  $region10: #{var_forward_pallas.1} parent=0 // pred_check
    _
  $region11: #{var_forward_pallas.1} parent=0 // pred_check_branch
    %36 = sbr.rel (0) target = $region13
  $region12: #{var_forward_pallas.1} parent=0 // pred_region
    _
  $region13: #{var_forward_pallas.1} parent=0 // pred_fallthru
    _
  // Predicated region
  $region14: #{var_forward_pallas.1} parent=0 // pred_check
    _
  $region15: #{var_forward_pallas.1} parent=0 // pred_check_branch
    %38 = sbr.rel (0) target = $region17
  $region16: #{var_forward_pallas.1} parent=0 // pred_region
    _
  $region17: #{var_forward_pallas.1} parent=0 // pred_fallthru
    _
  // Predicated region
  $region18: #{var_forward_pallas.1} parent=0 // pred_check
    _
  $region19: #{var_forward_pallas.1} parent=0 // pred_check_branch
    %40 = sbr.rel (0) target = $region21
  $region20: #{var_forward_pallas.1} parent=0 // pred_region
    _
  $region21: #{var_forward_pallas.1} parent=0 // pred_fallthru
    _
  // Predicated region
  $region22: #{var_forward_pallas.1} parent=0 // pred_check
    _
  $region23: #{var_forward_pallas.1} parent=0 // pred_check_branch
    %42 = sbr.rel (0) target = $region25
  $region24: #{var_forward_pallas.1} parent=0 // pred_region
    _
  $region25: #{var_forward_pallas.1} parent=0 // pred_fallthru
    _
  // Predicated region
  $region26: #{var_forward_pallas.1} parent=0 // pred_check
    _
  $region27: #{var_forward_pallas.1} parent=0 // pred_check_branch
    %44 = sbr.rel (0) target = $region29
  $region28: #{var_forward_pallas.1} parent=0 // pred_region
    _
  $region29: #{var_forward_pallas.1} parent=0 // pred_fallthru
    _
  // Predicated region
  $region30: #{var_forward_pallas.1} parent=0 // pred_check
    _
  $region31: #{var_forward_pallas.1} parent=0 // pred_check_branch
    %46 = sbr.rel (0) target = $region33
  $region32: #{var_forward_pallas.1} parent=0 // pred_region
    _
  $region33: #{var_forward_pallas.1} parent=0 // pred_fallthru
    _
  // Predicated region
  $region34: #{var_forward_pallas.1} parent=0 // pred_check
    _
  $region35: #{var_forward_pallas.1} parent=0 // pred_check_branch
    %48 = sbr.rel (0) target = $region37
  $region36: #{var_forward_pallas.1} parent=0 // pred_region
    _
  $region37: #{var_forward_pallas.1} parent=0 // pred_fallthru
    _
  // Predicated region
  $region38: #{var_forward_pallas.1} parent=0 // pred_check
    _
  $region39: #{var_forward_pallas.1} parent=0 // pred_check_branch
    %50 = sbr.rel (0) target = $region41
  $region40: #{var_forward_pallas.1} parent=0 // pred_region
    _
  $region41: #{var_forward_pallas.1} parent=0 // pred_fallthru
    _
  // Predicated region
  $region42: #{var_forward_pallas.1} parent=0 // pred_check
    _
  $region43: #{var_forward_pallas.1} parent=0 // pred_check_branch
    %52 = sbr.rel (0) target = $region45
  $region44: #{var_forward_pallas.1} parent=0 // pred_region
    _
  $region45: #{var_forward_pallas.1} parent=0 // pred_fallthru
    _
  // Predicated region
  $region46: #{var_forward_pallas.1} parent=0 // pred_check
    _
  $region47: #{var_forward_pallas.1} parent=0 // pred_check_branch
    %54 = sbr.rel (0) target = $region49
  $region48: #{var_forward_pallas.1} parent=0 // pred_region
    _
  $region49: #{var_forward_pallas.1} parent=0 // pred_fallthru
    _
  // Predicated region
  $region50: #{var_forward_pallas.1} parent=0 // pred_check
    _
  $region51: #{var_forward_pallas.1} parent=0 // pred_check_branch
    %56 = sbr.rel (0) target = $region53
  $region52: #{var_forward_pallas.1} parent=0 // pred_region
    _
  $region53: #{var_forward_pallas.1} parent=0 // pred_fallthru
    _
  // Predicated region
  $region54: #{var_forward_pallas.1} parent=0 // pred_check
    _
  $region55: #{var_forward_pallas.1} parent=0 // pred_check_branch
    %58 = sbr.rel (0) target = $region57
  $region56: #{var_forward_pallas.1} parent=0 // pred_region
    _
  $region57: #{var_forward_pallas.1} parent=0 // pred_fallthru
    _
  // Predicated region
  $region58: #{var_forward_pallas.1} parent=0 // pred_check
    _
  $region59: #{var_forward_pallas.1} parent=0 // pred_check_branch
    %60 = sbr.rel (0) target = $region61
  $region60: #{var_forward_pallas.1} parent=0 // pred_region
    _
  $region61: #{var_forward_pallas.1} parent=0 // pred_fallthru
    _
  // Predicated region
  $region62: #{var_forward_pallas.1} parent=0 // pred_check
    _
  $region63: #{var_forward_pallas.1} parent=0 // pred_check_branch
    %62 = sbr.rel (0) target = $region65
  $region64: #{var_forward_pallas.1} parent=0 // pred_region
    _
  $region65: #{var_forward_pallas.1} parent=0 // pred_fallthru
    _
  // Predicated region
  $region66: #{var_forward_pallas.1} parent=0 // pred_check
    _
  $region67: #{var_forward_pallas.1} parent=0 // pred_check_branch
    %64 = sbr.rel (0) target = $region69
  $region68: #{var_forward_pallas.1} parent=0 // pred_region
    _
  $region69: #{var_forward_pallas.1} parent=0 // pred_fallthru
    _
  // Predicated region
  $region70: #{var_forward_pallas.1} parent=0 // pred_check
    _
  $region71: #{var_forward_pallas.1} parent=0 // pred_check_branch
    %66 = sbr.rel (0) target = $region73
  $region72: #{var_forward_pallas.1} parent=0 // pred_region
    _
  $region73: #{var_forward_pallas.1} parent=0 // pred_fallthru
    _
  // Predicated region
  $region74: #{var_forward_pallas.1} parent=0 // pred_check
    _
  $region75: #{var_forward_pallas.1} parent=0 // pred_check_branch
    %68 = sbr.rel (0) target = $region77
  $region76: #{var_forward_pallas.1} parent=0 // pred_region
    _
  $region77: #{var_forward_pallas.1} parent=0 // pred_fallthru
    _
  // Predicated region
  $region78: #{var_forward_pallas.1} parent=0 // pred_check
    _
  $region79: #{var_forward_pallas.1} parent=0 // pred_check_branch
    %70 = sbr.rel (0) target = $region81
  $region80: #{var_forward_pallas.1} parent=0 // pred_region
    _
  $region81: #{var_forward_pallas.1} parent=0 // pred_fallthru
    _
  // Predicated region
  $region82: #{var_forward_pallas.1} parent=0 // pred_check
    _
  $region83: #{var_forward_pallas.1} parent=0 // pred_check_branch
    %72 = sbr.rel (0) target = $region85
  $region84: #{var_forward_pallas.1} parent=0 // pred_region
    _
  $region85: #{var_forward_pallas.1} parent=0 // pred_fallthru
    _
  // Predicated region
  $region86: #{var_forward_pallas.1} parent=0 // pred_check
    _
  $region87: #{var_forward_pallas.1} parent=0 // pred_check_branch
    %74 = sbr.rel (0) target = $region89
  $region88: #{var_forward_pallas.1} parent=0 // pred_region
    _
  $region89: #{var_forward_pallas.1} parent=0 // pred_fallthru
    _
  // Predicated region
  $region90: #{var_forward_pallas.1} parent=0 // pred_check
    _
  $region91: #{var_forward_pallas.1} parent=0 // pred_check_branch
    %76 = sbr.rel (0) target = $region93
  $region92: #{var_forward_pallas.1} parent=0 // pred_region
    _
  $region93: #{var_forward_pallas.1} parent=0 // pred_fallthru
    _
  // Predicated region
  $region94: #{var_forward_pallas.1} parent=0 // pred_check
    _
  $region95: #{var_forward_pallas.1} parent=0 // pred_check_branch
    %78 = sbr.rel (0) target = $region97
  $region96: #{var_forward_pallas.1} parent=0 // pred_region
    _
  $region97: #{var_forward_pallas.1} parent=0 // pred_fallthru
    _
  // Predicated region
  $region98: #{var_forward_pallas.1} parent=0 // pred_check
    _
  $region99: #{var_forward_pallas.1} parent=0 // pred_check_branch
    %80 = sbr.rel (0) target = $region101
  $region100: #{var_forward_pallas.1} parent=0 // pred_region
    _
  $region101: #{var_forward_pallas.1} parent=0 // pred_fallthru
    _
  // Predicated region
  $region102: #{var_forward_pallas.1} parent=0 // pred_check
    _
  $region103: #{var_forward_pallas.1} parent=0 // pred_check_branch
    %82 = sbr.rel (0) target = $region105
  $region104: #{var_forward_pallas.1} parent=0 // pred_region
    _
  $region105: #{var_forward_pallas.1} parent=0 // pred_fallthru
    _
  %v84 = vld [vmem:[%s8] sm:$0xf]
  %v85 = vld [vmem:[%s8 + $0x4] sm:$0xf]
  %v86 = vld [vmem:[%s8 + $0x8] sm:$0xf]
  %v87 = vld [vmem:[%s8 + $0xc] sm:$0xf]
  %s88 = scalar_lea.vmem %s8, 16
  %v89 = vld [vmem:[%s88] sm:$0xf]
  %v90 = vld [vmem:[%s88 + $0x4] sm:$0xf]
  %v91 = vld [vmem:[%s88 + $0x8] sm:$0xf]
  %v92 = vld [vmem:[%s88 + $0xc] sm:$0xf]
  %s93 = scalar_lea.vmem %s8, 32
  %v94 = vld [vmem:[%s93] sm:$0xf]
  %v95 = vld [vmem:[%s93 + $0x4] sm:$0xf]
  %v96 = vld [vmem:[%s93 + $0x8] sm:$0xf]
  %v97 = vld [vmem:[%s93 + $0xc] sm:$0xf]
  %s98 = scalar_lea.vmem %s8, 48
  %v99 = vld [vmem:[%s98] sm:$0xf]
  %v100 = vld [vmem:[%s98 + $0x4] sm:$0xf]
  %v101 = vld [vmem:[%s98 + $0x8] sm:$0xf]
  %v102 = vld [vmem:[%s98 + $0xc] sm:$0xf]
  %s103 = scalar_lea.vmem %s8, 64
  %v104 = vld [vmem:[%s103] sm:$0xf]
  %v105 = vld [vmem:[%s103 + $0x4] sm:$0xf]
  %v106 = vld [vmem:[%s103 + $0x8] sm:$0xf]
  %v107 = vld [vmem:[%s103 + $0xc] sm:$0xf]
  %s108 = scalar_lea.vmem %s8, 80
  %v109 = vld [vmem:[%s108] sm:$0xf]
  %v110 = vld [vmem:[%s108 + $0x4] sm:$0xf]
  %v111 = vld [vmem:[%s108 + $0x8] sm:$0xf]
  %v112 = vld [vmem:[%s108 + $0xc] sm:$0xf]
  %v113 = vld [vmem:[%s9] sm:$0x1]
  %s114 = scalar_lea.vmem %s9, 1
  %v115 = vld [vmem:[%s114] sm:$0x1]
  %s116 = scalar_lea.vmem %s9, 2
  %v117 = vld [vmem:[%s116] sm:$0x1]
  %s118 = scalar_lea.vmem %s9, 3
  %v119 = vld [vmem:[%s118] sm:$0x1]
  %s120 = scalar_lea.vmem %s9, 4
  %v121 = vld [vmem:[%s120] sm:$0x1]
  %s122 = scalar_lea.vmem %s9, 5
  %v123 = vld [vmem:[%s122] sm:$0x1]
  %v124 = vld [vmem:[%s10] sm:$0xf]
  %v125 = vld [vmem:[%s10 + $0x4] sm:$0xf]
  %v126 = vld [vmem:[%s10 + $0x8] sm:$0xf]
  %v127 = vld [vmem:[%s10 + $0xc] sm:$0xf]
  %v128 = vld [vmem:[%s11] sm:$0x1]
  %v129 = vld [vmem:[%s12] sm:$0xf]
  %v130 = vld [vmem:[%s12 + $0x4] sm:$0xf]
  %v131 = vld [vmem:[%s12 + $0x8] sm:$0xf]
  %v132 = vld [vmem:[%s12 + $0xc] sm:$0xf]
  %v133 = vld [vmem:[%s13] sm:$0x1]
  %v134 = vld [vmem:[%s14] sm:$0xf]
  %v135 = vld [vmem:[%s14 + $0x4] sm:$0xf]
  %v136 = vld [vmem:[%s14 + $0x8] sm:$0xf]
  %v137 = vld [vmem:[%s14 + $0xc] sm:$0xf]
  %v138 = vld [vmem:[%s15] sm:$0x1]
  %v139 = vld [vmem:[%s16] sm:$0xf]
  %v140 = vld [vmem:[%s16 + $0x4] sm:$0xf]
  %v141 = vld [vmem:[%s16 + $0x8] sm:$0xf]
  %v142 = vld [vmem:[%s16 + $0xc] sm:$0xf]
  %v143 = vld [vmem:[%s17] sm:$0x1]
  %v144 = vld [vmem:[%s18] sm:$0xf]
  %v145 = vld [vmem:[%s18 + $0x4] sm:$0xf]
  %v146 = vld [vmem:[%s18 + $0x8] sm:$0xf]
  %v147 = vld [vmem:[%s18 + $0xc] sm:$0xf]
  %v148 = vld [vmem:[%s19] sm:$0x1]
  %v149 = vld [vmem:[%s20] sm:$0xf]
  %v150 = vld [vmem:[%s20 + $0x4] sm:$0xf]
  %v151 = vld [vmem:[%s20 + $0x8] sm:$0xf]
  %v152 = vld [vmem:[%s20 + $0xc] sm:$0xf]
  %v153 = vld [vmem:[%s20 + $0x10] sm:$0xf]
  %v154 = vld [vmem:[%s20 + $0x14] sm:$0xf]
  %v155 = vld [vmem:[%s20 + $0x18] sm:$0xf]
  %v156 = vld [vmem:[%s20 + $0x1c] sm:$0xf]
  %v157 = vld [vmem:[%s20 + $0x20] sm:$0xf]
  %v158 = vld [vmem:[%s20 + $0x24] sm:$0xf]
  %v159 = vld [vmem:[%s20 + $0x28] sm:$0xf]
  %v160 = vld [vmem:[%s20 + $0x2c] sm:$0xf]
  %v161 = vld [vmem:[%s20 + $0x30] sm:$0xf]
  %v162 = vld [vmem:[%s20 + $0x34] sm:$0xf]
  %v163 = vld [vmem:[%s20 + $0x38] sm:$0xf]
  %v164 = vld [vmem:[%s20 + $0x3c] sm:$0xf]
  %v165 = vld [vmem:[%s21] sm:$0x1]
  %s166 = scalar_lea.vmem %s8, 96
  %v167 = vld [vmem:[%s166] sm:$0xf]
  %v168 = vld [vmem:[%s166 + $0x4] sm:$0xf]
  %v169 = vld [vmem:[%s166 + $0x8] sm:$0xf]
  %v170 = vld [vmem:[%s166 + $0xc] sm:$0xf]
  %s171 = scalar_lea.vmem %s8, 112
  %v172 = vld [vmem:[%s171] sm:$0xf]
  %v173 = vld [vmem:[%s171 + $0x4] sm:$0xf]
  %v174 = vld [vmem:[%s171 + $0x8] sm:$0xf]
  %v175 = vld [vmem:[%s171 + $0xc] sm:$0xf]
  %s176 = scalar_lea.vmem %s8, 128
  %v177 = vld [vmem:[%s176] sm:$0xf]
  %v178 = vld [vmem:[%s176 + $0x4] sm:$0xf]
  %v179 = vld [vmem:[%s176 + $0x8] sm:$0xf]
  %v180 = vld [vmem:[%s176 + $0xc] sm:$0xf]
  %s181 = scalar_lea.vmem %s8, 144
  %v182 = vld [vmem:[%s181] sm:$0xf]
  %v183 = vld [vmem:[%s181 + $0x4] sm:$0xf]
  %v184 = vld [vmem:[%s181 + $0x8] sm:$0xf]
  %v185 = vld [vmem:[%s181 + $0xc] sm:$0xf]
  %s186 = scalar_lea.vmem %s8, 160
  %v187 = vld [vmem:[%s186] sm:$0xf]
  %v188 = vld [vmem:[%s186 + $0x4] sm:$0xf]
  %v189 = vld [vmem:[%s186 + $0x8] sm:$0xf]
  %v190 = vld [vmem:[%s186 + $0xc] sm:$0xf]
  %s191 = scalar_lea.vmem %s8, 176
  %v192 = vld [vmem:[%s191] sm:$0xf]
  %v193 = vld [vmem:[%s191 + $0x4] sm:$0xf]
  %v194 = vld [vmem:[%s191 + $0x8] sm:$0xf]
  %v195 = vld [vmem:[%s191 + $0xc] sm:$0xf]
  %s196 = scalar_lea.vmem %s9, 6
  %v197 = vld [vmem:[%s196] sm:$0x1]
  %s198 = scalar_lea.vmem %s9, 7
  %v199 = vld [vmem:[%s198] sm:$0x1]
  %s200 = scalar_lea.vmem %s9, 8
  %v201 = vld [vmem:[%s200] sm:$0x1]
  %s202 = scalar_lea.vmem %s9, 9
  %v203 = vld [vmem:[%s202] sm:$0x1]
  %s204 = scalar_lea.vmem %s9, 10
  %v205 = vld [vmem:[%s204] sm:$0x1]
  %s206 = scalar_lea.vmem %s9, 11
  %v207 = vld [vmem:[%s206] sm:$0x1]
  %s208 = scalar_lea.vmem %s10, 16
  %v209 = vld [vmem:[%s208] sm:$0xf]
  %v210 = vld [vmem:[%s208 + $0x4] sm:$0xf]
  %v211 = vld [vmem:[%s208 + $0x8] sm:$0xf]
  %v212 = vld [vmem:[%s208 + $0xc] sm:$0xf]
  %s213 = scalar_lea.vmem %s11, 1
  %v214 = vld [vmem:[%s213] sm:$0x1]
  %s215 = scalar_lea.vmem %s12, 16
  %v216 = vld [vmem:[%s215] sm:$0xf]
  %v217 = vld [vmem:[%s215 + $0x4] sm:$0xf]
  %v218 = vld [vmem:[%s215 + $0x8] sm:$0xf]
  %v219 = vld [vmem:[%s215 + $0xc] sm:$0xf]
  %s220 = scalar_lea.vmem %s13, 1
  %v221 = vld [vmem:[%s220] sm:$0x1]
  %s222 = scalar_lea.vmem %s14, 16
  %v223 = vld [vmem:[%s222] sm:$0xf]
  %v224 = vld [vmem:[%s222 + $0x4] sm:$0xf]
  %v225 = vld [vmem:[%s222 + $0x8] sm:$0xf]
  %v226 = vld [vmem:[%s222 + $0xc] sm:$0xf]
  %s227 = scalar_lea.vmem %s15, 1
  %v228 = vld [vmem:[%s227] sm:$0x1]
  %s229 = scalar_lea.vmem %s16, 16
  %v230 = vld [vmem:[%s229] sm:$0xf]
  %v231 = vld [vmem:[%s229 + $0x4] sm:$0xf]
  %v232 = vld [vmem:[%s229 + $0x8] sm:$0xf]
  %v233 = vld [vmem:[%s229 + $0xc] sm:$0xf]
  %s234 = scalar_lea.vmem %s17, 1
  %v235 = vld [vmem:[%s234] sm:$0x1]
  %s236 = scalar_lea.vmem %s18, 16
  %v237 = vld [vmem:[%s236] sm:$0xf]
  %v238 = vld [vmem:[%s236 + $0x4] sm:$0xf]
  %v239 = vld [vmem:[%s236 + $0x8] sm:$0xf]
  %v240 = vld [vmem:[%s236 + $0xc] sm:$0xf]
  %s241 = scalar_lea.vmem %s19, 1
  %v242 = vld [vmem:[%s241] sm:$0x1]
  %s243 = scalar_lea.vmem %s20, 64
  %v244 = vld [vmem:[%s243] sm:$0xf]
  %v245 = vld [vmem:[%s243 + $0x4] sm:$0xf]
  %v246 = vld [vmem:[%s243 + $0x8] sm:$0xf]
  %v247 = vld [vmem:[%s243 + $0xc] sm:$0xf]
  %v248 = vld [vmem:[%s243 + $0x10] sm:$0xf]
  %v249 = vld [vmem:[%s243 + $0x14] sm:$0xf]
  %v250 = vld [vmem:[%s243 + $0x18] sm:$0xf]
  %v251 = vld [vmem:[%s243 + $0x1c] sm:$0xf]
  %v252 = vld [vmem:[%s243 + $0x20] sm:$0xf]
  %v253 = vld [vmem:[%s243 + $0x24] sm:$0xf]
  %v254 = vld [vmem:[%s243 + $0x28] sm:$0xf]
  %v255 = vld [vmem:[%s243 + $0x2c] sm:$0xf]
  %v256 = vld [vmem:[%s243 + $0x30] sm:$0xf]
  %v257 = vld [vmem:[%s243 + $0x34] sm:$0xf]
  %v258 = vld [vmem:[%s243 + $0x38] sm:$0xf]
  %v259 = vld [vmem:[%s243 + $0x3c] sm:$0xf]
  %s260 = scalar_lea.vmem %s21, 1
  %v261 = vld [vmem:[%s260] sm:$0x1]
  %v262 = vld [vmem:[%s0] sm:$0xff]
  %v263 = vld [vmem:[%s0 + $0x8] sm:$0xff]
  %v264 = vld [vmem:[%s0 + $0x10] sm:$0xff]
  %v265 = vld [vmem:[%s0 + $0x18] sm:$0xff]
  %v266 = vld [vmem:[%s1] sm:$0xf]
  %v267 = vld [vmem:[%s1 + $0x4] sm:$0xf]
  %v268 = vld [vmem:[%s1 + $0x8] sm:$0xf]
  %v269 = vld [vmem:[%s1 + $0xc] sm:$0xf]
  %v270 = vld [vmem:[%s2] sm:$0xff]
  %v271 = vld [vmem:[%s2 + $0x8] sm:$0xff]
  %v272 = vld [vmem:[%s2 + $0x10] sm:$0xff]
  %v273 = vld [vmem:[%s2 + $0x18] sm:$0xff]
  %v274 = vld [vmem:[%s3] sm:$0xff]
  %v275 = vld [vmem:[%s3 + $0x8] sm:$0xff]
  %v276 = vld [vmem:[%s3 + $0x10] sm:$0xff]
  %v277 = vld [vmem:[%s3 + $0x18] sm:$0xff]
  %v278 = vld [vmem:[%s4] sm:$0xf]
  %v279 = vld [vmem:[%s4 + $0x4] sm:$0xf]
  %v280 = vld [vmem:[%s4 + $0x8] sm:$0xf]
  %v281 = vld [vmem:[%s4 + $0xc] sm:$0xf]
  %v282 = vld [vmem:[%s4 + $0x10] sm:$0xf]
  %v283 = vld [vmem:[%s4 + $0x14] sm:$0xf]
  %v284 = vld [vmem:[%s4 + $0x18] sm:$0xf]
  %v285 = vld [vmem:[%s4 + $0x1c] sm:$0xf]
  %v286 = vld [vmem:[%s4 + $0x20] sm:$0xf]
  %v287 = vld [vmem:[%s4 + $0x24] sm:$0xf]
  %v288 = vld [vmem:[%s4 + $0x28] sm:$0xf]
  %v289 = vld [vmem:[%s4 + $0x2c] sm:$0xf]
  %v290 = vld [vmem:[%s4 + $0x30] sm:$0xf]
  %v291 = vld [vmem:[%s4 + $0x34] sm:$0xf]
  %v292 = vld [vmem:[%s4 + $0x38] sm:$0xf]
  %v293 = vld [vmem:[%s4 + $0x3c] sm:$0xf]
  %v294 = vld [vmem:[%s5] sm:$0xff]
  %v295 = vld [vmem:[%s5 + $0x8] sm:$0xff]
  %v296 = vld [vmem:[%s5 + $0x10] sm:$0xff]
  %v297 = vld [vmem:[%s5 + $0x18] sm:$0xff]
  %v298 = vld [vmem:[%s5 + $0x20] sm:$0xff]
  %v299 = vld [vmem:[%s5 + $0x28] sm:$0xff]
  %v300 = vld [vmem:[%s5 + $0x30] sm:$0xff]
  %v301 = vld [vmem:[%s5 + $0x38] sm:$0xff]
  %v302 = vld [vmem:[%s5 + $0x40] sm:$0xff]
  %v303 = vld [vmem:[%s5 + $0x48] sm:$0xff]
  %v304 = vld [vmem:[%s5 + $0x50] sm:$0xff]
  %v305 = vld [vmem:[%s5 + $0x58] sm:$0xff]
  %v306 = vld [vmem:[%s5 + $0x60] sm:$0xff]
  %v307 = vld [vmem:[%s5 + $0x68] sm:$0xff]
  %v308 = vld [vmem:[%s5 + $0x70] sm:$0xff]
  %v309 = vld [vmem:[%s5 + $0x78] sm:$0xff]
  %v310 = vld [vmem:[%s6] sm:$0xf]
  %v311 = vld [vmem:[%s6 + $0x4] sm:$0xf]
  %v312 = vld [vmem:[%s6 + $0x8] sm:$0xf]
  %v313 = vld [vmem:[%s6 + $0xc] sm:$0xf]
  %v314 = vld [vmem:[%s6 + $0x10] sm:$0xf]
  %v315 = vld [vmem:[%s6 + $0x14] sm:$0xf]
  %v316 = vld [vmem:[%s6 + $0x18] sm:$0xf]
  %v317 = vld [vmem:[%s6 + $0x1c] sm:$0xf]
  %v318 = vld [vmem:[%s6 + $0x20] sm:$0xf]
  %v319 = vld [vmem:[%s6 + $0x24] sm:$0xf]
  %v320 = vld [vmem:[%s6 + $0x28] sm:$0xf]
  %v321 = vld [vmem:[%s6 + $0x2c] sm:$0xf]
  %v322 = vld [vmem:[%s6 + $0x30] sm:$0xf]
  %v323 = vld [vmem:[%s6 + $0x34] sm:$0xf]
  %v324 = vld [vmem:[%s6 + $0x38] sm:$0xf]
  %v325 = vld [vmem:[%s6 + $0x3c] sm:$0xf]
  %v326 = vld [vmem:[%s7] sm:$0xf]
  %v327 = vld [vmem:[%s22] sm:$0xf]
  %v328 = vld [vmem:[%s22 + $0x4] sm:$0xf]
  %v329 = vld [vmem:[%s22 + $0x8] sm:$0xf]
  %v330 = vld [vmem:[%s22 + $0xc] sm:$0xf]
  %s331 = scalar_lea.vmem %s22, 16
  %v332 = vld [vmem:[%s331] sm:$0xf]
  %v333 = vld [vmem:[%s331 + $0x4] sm:$0xf]
  %v334 = vld [vmem:[%s331 + $0x8] sm:$0xf]
  %v335 = vld [vmem:[%s331 + $0xc] sm:$0xf]
  %v336 = vld [vmem:[%s23] sm:$0x1]
  %s337 = scalar_lea.vmem %s23, 1
  %v338 = vld [vmem:[%s337] sm:$0x1]
  %v339 = vld [vmem:[%s24] sm:$0xf]
  %v340 = vld [vmem:[%s24 + $0x4] sm:$0xf]
  %v341 = vld [vmem:[%s24 + $0x8] sm:$0xf]
  %v342 = vld [vmem:[%s24 + $0xc] sm:$0xf]
  %v343 = vld [vmem:[%s25] sm:$0x1]
  %v348 = vunpack.c.l.b16 %v266
  %v349 = vunpack.c.l.b16 %v267
  %v350 = vunpack.c.l.b16 %v268
  %v351 = vunpack.c.l.b16 %v269
  %v352 = vpack.c.b16 %v349, %v348
  %v353 = vpack.c.b16 %v351, %v350
  %vm354 = vcmask 64512
  %v356 = vsel %vm354, %v352, 0
  %v359 = vsel %vm354, %v353, 0
  %vm361 = vcmask 1043456
  %v363 = vsel %vm361, %v326, 0
  %365 = vmatprep.subr.bf16.mxu0 0
  %366 = vmatpush1.bf16.msra.mxu0 %v363
  %367 = vmatprep.subr.bf16.mxu0 0
  %368 = vmatpush1.bf16.msra.mxu0 0
  %369 = vmatprep.subr.bf16.mxu0 0
  %370 = vmatpush1.bf16.msra.mxu0 0
  %371 = vmatprep.subr.bf16.mxu0 0
  %372 = vmatpush1.bf16.msra.mxu0 0
  %373 = vmatprep.subr.bf16.mxu0 0
  %374 = vmatpush1.bf16.msra.mxu0 0
  %375 = vmatprep.subr.bf16.mxu0 0
  %376 = vmatpush1.bf16.msra.mxu0 0
  %377 = vmatprep.subr.bf16.mxu0 0
  %378 = vmatpush1.bf16.msra.mxu0 0
  %379 = vmatprep.subr.bf16.mxu0 0
  %380 = vmatpush1.bf16.msra.mxu0 0
  %381 = vmatprep.subr.bf16.mxu0 0
  %382 = vmatpush1.bf16.msra.mxu0 0
  %383 = vmatprep.subr.bf16.mxu0 0
  %384 = vmatpush1.bf16.msra.mxu0 0
  %385 = vmatprep.subr.bf16.mxu0 0
  %386 = vmatpush1.bf16.msra.mxu0 0
  %387 = vmatprep.subr.bf16.mxu0 0
  %388 = vmatpush1.bf16.msra.mxu0 0
  %389 = vmatprep.subr.bf16.mxu0 0
  %390 = vmatpush1.bf16.msra.mxu0 0
  %391 = vmatprep.subr.bf16.mxu0 0
  %392 = vmatpush1.bf16.msra.mxu0 0
  %393 = vmatprep.subr.bf16.mxu0 0
  %394 = vmatpush1.bf16.msra.mxu0 0
  %395 = vmatprep.subr.bf16.mxu0 0
  %396 = vmatpush1.bf16.msra.mxu0 0
  %397 = vmatprep.mubr.bf16.mxu0 0
  %398 = vmatmul.mubr.bf16.gmra.mrb[0].mxu0 %v356
  %v399 = vpop.f32.mrb[0].mxu0
  %v400 = vadd.f32 0.0, %v399
  %v401 = vpop.f32.mrb[0].mxu0
  %v402 = vpop.f32.mrb[0].mxu0
  %v403 = vadd.f32 0.0, %v402
  %v404 = vpop.f32.mrb[0].mxu0
  %405 = vmatprep.mubr.bf16.mxu0 0
  %406 = vmatmul.mubr.bf16.gmra.mrb[0].mxu0 %v359
  %v407 = vpop.f32.mrb[0].mxu0
  %v408 = vadd.f32 0.0, %v407
  %v409 = vpop.f32.mrb[0].mxu0
  %v410 = vpop.f32.mrb[0].mxu0
  %v411 = vadd.f32 0.0, %v410
  %v412 = vpop.f32.mrb[0].mxu0
  %413 = vdwg.mxu0
  %v414 = vadd.f32 %v262, %v400
  %v415 = vadd.f32 %v263, %v403
  %v416 = vadd.f32 %v264, %v408
  %v417 = vadd.f32 %v265, %v411
  %v418 = vxor.u32 %v270, 2147483648
  %v419 = vxor.u32 %v271, 2147483648
  %v420 = vxor.u32 %v272, 2147483648
  %v421 = vxor.u32 %v273, 2147483648
  %v422 = vmul.f32 %v418, 1.442695
  %v423 = vpow.pop %v422
  %v424 = vmul.f32 %v419, 1.442695
  %v425 = vpow.pop %v424
  %v426 = vmul.f32 %v420, 1.442695
  %v427 = vpow.pop %v426
  %v428 = vmul.f32 %v421, 1.442695
  %v429 = vpow.pop %v428
  %v430 = vadd.f32 %v423, 1.0
  %v431 = vadd.f32 %v425, 1.0
  %v432 = vadd.f32 %v427, 1.0
  %v433 = vadd.f32 %v429, 1.0
  %v434 = vrcp.pop %v430
  %v435 = vmul.f32 1.0, %v434
  %v436 = vrcp.pop %v431
  %v437 = vmul.f32 1.0, %v436
  %v438 = vrcp.pop %v432
  %v439 = vmul.f32 1.0, %v438
  %v440 = vrcp.pop %v433
  %v441 = vmul.f32 1.0, %v440
  %v442 = vmul.f32 %v270, %v435
  %v443 = vmul.f32 %v271, %v437
  %v444 = vmul.f32 %v272, %v439
  %v445 = vmul.f32 %v273, %v441
  %v446 = vpack.c.bf16 %v443, %v442
  %v447 = vpack.c.bf16 %v445, %v444
  %v449 = vlaneseq
  %v450 = vshrl.u32 %v449, 7
  %v451 = vsub.s32 0, %v450
  %v452 = vrot.slane %v113, %v451
  %v458 = vunpack.c.l.b16 %v84
  %v459 = vunpack.c.l.b16 %v85
  %v460 = vunpack.c.l.b16 %v86
  %v461 = vunpack.c.l.b16 %v87
  %v462 = vpack.c.b16 %v459, %v458
  %v463 = vpack.c.b16 %v461, %v460
  %vm466 = vcmask 261120
  %v468 = vsel %vm466, %v446, 0
  %v471 = vsel %vm466, %v447, 0
  %473 = vmatprep.subr.bf16.mxu0 0
  %474 = vmatpush1.bf16.msra.mxu0 %v462
  %475 = vmatprep.subr.bf16.mxu0 0
  %476 = vmatpush1.bf16.msra.mxu0 %v463
  %477 = vmatprep.subr.bf16.mxu0 0
  %478 = vmatpush1.bf16.msra.mxu0 0
  %479 = vmatprep.subr.bf16.mxu0 0
  %480 = vmatpush1.bf16.msra.mxu0 0
  %481 = vmatprep.subr.bf16.mxu0 0
  %482 = vmatpush1.bf16.msra.mxu0 0
  %483 = vmatprep.subr.bf16.mxu0 0
  %484 = vmatpush1.bf16.msra.mxu0 0
  %485 = vmatprep.subr.bf16.mxu0 0
  %486 = vmatpush1.bf16.msra.mxu0 0
  %487 = vmatprep.subr.bf16.mxu0 0
  %488 = vmatpush1.bf16.msra.mxu0 0
  %489 = vmatprep.subr.bf16.mxu0 0
  %490 = vmatpush1.bf16.msra.mxu0 0
  %491 = vmatprep.subr.bf16.mxu0 0
  %492 = vmatpush1.bf16.msra.mxu0 0
  %493 = vmatprep.subr.bf16.mxu0 0
  %494 = vmatpush1.bf16.msra.mxu0 0
  %495 = vmatprep.subr.bf16.mxu0 0
  %496 = vmatpush1.bf16.msra.mxu0 0
  %497 = vmatprep.subr.bf16.mxu0 0
  %498 = vmatpush1.bf16.msra.mxu0 0
  %499 = vmatprep.subr.bf16.mxu0 0
  %500 = vmatpush1.bf16.msra.mxu0 0
  %501 = vmatprep.subr.bf16.mxu0 0
  %502 = vmatpush1.bf16.msra.mxu0 0
  %503 = vmatprep.subr.bf16.mxu0 0
  %504 = vmatpush1.bf16.msra.mxu0 0
  %505 = vmatprep.mubr.bf16.mxu0 0
  %506 = vmatmul.mubr.bf16.gmra.mrb[0].mxu0 %v468
  %v507 = vpop.f32.mrb[0].mxu0
  %v508 = vadd.f32 %v452, %v507
  %v509 = vpop.f32.mrb[0].mxu0
  %v510 = vpop.f32.mrb[0].mxu0
  %v511 = vadd.f32 %v452, %v510
  %v512 = vpop.f32.mrb[0].mxu0
  %513 = vmatprep.mubr.bf16.mxu0 0
  %514 = vmatmul.mubr.bf16.gmra.mrb[0].mxu0 %v471
  %v515 = vpop.f32.mrb[0].mxu0
  %v516 = vadd.f32 %v452, %v515
  %v517 = vpop.f32.mrb[0].mxu0
  %v518 = vpop.f32.mrb[0].mxu0
  %v519 = vadd.f32 %v452, %v518
  %v520 = vpop.f32.mrb[0].mxu0
  %521 = vdwg.mxu0
  %v523 = vlaneseq
  %v524 = vshrl.u32 %v523, 7
  %v525 = vsub.s32 0, %v524
  %v526 = vrot.slane %v115, %v525
  %v532 = vunpack.c.l.b16 %v89
  %v533 = vunpack.c.l.b16 %v90
  %v534 = vunpack.c.l.b16 %v91
  %v535 = vunpack.c.l.b16 %v92
  %v536 = vpack.c.b16 %v533, %v532
  %v537 = vpack.c.b16 %v535, %v534
  %540 = vmatprep.subr.bf16.mxu0 0
  %541 = vmatpush1.bf16.msra.mxu0 %v536
  %542 = vmatprep.subr.bf16.mxu0 0
  %543 = vmatpush1.bf16.msra.mxu0 %v537
  %544 = vmatprep.subr.bf16.mxu0 0
  %545 = vmatpush1.bf16.msra.mxu0 0
  %546 = vmatprep.subr.bf16.mxu0 0
  %547 = vmatpush1.bf16.msra.mxu0 0
  %548 = vmatprep.subr.bf16.mxu0 0
  %549 = vmatpush1.bf16.msra.mxu0 0
  %550 = vmatprep.subr.bf16.mxu0 0
  %551 = vmatpush1.bf16.msra.mxu0 0
  %552 = vmatprep.subr.bf16.mxu0 0
  %553 = vmatpush1.bf16.msra.mxu0 0
  %554 = vmatprep.subr.bf16.mxu0 0
  %555 = vmatpush1.bf16.msra.mxu0 0
  %556 = vmatprep.subr.bf16.mxu0 0
  %557 = vmatpush1.bf16.msra.mxu0 0
  %558 = vmatprep.subr.bf16.mxu0 0
  %559 = vmatpush1.bf16.msra.mxu0 0
  %560 = vmatprep.subr.bf16.mxu0 0
  %561 = vmatpush1.bf16.msra.mxu0 0
  %562 = vmatprep.subr.bf16.mxu0 0
  %563 = vmatpush1.bf16.msra.mxu0 0
  %564 = vmatprep.subr.bf16.mxu0 0
  %565 = vmatpush1.bf16.msra.mxu0 0
  %566 = vmatprep.subr.bf16.mxu0 0
  %567 = vmatpush1.bf16.msra.mxu0 0
  %568 = vmatprep.subr.bf16.mxu0 0
  %569 = vmatpush1.bf16.msra.mxu0 0
  %570 = vmatprep.subr.bf16.mxu0 0
  %571 = vmatpush1.bf16.msra.mxu0 0
  %572 = vmatprep.mubr.bf16.mxu0 0
  %573 = vmatmul.mubr.bf16.gmra.mrb[0].mxu0 %v468
  %v574 = vpop.f32.mrb[0].mxu0
  %v575 = vadd.f32 %v526, %v574
  %v576 = vpop.f32.mrb[0].mxu0
  %v577 = vpop.f32.mrb[0].mxu0
  %v578 = vadd.f32 %v526, %v577
  %v579 = vpop.f32.mrb[0].mxu0
  %580 = vmatprep.mubr.bf16.mxu0 0
  %581 = vmatmul.mubr.bf16.gmra.mrb[0].mxu0 %v471
  %v582 = vpop.f32.mrb[0].mxu0
  %v583 = vadd.f32 %v526, %v582
  %v584 = vpop.f32.mrb[0].mxu0
  %v585 = vpop.f32.mrb[0].mxu0
  %v586 = vadd.f32 %v526, %v585
  %v587 = vpop.f32.mrb[0].mxu0
  %588 = vdwg.mxu0
  %v590 = vlaneseq
  %v591 = vshrl.u32 %v590, 7
  %v592 = vsub.s32 0, %v591
  %v593 = vrot.slane %v117, %v592
  %v599 = vunpack.c.l.b16 %v94
  %v600 = vunpack.c.l.b16 %v95
  %v601 = vunpack.c.l.b16 %v96
  %v602 = vunpack.c.l.b16 %v97
  %v603 = vpack.c.b16 %v600, %v599
  %v604 = vpack.c.b16 %v602, %v601
  %607 = vmatprep.subr.bf16.mxu0 0
  %608 = vmatpush1.bf16.msra.mxu0 %v603
  %609 = vmatprep.subr.bf16.mxu0 0
  %610 = vmatpush1.bf16.msra.mxu0 %v604
  %611 = vmatprep.subr.bf16.mxu0 0
  %612 = vmatpush1.bf16.msra.mxu0 0
  %613 = vmatprep.subr.bf16.mxu0 0
  %614 = vmatpush1.bf16.msra.mxu0 0
  %615 = vmatprep.subr.bf16.mxu0 0
  %616 = vmatpush1.bf16.msra.mxu0 0
  %617 = vmatprep.subr.bf16.mxu0 0
  %618 = vmatpush1.bf16.msra.mxu0 0
  %619 = vmatprep.subr.bf16.mxu0 0
  %620 = vmatpush1.bf16.msra.mxu0 0
  %621 = vmatprep.subr.bf16.mxu0 0
  %622 = vmatpush1.bf16.msra.mxu0 0
  %623 = vmatprep.subr.bf16.mxu0 0
  %624 = vmatpush1.bf16.msra.mxu0 0
  %625 = vmatprep.subr.bf16.mxu0 0
  %626 = vmatpush1.bf16.msra.mxu0 0
  %627 = vmatprep.subr.bf16.mxu0 0
  %628 = vmatpush1.bf16.msra.mxu0 0
  %629 = vmatprep.subr.bf16.mxu0 0
  %630 = vmatpush1.bf16.msra.mxu0 0
  %631 = vmatprep.subr.bf16.mxu0 0
  %632 = vmatpush1.bf16.msra.mxu0 0
  %633 = vmatprep.subr.bf16.mxu0 0
  %634 = vmatpush1.bf16.msra.mxu0 0
  %635 = vmatprep.subr.bf16.mxu0 0
  %636 = vmatpush1.bf16.msra.mxu0 0
  %637 = vmatprep.subr.bf16.mxu0 0
  %638 = vmatpush1.bf16.msra.mxu0 0
  %639 = vmatprep.mubr.bf16.mxu0 0
  %640 = vmatmul.mubr.bf16.gmra.mrb[0].mxu0 %v468
  %v641 = vpop.f32.mrb[0].mxu0
  %v642 = vadd.f32 %v593, %v641
  %v643 = vpop.f32.mrb[0].mxu0
  %v644 = vpop.f32.mrb[0].mxu0
  %v645 = vadd.f32 %v593, %v644
  %v646 = vpop.f32.mrb[0].mxu0
  %647 = vmatprep.mubr.bf16.mxu0 0
  %648 = vmatmul.mubr.bf16.gmra.mrb[0].mxu0 %v471
  %v649 = vpop.f32.mrb[0].mxu0
  %v650 = vadd.f32 %v593, %v649
  %v651 = vpop.f32.mrb[0].mxu0
  %v652 = vpop.f32.mrb[0].mxu0
  %v653 = vadd.f32 %v593, %v652
  %v654 = vpop.f32.mrb[0].mxu0
  %655 = vdwg.mxu0
  %v657 = vlaneseq
  %v658 = vshrl.u32 %v657, 7
  %v659 = vsub.s32 0, %v658
  %v660 = vrot.slane %v119, %v659
  %v666 = vunpack.c.l.b16 %v99
  %v667 = vunpack.c.l.b16 %v100
  %v668 = vunpack.c.l.b16 %v101
  %v669 = vunpack.c.l.b16 %v102
  %v670 = vpack.c.b16 %v667, %v666
  %v671 = vpack.c.b16 %v669, %v668
  %674 = vmatprep.subr.bf16.mxu0 0
  %675 = vmatpush1.bf16.msra.mxu0 %v670
  %676 = vmatprep.subr.bf16.mxu0 0
  %677 = vmatpush1.bf16.msra.mxu0 %v671
  %678 = vmatprep.subr.bf16.mxu0 0
  %679 = vmatpush1.bf16.msra.mxu0 0
  %680 = vmatprep.subr.bf16.mxu0 0
  %681 = vmatpush1.bf16.msra.mxu0 0
  %682 = vmatprep.subr.bf16.mxu0 0
  %683 = vmatpush1.bf16.msra.mxu0 0
  %684 = vmatprep.subr.bf16.mxu0 0
  %685 = vmatpush1.bf16.msra.mxu0 0
  %686 = vmatprep.subr.bf16.mxu0 0
  %687 = vmatpush1.bf16.msra.mxu0 0
  %688 = vmatprep.subr.bf16.mxu0 0
  %689 = vmatpush1.bf16.msra.mxu0 0
  %690 = vmatprep.subr.bf16.mxu0 0
  %691 = vmatpush1.bf16.msra.mxu0 0
  %692 = vmatprep.subr.bf16.mxu0 0
  %693 = vmatpush1.bf16.msra.mxu0 0
  %694 = vmatprep.subr.bf16.mxu0 0
  %695 = vmatpush1.bf16.msra.mxu0 0
  %696 = vmatprep.subr.bf16.mxu0 0
  %697 = vmatpush1.bf16.msra.mxu0 0
  %698 = vmatprep.subr.bf16.mxu0 0
  %699 = vmatpush1.bf16.msra.mxu0 0
  %700 = vmatprep.subr.bf16.mxu0 0
  %701 = vmatpush1.bf16.msra.mxu0 0
  %702 = vmatprep.subr.bf16.mxu0 0
  %703 = vmatpush1.bf16.msra.mxu0 0
  %704 = vmatprep.subr.bf16.mxu0 0
  %705 = vmatpush1.bf16.msra.mxu0 0
  %706 = vmatprep.mubr.bf16.mxu0 0
  %707 = vmatmul.mubr.bf16.gmra.mrb[0].mxu0 %v468
  %v708 = vpop.f32.mrb[0].mxu0
  %v709 = vadd.f32 %v660, %v708
  %v710 = vpop.f32.mrb[0].mxu0
  %v711 = vpop.f32.mrb[0].mxu0
  %v712 = vadd.f32 %v660, %v711
  %v713 = vpop.f32.mrb[0].mxu0
  %714 = vmatprep.mubr.bf16.mxu0 0
  %715 = vmatmul.mubr.bf16.gmra.mrb[0].mxu0 %v471
  %v716 = vpop.f32.mrb[0].mxu0
  %v717 = vadd.f32 %v660, %v716
  %v718 = vpop.f32.mrb[0].mxu0
  %v719 = vpop.f32.mrb[0].mxu0
  %v720 = vadd.f32 %v660, %v719
  %v721 = vpop.f32.mrb[0].mxu0
  %722 = vdwg.mxu0
  %v724 = vlaneseq
  %v725 = vshrl.u32 %v724, 7
  %v726 = vsub.s32 0, %v725
  %v727 = vrot.slane %v121, %v726
  %v733 = vunpack.c.l.b16 %v104
  %v734 = vunpack.c.l.b16 %v105
  %v735 = vunpack.c.l.b16 %v106
  %v736 = vunpack.c.l.b16 %v107
  %v737 = vpack.c.b16 %v734, %v733
  %v738 = vpack.c.b16 %v736, %v735
  %741 = vmatprep.subr.bf16.mxu0 0
  %742 = vmatpush1.bf16.msra.mxu0 %v737
  %743 = vmatprep.subr.bf16.mxu0 0
  %744 = vmatpush1.bf16.msra.mxu0 %v738
  %745 = vmatprep.subr.bf16.mxu0 0
  %746 = vmatpush1.bf16.msra.mxu0 0
  %747 = vmatprep.subr.bf16.mxu0 0
  %748 = vmatpush1.bf16.msra.mxu0 0
  %749 = vmatprep.subr.bf16.mxu0 0
  %750 = vmatpush1.bf16.msra.mxu0 0
  %751 = vmatprep.subr.bf16.mxu0 0
  %752 = vmatpush1.bf16.msra.mxu0 0
  %753 = vmatprep.subr.bf16.mxu0 0
  %754 = vmatpush1.bf16.msra.mxu0 0
  %755 = vmatprep.subr.bf16.mxu0 0
  %756 = vmatpush1.bf16.msra.mxu0 0
  %757 = vmatprep.subr.bf16.mxu0 0
  %758 = vmatpush1.bf16.msra.mxu0 0
  %759 = vmatprep.subr.bf16.mxu0 0
  %760 = vmatpush1.bf16.msra.mxu0 0
  %761 = vmatprep.subr.bf16.mxu0 0
  %762 = vmatpush1.bf16.msra.mxu0 0
  %763 = vmatprep.subr.bf16.mxu0 0
  %764 = vmatpush1.bf16.msra.mxu0 0
  %765 = vmatprep.subr.bf16.mxu0 0
  %766 = vmatpush1.bf16.msra.mxu0 0
  %767 = vmatprep.subr.bf16.mxu0 0
  %768 = vmatpush1.bf16.msra.mxu0 0
  %769 = vmatprep.subr.bf16.mxu0 0
  %770 = vmatpush1.bf16.msra.mxu0 0
  %771 = vmatprep.subr.bf16.mxu0 0
  %772 = vmatpush1.bf16.msra.mxu0 0
  %773 = vmatprep.mubr.bf16.mxu0 0
  %774 = vmatmul.mubr.bf16.gmra.mrb[0].mxu0 %v468
  %v775 = vpop.f32.mrb[0].mxu0
  %v776 = vadd.f32 %v727, %v775
  %v777 = vpop.f32.mrb[0].mxu0
  %v778 = vpop.f32.mrb[0].mxu0
  %v779 = vadd.f32 %v727, %v778
  %v780 = vpop.f32.mrb[0].mxu0
  %781 = vmatprep.mubr.bf16.mxu0 0
  %782 = vmatmul.mubr.bf16.gmra.mrb[0].mxu0 %v471
  %v783 = vpop.f32.mrb[0].mxu0
  %v784 = vadd.f32 %v727, %v783
  %v785 = vpop.f32.mrb[0].mxu0
  %v786 = vpop.f32.mrb[0].mxu0
  %v787 = vadd.f32 %v727, %v786
  %v788 = vpop.f32.mrb[0].mxu0
  %789 = vdwg.mxu0
  %v791 = vlaneseq
  %v792 = vshrl.u32 %v791, 7
  %v793 = vsub.s32 0, %v792
  %v794 = vrot.slane %v123, %v793
  %v800 = vunpack.c.l.b16 %v109
  %v801 = vunpack.c.l.b16 %v110
  %v802 = vunpack.c.l.b16 %v111
  %v803 = vunpack.c.l.b16 %v112
  %v804 = vpack.c.b16 %v801, %v800
  %v805 = vpack.c.b16 %v803, %v802
  %808 = vmatprep.subr.bf16.mxu0 0
  %809 = vmatpush1.bf16.msra.mxu0 %v804
  %810 = vmatprep.subr.bf16.mxu0 0
  %811 = vmatpush1.bf16.msra.mxu0 %v805
  %812 = vmatprep.subr.bf16.mxu0 0
  %813 = vmatpush1.bf16.msra.mxu0 0
  %814 = vmatprep.subr.bf16.mxu0 0
  %815 = vmatpush1.bf16.msra.mxu0 0
  %816 = vmatprep.subr.bf16.mxu0 0
  %817 = vmatpush1.bf16.msra.mxu0 0
  %818 = vmatprep.subr.bf16.mxu0 0
  %819 = vmatpush1.bf16.msra.mxu0 0
  %820 = vmatprep.subr.bf16.mxu0 0
  %821 = vmatpush1.bf16.msra.mxu0 0
  %822 = vmatprep.subr.bf16.mxu0 0
  %823 = vmatpush1.bf16.msra.mxu0 0
  %824 = vmatprep.subr.bf16.mxu0 0
  %825 = vmatpush1.bf16.msra.mxu0 0
  %826 = vmatprep.subr.bf16.mxu0 0
  %827 = vmatpush1.bf16.msra.mxu0 0
  %828 = vmatprep.subr.bf16.mxu0 0
  %829 = vmatpush1.bf16.msra.mxu0 0
  %830 = vmatprep.subr.bf16.mxu0 0
  %831 = vmatpush1.bf16.msra.mxu0 0
  %832 = vmatprep.subr.bf16.mxu0 0
  %833 = vmatpush1.bf16.msra.mxu0 0
  %834 = vmatprep.subr.bf16.mxu0 0
  %835 = vmatpush1.bf16.msra.mxu0 0
  %836 = vmatprep.subr.bf16.mxu0 0
  %837 = vmatpush1.bf16.msra.mxu0 0
  %838 = vmatprep.subr.bf16.mxu0 0
  %839 = vmatpush1.bf16.msra.mxu0 0
  %840 = vmatprep.mubr.bf16.mxu0 0
  %841 = vmatmul.mubr.bf16.gmra.mrb[0].mxu0 %v468
  %v842 = vpop.f32.mrb[0].mxu0
  %v843 = vadd.f32 %v794, %v842
  %v844 = vpop.f32.mrb[0].mxu0
  %v845 = vpop.f32.mrb[0].mxu0
  %v846 = vadd.f32 %v794, %v845
  %v847 = vpop.f32.mrb[0].mxu0
  %848 = vmatprep.mubr.bf16.mxu0 0
  %849 = vmatmul.mubr.bf16.gmra.mrb[0].mxu0 %v471
  %v850 = vpop.f32.mrb[0].mxu0
  %v851 = vadd.f32 %v794, %v850
  %v852 = vpop.f32.mrb[0].mxu0
  %v853 = vpop.f32.mrb[0].mxu0
  %v854 = vadd.f32 %v794, %v853
  %v855 = vpop.f32.mrb[0].mxu0
  %856 = vdwg.mxu0
  %v857 = vsel %vm466, %v414, 0.0
  %858 = vadd.xlane.f32.xlu0 %v857
  %v859 = vpop.xlane.xlu0 %858
  %v860 = vsel %vm466, %v415, 0.0
  %861 = vadd.xlane.f32.xlu0 %v860
  %v862 = vpop.xlane.xlu0 %861
  %v863 = vsel %vm466, %v416, 0.0
  %864 = vadd.xlane.f32.xlu0 %v863
  %v865 = vpop.xlane.xlu0 %864
  %v866 = vsel %vm466, %v417, 0.0
  %867 = vadd.xlane.f32.xlu0 %v866
  %v868 = vpop.xlane.xlu0 %867
  %v869 = vrcp.pop 32.0
  %v870 = vmul.f32 %v859, %v869
  %v871 = vmul.f32 %v862, %v869
  %v872 = vmul.f32 %v865, %v869
  %v873 = vmul.f32 %v868, %v869
  %v874 = vsub.f32 %v414, %v870
  %v875 = vsub.f32 %v415, %v871
  %v876 = vsub.f32 %v416, %v872
  %v877 = vsub.f32 %v417, %v873
  %v878 = vmul.f32 %v874, %v874
  %v879 = vmul.f32 %v875, %v875
  %v880 = vmul.f32 %v876, %v876
  %v881 = vmul.f32 %v877, %v877
  %v882 = vsel %vm466, %v878, 0.0
  %883 = vadd.xlane.f32.xlu0 %v882
  %v884 = vpop.xlane.xlu0 %883
  %v885 = vsel %vm466, %v879, 0.0
  %886 = vadd.xlane.f32.xlu0 %v885
  %v887 = vpop.xlane.xlu0 %886
  %v888 = vsel %vm466, %v880, 0.0
  %889 = vadd.xlane.f32.xlu0 %v888
  %v890 = vpop.xlane.xlu0 %889
  %v891 = vsel %vm466, %v881, 0.0
  %892 = vadd.xlane.f32.xlu0 %v891
  %v893 = vpop.xlane.xlu0 %892
  %v894 = vmul.f32 %v884, %v869
  %v895 = vmul.f32 %v887, %v869
  %v896 = vmul.f32 %v890, %v869
  %v897 = vmul.f32 %v893, %v869
  %v898 = vadd.f32 %v894, 1e-06
  %v899 = vadd.f32 %v895, 1e-06
  %v900 = vadd.f32 %v896, 1e-06
  %v901 = vadd.f32 %v897, 1e-06
  %v902 = vrsqrt.pop %v898
  %v903 = vrsqrt.pop %v899
  %v904 = vrsqrt.pop %v900
  %v905 = vrsqrt.pop %v901
  %v906 = vmul.f32 %v874, %v902
  %v907 = vmul.f32 %v875, %v903
  %v908 = vmul.f32 %v876, %v904
  %v909 = vmul.f32 %v877, %v905
  %v910 = vadd.f32 %v642, 1.0
  %v911 = vadd.f32 %v645, 1.0
  %v912 = vadd.f32 %v650, 1.0
  %v913 = vadd.f32 %v653, 1.0
  %v914 = vmul.f32 %v906, %v910
  %v915 = vmul.f32 %v907, %v911
  %v916 = vmul.f32 %v908, %v912
  %v917 = vmul.f32 %v909, %v913
  %v918 = vadd.f32 %v914, %v776
  %v919 = vadd.f32 %v915, %v779
  %v920 = vadd.f32 %v916, %v784
  %v921 = vadd.f32 %v917, %v787
  %v922 = vpack.c.bf16 %v919, %v918
  %v923 = vpack.c.bf16 %v921, %v920
  %v925 = vlaneseq
  %v926 = vshrl.u32 %v925, 7
  %v927 = vsub.s32 0, %v926
  %v928 = vrot.slane %v128, %v927
  %v934 = vunpack.c.l.b16 %v124
  %v935 = vunpack.c.l.b16 %v125
  %v936 = vunpack.c.l.b16 %v126
  %v937 = vunpack.c.l.b16 %v127
  %v938 = vpack.c.b16 %v935, %v934
  %v939 = vpack.c.b16 %v937, %v936
  %v943 = vsel %vm466, %v922, 0
  %v946 = vsel %vm466, %v923, 0
  %948 = vmatprep.subr.bf16.mxu0 0
  %949 = vmatpush1.bf16.msra.mxu0 %v938
  %950 = vmatprep.subr.bf16.mxu0 0
  %951 = vmatpush1.bf16.msra.mxu0 %v939
  %952 = vmatprep.subr.bf16.mxu0 0
  %953 = vmatpush1.bf16.msra.mxu0 0
  %954 = vmatprep.subr.bf16.mxu0 0
  %955 = vmatpush1.bf16.msra.mxu0 0
  %956 = vmatprep.subr.bf16.mxu0 0
  %957 = vmatpush1.bf16.msra.mxu0 0
  %958 = vmatprep.subr.bf16.mxu0 0
  %959 = vmatpush1.bf16.msra.mxu0 0
  %960 = vmatprep.subr.bf16.mxu0 0
  %961 = vmatpush1.bf16.msra.mxu0 0
  %962 = vmatprep.subr.bf16.mxu0 0
  %963 = vmatpush1.bf16.msra.mxu0 0
  %964 = vmatprep.subr.bf16.mxu0 0
  %965 = vmatpush1.bf16.msra.mxu0 0
  %966 = vmatprep.subr.bf16.mxu0 0
  %967 = vmatpush1.bf16.msra.mxu0 0
  %968 = vmatprep.subr.bf16.mxu0 0
  %969 = vmatpush1.bf16.msra.mxu0 0
  %970 = vmatprep.subr.bf16.mxu0 0
  %971 = vmatpush1.bf16.msra.mxu0 0
  %972 = vmatprep.subr.bf16.mxu0 0
  %973 = vmatpush1.bf16.msra.mxu0 0
  %974 = vmatprep.subr.bf16.mxu0 0
  %975 = vmatpush1.bf16.msra.mxu0 0
  %976 = vmatprep.subr.bf16.mxu0 0
  %977 = vmatpush1.bf16.msra.mxu0 0
  %978 = vmatprep.subr.bf16.mxu0 0
  %979 = vmatpush1.bf16.msra.mxu0 0
  %980 = vmatprep.mubr.bf16.mxu0 0
  %981 = vmatmul.mubr.bf16.gmra.mrb[0].mxu0 %v943
  %v982 = vpop.f32.mrb[0].mxu0
  %v983 = vadd.f32 %v928, %v982
  %v984 = vpop.f32.mrb[0].mxu0
  %v985 = vpop.f32.mrb[0].mxu0
  %v986 = vadd.f32 %v928, %v985
  %v987 = vpop.f32.mrb[0].mxu0
  %988 = vmatprep.mubr.bf16.mxu0 0
  %989 = vmatmul.mubr.bf16.gmra.mrb[0].mxu0 %v946
  %v990 = vpop.f32.mrb[0].mxu0
  %v991 = vadd.f32 %v928, %v990
  %v992 = vpop.f32.mrb[0].mxu0
  %v993 = vpop.f32.mrb[0].mxu0
  %v994 = vadd.f32 %v928, %v993
  %v995 = vpop.f32.mrb[0].mxu0
  %996 = vdwg.mxu0
  %v997 = vmul.f32 %v983, 0.088388346
  %v998 = vmul.f32 %v986, 0.088388346
  %v999 = vmul.f32 %v991, 0.088388346
  %v1000 = vmul.f32 %v994, 0.088388346
  %v1002 = vlaneseq
  %v1003 = vshrl.u32 %v1002, 7
  %v1004 = vsub.s32 0, %v1003
  %v1005 = vrot.slane %v133, %v1004
  %v1011 = vunpack.c.l.b16 %v129
  %v1012 = vunpack.c.l.b16 %v130
  %v1013 = vunpack.c.l.b16 %v131
  %v1014 = vunpack.c.l.b16 %v132
  %v1015 = vpack.c.b16 %v1012, %v1011
  %v1016 = vpack.c.b16 %v1014, %v1013
  %1019 = vmatprep.subr.bf16.mxu0 0
  %1020 = vmatpush1.bf16.msra.mxu0 %v1015
  %1021 = vmatprep.subr.bf16.mxu0 0
  %1022 = vmatpush1.bf16.msra.mxu0 %v1016
  %1023 = vmatprep.subr.bf16.mxu0 0
  %1024 = vmatpush1.bf16.msra.mxu0 0
  %1025 = vmatprep.subr.bf16.mxu0 0
  %1026 = vmatpush1.bf16.msra.mxu0 0
  %1027 = vmatprep.subr.bf16.mxu0 0
  %1028 = vmatpush1.bf16.msra.mxu0 0
  %1029 = vmatprep.subr.bf16.mxu0 0
  %1030 = vmatpush1.bf16.msra.mxu0 0
  %1031 = vmatprep.subr.bf16.mxu0 0
  %1032 = vmatpush1.bf16.msra.mxu0 0
  %1033 = vmatprep.subr.bf16.mxu0 0
  %1034 = vmatpush1.bf16.msra.mxu0 0
  %1035 = vmatprep.subr.bf16.mxu0 0
  %1036 = vmatpush1.bf16.msra.mxu0 0
  %1037 = vmatprep.subr.bf16.mxu0 0
  %1038 = vmatpush1.bf16.msra.mxu0 0
  %1039 = vmatprep.subr.bf16.mxu0 0
  %1040 = vmatpush1.bf16.msra.mxu0 0
  %1041 = vmatprep.subr.bf16.mxu0 0
  %1042 = vmatpush1.bf16.msra.mxu0 0
  %1043 = vmatprep.subr.bf16.mxu0 0
  %1044 = vmatpush1.bf16.msra.mxu0 0
  %1045 = vmatprep.subr.bf16.mxu0 0
  %1046 = vmatpush1.bf16.msra.mxu0 0
  %1047 = vmatprep.subr.bf16.mxu0 0
  %1048 = vmatpush1.bf16.msra.mxu0 0
  %1049 = vmatprep.subr.bf16.mxu0 0
  %1050 = vmatpush1.bf16.msra.mxu0 0
  %1051 = vmatprep.mubr.bf16.mxu0 0
  %1052 = vmatmul.mubr.bf16.gmra.mrb[0].mxu0 %v943
  %v1053 = vpop.f32.mrb[0].mxu0
  %v1054 = vadd.f32 %v1005, %v1053
  %v1055 = vpop.f32.mrb[0].mxu0
  %v1056 = vpop.f32.mrb[0].mxu0
  %v1057 = vadd.f32 %v1005, %v1056
  %v1058 = vpop.f32.mrb[0].mxu0
  %1059 = vmatprep.mubr.bf16.mxu0 0
  %1060 = vmatmul.mubr.bf16.gmra.mrb[0].mxu0 %v946
  %v1061 = vpop.f32.mrb[0].mxu0
  %v1062 = vadd.f32 %v1005, %v1061
  %v1063 = vpop.f32.mrb[0].mxu0
  %v1064 = vpop.f32.mrb[0].mxu0
  %v1065 = vadd.f32 %v1005, %v1064
  %v1066 = vpop.f32.mrb[0].mxu0
  %1067 = vdwg.mxu0
  %v1069 = vlaneseq
  %v1070 = vshrl.u32 %v1069, 7
  %v1071 = vsub.s32 0, %v1070
  %v1072 = vrot.slane %v138, %v1071
  %v1078 = vunpack.c.l.b16 %v134
  %v1079 = vunpack.c.l.b16 %v135
  %v1080 = vunpack.c.l.b16 %v136
  %v1081 = vunpack.c.l.b16 %v137
  %v1082 = vpack.c.b16 %v1079, %v1078
  %v1083 = vpack.c.b16 %v1081, %v1080
  %1086 = vmatprep.subr.bf16.mxu0 0
  %1087 = vmatpush1.bf16.msra.mxu0 %v1082
  %1088 = vmatprep.subr.bf16.mxu0 0
  %1089 = vmatpush1.bf16.msra.mxu0 %v1083
  %1090 = vmatprep.subr.bf16.mxu0 0
  %1091 = vmatpush1.bf16.msra.mxu0 0
  %1092 = vmatprep.subr.bf16.mxu0 0
  %1093 = vmatpush1.bf16.msra.mxu0 0
  %1094 = vmatprep.subr.bf16.mxu0 0
  %1095 = vmatpush1.bf16.msra.mxu0 0
  %1096 = vmatprep.subr.bf16.mxu0 0
  %1097 = vmatpush1.bf16.msra.mxu0 0
  %1098 = vmatprep.subr.bf16.mxu0 0
  %1099 = vmatpush1.bf16.msra.mxu0 0
  %1100 = vmatprep.subr.bf16.mxu0 0
  %1101 = vmatpush1.bf16.msra.mxu0 0
  %1102 = vmatprep.subr.bf16.mxu0 0
  %1103 = vmatpush1.bf16.msra.mxu0 0
  %1104 = vmatprep.subr.bf16.mxu0 0
  %1105 = vmatpush1.bf16.msra.mxu0 0
  %1106 = vmatprep.subr.bf16.mxu0 0
  %1107 = vmatpush1.bf16.msra.mxu0 0
  %1108 = vmatprep.subr.bf16.mxu0 0
  %1109 = vmatpush1.bf16.msra.mxu0 0
  %1110 = vmatprep.subr.bf16.mxu0 0
  %1111 = vmatpush1.bf16.msra.mxu0 0
  %1112 = vmatprep.subr.bf16.mxu0 0
  %1113 = vmatpush1.bf16.msra.mxu0 0
  %1114 = vmatprep.subr.bf16.mxu0 0
  %1115 = vmatpush1.bf16.msra.mxu0 0
  %1116 = vmatprep.subr.bf16.mxu0 0
  %1117 = vmatpush1.bf16.msra.mxu0 0
  %1118 = vmatprep.mubr.bf16.mxu0 0
  %1119 = vmatmul.mubr.bf16.gmra.mrb[0].mxu0 %v943
  %v1120 = vpop.f32.mrb[0].mxu0
  %v1121 = vadd.f32 %v1072, %v1120
  %v1122 = vpop.f32.mrb[0].mxu0
  %v1123 = vpop.f32.mrb[0].mxu0
  %v1124 = vadd.f32 %v1072, %v1123
  %v1125 = vpop.f32.mrb[0].mxu0
  %1126 = vmatprep.mubr.bf16.mxu0 0
  %1127 = vmatmul.mubr.bf16.gmra.mrb[0].mxu0 %v946
  %v1128 = vpop.f32.mrb[0].mxu0
  %v1129 = vadd.f32 %v1072, %v1128
  %v1130 = vpop.f32.mrb[0].mxu0
  %v1131 = vpop.f32.mrb[0].mxu0
  %v1132 = vadd.f32 %v1072, %v1131
  %v1133 = vpop.f32.mrb[0].mxu0
  %1134 = vdwg.mxu0
  %v1135 = vpack.c.bf16 %v1057, %v1054
  %v1136 = vpack.c.bf16 %v1065, %v1062
  %v1153 = vunpack.c.l.b16 %v278
  %v1154 = vunpack.c.l.b16 %v279
  %v1155 = vunpack.c.l.b16 %v280
  %v1156 = vunpack.c.l.b16 %v281
  %v1157 = vunpack.c.l.b16 %v282
  %v1158 = vunpack.c.l.b16 %v283
  %v1159 = vunpack.c.l.b16 %v284
  %v1160 = vunpack.c.l.b16 %v285
  %v1161 = vunpack.c.l.b16 %v286
  %v1162 = vunpack.c.l.b16 %v287
  %v1163 = vunpack.c.l.b16 %v288
  %v1164 = vunpack.c.l.b16 %v289
  %v1165 = vunpack.c.l.b16 %v290
  %v1166 = vunpack.c.l.b16 %v291
  %v1167 = vunpack.c.l.b16 %v292
  %v1168 = vunpack.c.l.b16 %v293
  %v1169 = vpack.c.b16 %v1154, %v1153
  %v1170 = vpack.c.b16 %v1156, %v1155
  %v1171 = vpack.c.b16 %v1158, %v1157
  %v1172 = vpack.c.b16 %v1160, %v1159
  %v1173 = vpack.c.b16 %v1162, %v1161
  %v1174 = vpack.c.b16 %v1164, %v1163
  %v1175 = vpack.c.b16 %v1166, %v1165
  %v1176 = vpack.c.b16 %v1168, %v1167
  %v1178 = vsel %vm466, %v1169, 0
  %v1181 = vsel %vm466, %v1170, 0
  %v1184 = vsel %vm466, %v1171, 0
  %v1187 = vsel %vm466, %v1172, 0
  %v1190 = vsel %vm466, %v1173, 0
  %v1193 = vsel %vm466, %v1174, 0
  %v1196 = vsel %vm466, %v1175, 0
  %v1199 = vsel %vm466, %v1176, 0
  %1201 = vmatprep.subr.bf16.mxu0 0
  %1202 = vmatpush1.bf16.msra.mxu0 %v1135
  %1203 = vmatprep.subr.bf16.mxu0 0
  %1204 = vmatpush1.bf16.msra.mxu0 %v1136
  %1205 = vmatprep.subr.bf16.mxu0 0
  %1206 = vmatpush1.bf16.msra.mxu0 0
  %1207 = vmatprep.subr.bf16.mxu0 0
  %1208 = vmatpush1.bf16.msra.mxu0 0
  %1209 = vmatprep.subr.bf16.mxu0 0
  %1210 = vmatpush1.bf16.msra.mxu0 0
  %1211 = vmatprep.subr.bf16.mxu0 0
  %1212 = vmatpush1.bf16.msra.mxu0 0
  %1213 = vmatprep.subr.bf16.mxu0 0
  %1214 = vmatpush1.bf16.msra.mxu0 0
  %1215 = vmatprep.subr.bf16.mxu0 0
  %1216 = vmatpush1.bf16.msra.mxu0 0
  %1217 = vmatprep.subr.bf16.mxu0 0
  %1218 = vmatpush1.bf16.msra.mxu0 0
  %1219 = vmatprep.subr.bf16.mxu0 0
  %1220 = vmatpush1.bf16.msra.mxu0 0
  %1221 = vmatprep.subr.bf16.mxu0 0
  %1222 = vmatpush1.bf16.msra.mxu0 0
  %1223 = vmatprep.subr.bf16.mxu0 0
  %1224 = vmatpush1.bf16.msra.mxu0 0
  %1225 = vmatprep.subr.bf16.mxu0 0
  %1226 = vmatpush1.bf16.msra.mxu0 0
  %1227 = vmatprep.subr.bf16.mxu0 0
  %1228 = vmatpush1.bf16.msra.mxu0 0
  %1229 = vmatprep.subr.bf16.mxu0 0
  %1230 = vmatpush1.bf16.msra.mxu0 0
  %1231 = vmatprep.subr.bf16.mxu0 0
  %1232 = vmatpush1.bf16.msra.mxu0 0
  %1233 = vmatprep.mubr.bf16.mxu0 0
  %1234 = vmatmul.mubr.bf16.gmra.mrb[0].mxu0 %v1178
  %v1235 = vpop.f32.mrb[0].mxu0
  %v1236 = vadd.f32 0.0, %v1235
  %v1237 = vpop.f32.mrb[0].mxu0
  %v1238 = vpop.f32.mrb[0].mxu0
  %v1239 = vadd.f32 0.0, %v1238
  %v1240 = vpop.f32.mrb[0].mxu0
  %1241 = vmatprep.mubr.bf16.mxu0 0
  %1242 = vmatmul.mubr.bf16.gmra.mrb[0].mxu0 %v1181
  %v1243 = vpop.f32.mrb[0].mxu0
  %v1244 = vadd.f32 0.0, %v1243
  %v1245 = vpop.f32.mrb[0].mxu0
  %v1246 = vpop.f32.mrb[0].mxu0
  %v1247 = vadd.f32 0.0, %v1246
  %v1248 = vpop.f32.mrb[0].mxu0
  %1249 = vmatprep.mubr.bf16.mxu0 0
  %1250 = vmatmul.mubr.bf16.gmra.mrb[0].mxu0 %v1184
  %v1251 = vpop.f32.mrb[0].mxu0
  %v1252 = vadd.f32 0.0, %v1251
  %v1253 = vpop.f32.mrb[0].mxu0
  %v1254 = vpop.f32.mrb[0].mxu0
  %v1255 = vadd.f32 0.0, %v1254
  %v1256 = vpop.f32.mrb[0].mxu0
  %1257 = vmatprep.mubr.bf16.mxu0 0
  %1258 = vmatmul.mubr.bf16.gmra.mrb[0].mxu0 %v1187
  %v1259 = vpop.f32.mrb[0].mxu0
  %v1260 = vadd.f32 0.0, %v1259
  %v1261 = vpop.f32.mrb[0].mxu0
  %v1262 = vpop.f32.mrb[0].mxu0
  %v1263 = vadd.f32 0.0, %v1262
  %v1264 = vpop.f32.mrb[0].mxu0
  %1265 = vmatprep.mubr.bf16.mxu0 0
  %1266 = vmatmul.mubr.bf16.gmra.mrb[0].mxu0 %v1190
  %v1267 = vpop.f32.mrb[0].mxu0
  %v1268 = vadd.f32 0.0, %v1267
  %v1269 = vpop.f32.mrb[0].mxu0
  %v1270 = vpop.f32.mrb[0].mxu0
  %v1271 = vadd.f32 0.0, %v1270
  %v1272 = vpop.f32.mrb[0].mxu0
  %1273 = vmatprep.mubr.bf16.mxu0 0
  %1274 = vmatmul.mubr.bf16.gmra.mrb[0].mxu0 %v1193
  %v1275 = vpop.f32.mrb[0].mxu0
  %v1276 = vadd.f32 0.0, %v1275
  %v1277 = vpop.f32.mrb[0].mxu0
  %v1278 = vpop.f32.mrb[0].mxu0
  %v1279 = vadd.f32 0.0, %v1278
  %v1280 = vpop.f32.mrb[0].mxu0
  %1281 = vmatprep.mubr.bf16.mxu0 0
  %1282 = vmatmul.mubr.bf16.gmra.mrb[0].mxu0 %v1196
  %v1283 = vpop.f32.mrb[0].mxu0
  %v1284 = vadd.f32 0.0, %v1283
  %v1285 = vpop.f32.mrb[0].mxu0
  %v1286 = vpop.f32.mrb[0].mxu0
  %v1287 = vadd.f32 0.0, %v1286
  %v1288 = vpop.f32.mrb[0].mxu0
  %1289 = vmatprep.mubr.bf16.mxu0 0
  %1290 = vmatmul.mubr.bf16.gmra.mrb[0].mxu0 %v1199
  %v1291 = vpop.f32.mrb[0].mxu0
  %v1292 = vadd.f32 0.0, %v1291
  %v1293 = vpop.f32.mrb[0].mxu0
  %v1294 = vpop.f32.mrb[0].mxu0
  %v1295 = vadd.f32 0.0, %v1294
  %v1296 = vpop.f32.mrb[0].mxu0
  %1297 = vdwg.mxu0
  %v1298 = vmul.f32 %v1236, %v294
  %v1299 = vmul.f32 %v1239, %v295
  %v1300 = vmul.f32 %v1244, %v296
  %v1301 = vmul.f32 %v1247, %v297
  %v1302 = vmul.f32 %v1252, %v298
  %v1303 = vmul.f32 %v1255, %v299
  %v1304 = vmul.f32 %v1260, %v300
  %v1305 = vmul.f32 %v1263, %v301
  %v1306 = vmul.f32 %v1268, %v302
  %v1307 = vmul.f32 %v1271, %v303
  %v1308 = vmul.f32 %v1276, %v304
  %v1309 = vmul.f32 %v1279, %v305
  %v1310 = vmul.f32 %v1284, %v306
  %v1311 = vmul.f32 %v1287, %v307
  %v1312 = vmul.f32 %v1292, %v308
  %v1313 = vmul.f32 %v1295, %v309
  %v1314 = vpack.c.bf16 %v1124, %v1121
  %v1315 = vpack.c.bf16 %v1132, %v1129
  %1316 = vmatprep.subr.bf16.mxu0 0
  %1317 = vmatpush1.bf16.msra.mxu0 %v1314
  %1318 = vmatprep.subr.bf16.mxu0 0
  %1319 = vmatpush1.bf16.msra.mxu0 %v1315
  %1320 = vmatprep.subr.bf16.mxu0 0
  %1321 = vmatpush1.bf16.msra.mxu0 0
  %1322 = vmatprep.subr.bf16.mxu0 0
  %1323 = vmatpush1.bf16.msra.mxu0 0
  %1324 = vmatprep.subr.bf16.mxu0 0
  %1325 = vmatpush1.bf16.msra.mxu0 0
  %1326 = vmatprep.subr.bf16.mxu0 0
  %1327 = vmatpush1.bf16.msra.mxu0 0
  %1328 = vmatprep.subr.bf16.mxu0 0
  %1329 = vmatpush1.bf16.msra.mxu0 0
  %1330 = vmatprep.subr.bf16.mxu0 0
  %1331 = vmatpush1.bf16.msra.mxu0 0
  %1332 = vmatprep.subr.bf16.mxu0 0
  %1333 = vmatpush1.bf16.msra.mxu0 0
  %1334 = vmatprep.subr.bf16.mxu0 0
  %1335 = vmatpush1.bf16.msra.mxu0 0
  %1336 = vmatprep.subr.bf16.mxu0 0
  %1337 = vmatpush1.bf16.msra.mxu0 0
  %1338 = vmatprep.subr.bf16.mxu0 0
  %1339 = vmatpush1.bf16.msra.mxu0 0
  %1340 = vmatprep.subr.bf16.mxu0 0
  %1341 = vmatpush1.bf16.msra.mxu0 0
  %1342 = vmatprep.subr.bf16.mxu0 0
  %1343 = vmatpush1.bf16.msra.mxu0 0
  %1344 = vmatprep.subr.bf16.mxu0 0
  %1345 = vmatpush1.bf16.msra.mxu0 0
  %1346 = vmatprep.subr.bf16.mxu0 0
  %1347 = vmatpush1.bf16.msra.mxu0 0
  %1348 = vmatprep.mubr.bf16.mxu0 0
  %1349 = vmatmul.mubr.bf16.gmra.mrb[0].mxu0 %v1178
  %v1350 = vpop.f32.mrb[0].mxu0
  %v1351 = vadd.f32 0.0, %v1350
  %v1352 = vpop.f32.mrb[0].mxu0
  %v1353 = vpop.f32.mrb[0].mxu0
  %v1354 = vadd.f32 0.0, %v1353
  %v1355 = vpop.f32.mrb[0].mxu0
  %1356 = vmatprep.mubr.bf16.mxu0 0
  %1357 = vmatmul.mubr.bf16.gmra.mrb[0].mxu0 %v1181
  %v1358 = vpop.f32.mrb[0].mxu0
  %v1359 = vadd.f32 0.0, %v1358
  %v1360 = vpop.f32.mrb[0].mxu0
  %v1361 = vpop.f32.mrb[0].mxu0
  %v1362 = vadd.f32 0.0, %v1361
  %v1363 = vpop.f32.mrb[0].mxu0
  %1364 = vmatprep.mubr.bf16.mxu0 0
  %1365 = vmatmul.mubr.bf16.gmra.mrb[0].mxu0 %v1184
  %v1366 = vpop.f32.mrb[0].mxu0
  %v1367 = vadd.f32 0.0, %v1366
  %v1368 = vpop.f32.mrb[0].mxu0
  %v1369 = vpop.f32.mrb[0].mxu0
  %v1370 = vadd.f32 0.0, %v1369
  %v1371 = vpop.f32.mrb[0].mxu0
  %1372 = vmatprep.mubr.bf16.mxu0 0
  %1373 = vmatmul.mubr.bf16.gmra.mrb[0].mxu0 %v1187
  %v1374 = vpop.f32.mrb[0].mxu0
  %v1375 = vadd.f32 0.0, %v1374
  %v1376 = vpop.f32.mrb[0].mxu0
  %v1377 = vpop.f32.mrb[0].mxu0
  %v1378 = vadd.f32 0.0, %v1377
  %v1379 = vpop.f32.mrb[0].mxu0
  %1380 = vmatprep.mubr.bf16.mxu0 0
  %1381 = vmatmul.mubr.bf16.gmra.mrb[0].mxu0 %v1190
  %v1382 = vpop.f32.mrb[0].mxu0
  %v1383 = vadd.f32 0.0, %v1382
  %v1384 = vpop.f32.mrb[0].mxu0
  %v1385 = vpop.f32.mrb[0].mxu0
  %v1386 = vadd.f32 0.0, %v1385
  %v1387 = vpop.f32.mrb[0].mxu0
  %1388 = vmatprep.mubr.bf16.mxu0 0
  %1389 = vmatmul.mubr.bf16.gmra.mrb[0].mxu0 %v1193
  %v1390 = vpop.f32.mrb[0].mxu0
  %v1391 = vadd.f32 0.0, %v1390
  %v1392 = vpop.f32.mrb[0].mxu0
  %v1393 = vpop.f32.mrb[0].mxu0
  %v1394 = vadd.f32 0.0, %v1393
  %v1395 = vpop.f32.mrb[0].mxu0
  %1396 = vmatprep.mubr.bf16.mxu0 0
  %1397 = vmatmul.mubr.bf16.gmra.mrb[0].mxu0 %v1196
  %v1398 = vpop.f32.mrb[0].mxu0
  %v1399 = vadd.f32 0.0, %v1398
  %v1400 = vpop.f32.mrb[0].mxu0
  %v1401 = vpop.f32.mrb[0].mxu0
  %v1402 = vadd.f32 0.0, %v1401
  %v1403 = vpop.f32.mrb[0].mxu0
  %1404 = vmatprep.mubr.bf16.mxu0 0
  %1405 = vmatmul.mubr.bf16.gmra.mrb[0].mxu0 %v1199
  %v1406 = vpop.f32.mrb[0].mxu0
  %v1407 = vadd.f32 0.0, %v1406
  %v1408 = vpop.f32.mrb[0].mxu0
  %v1409 = vpop.f32.mrb[0].mxu0
  %v1410 = vadd.f32 0.0, %v1409
  %v1411 = vpop.f32.mrb[0].mxu0
  %1412 = vdwg.mxu0
  %v1413 = vmul.f32 %v1351, %v294
  %v1414 = vmul.f32 %v1354, %v295
  %v1415 = vmul.f32 %v1359, %v296
  %v1416 = vmul.f32 %v1362, %v297
  %v1417 = vmul.f32 %v1367, %v298
  %v1418 = vmul.f32 %v1370, %v299
  %v1419 = vmul.f32 %v1375, %v300
  %v1420 = vmul.f32 %v1378, %v301
  %v1421 = vmul.f32 %v1383, %v302
  %v1422 = vmul.f32 %v1386, %v303
  %v1423 = vmul.f32 %v1391, %v304
  %v1424 = vmul.f32 %v1394, %v305
  %v1425 = vmul.f32 %v1399, %v306
  %v1426 = vmul.f32 %v1402, %v307
  %v1427 = vmul.f32 %v1407, %v308
  %v1428 = vmul.f32 %v1410, %v309
  %v1429 = vpack.c.bf16 %v998, %v997
  %v1430 = vpack.c.bf16 %v1000, %v999
  %v1431 = vpack.c.bf16 %v1299, %v1298
  %v1432 = vpack.c.bf16 %v1301, %v1300
  %v1433 = vpack.c.bf16 %v1303, %v1302
  %v1434 = vpack.c.bf16 %v1305, %v1304
  %v1435 = vpack.c.bf16 %v1307, %v1306
  %v1436 = vpack.c.bf16 %v1309, %v1308
  %v1437 = vpack.c.bf16 %v1311, %v1310
  %v1438 = vpack.c.bf16 %v1313, %v1312
  %v1440 = vsel %vm466, %v1429, 0
  %v1443 = vsel %vm466, %v1430, 0
  %v1446 = vsel %vm466, %v1431, 0
  %v1449 = vsel %vm466, %v1432, 0
  %v1452 = vsel %vm466, %v1433, 0
  %v1455 = vsel %vm466, %v1434, 0
  %v1458 = vsel %vm466, %v1435, 0
  %v1461 = vsel %vm466, %v1436, 0
  %v1464 = vsel %vm466, %v1437, 0
  %v1467 = vsel %vm466, %v1438, 0
  %1469 = vmatprep.subr.bf16.mxu0 0
  %1470 = vmatpush1.bf16.xpose.msra.mxu0 %v1446
  %1471 = vmatprep.subr.bf16.mxu0 0
  %1472 = vmatpush1.bf16.xpose.msra.mxu0 %v1449
  %1473 = vmatprep.subr.bf16.mxu0 0
  %1474 = vmatpush1.bf16.xpose.msra.mxu0 %v1452
  %1475 = vmatprep.subr.bf16.mxu0 0
  %1476 = vmatpush1.bf16.xpose.msra.mxu0 %v1455
  %1477 = vmatprep.subr.bf16.mxu0 0
  %1478 = vmatpush1.bf16.xpose.msra.mxu0 %v1458
  %1479 = vmatprep.subr.bf16.mxu0 0
  %1480 = vmatpush1.bf16.xpose.msra.mxu0 %v1461
  %1481 = vmatprep.subr.bf16.mxu0 0
  %1482 = vmatpush1.bf16.xpose.msra.mxu0 %v1464
  %1483 = vmatprep.subr.bf16.mxu0 0
  %1484 = vmatpush1.bf16.xpose.msra.mxu0 %v1467
  %1485 = vmatprep.subr.bf16.mxu0 0
  %1486 = vmatpush1.bf16.xpose.msra.mxu0 0
  %1487 = vmatprep.subr.bf16.mxu0 0
  %1488 = vmatpush1.bf16.xpose.msra.mxu0 0
  %1489 = vmatprep.subr.bf16.mxu0 0
  %1490 = vmatpush1.bf16.xpose.msra.mxu0 0
  %1491 = vmatprep.subr.bf16.mxu0 0
  %1492 = vmatpush1.bf16.xpose.msra.mxu0 0
  %1493 = vmatprep.subr.bf16.mxu0 0
  %1494 = vmatpush1.bf16.xpose.msra.mxu0 0
  %1495 = vmatprep.subr.bf16.mxu0 0
  %1496 = vmatpush1.bf16.xpose.msra.mxu0 0
  %1497 = vmatprep.subr.bf16.mxu0 0
  %1498 = vmatpush1.bf16.xpose.msra.mxu0 0
  %1499 = vmatprep.subr.bf16.mxu0 0
  %1500 = vmatpush1.bf16.xpose.msra.mxu0 0
  %1501 = vmatprep.mubr.bf16.mxu0 0
  %1502 = vmatmul.mubr.bf16.gmra.mrb[0].mxu0 %v1440
  %v1503 = vpop.f32.mrb[0].mxu0
  %v1504 = vadd.f32 %v274, %v1503
  %v1505 = vpop.f32.mrb[0].mxu0
  %v1506 = vpop.f32.mrb[0].mxu0
  %v1507 = vadd.f32 %v275, %v1506
  %v1508 = vpop.f32.mrb[0].mxu0
  %1509 = vmatprep.mubr.bf16.mxu0 0
  %1510 = vmatmul.mubr.bf16.gmra.mrb[0].mxu0 %v1443
  %v1511 = vpop.f32.mrb[0].mxu0
  %v1512 = vadd.f32 %v276, %v1511
  %v1513 = vpop.f32.mrb[0].mxu0
  %v1514 = vpop.f32.mrb[0].mxu0
  %v1515 = vadd.f32 %v277, %v1514
  %v1516 = vpop.f32.mrb[0].mxu0
  %1517 = vdwg.mxu0
  %v1518 = vmul.f32 %v1504, 1.442695
  %v1519 = vpow.pop %v1518
  %v1520 = vmul.f32 %v1507, 1.442695
  %v1521 = vpow.pop %v1520
  %v1522 = vmul.f32 %v1512, 1.442695
  %v1523 = vpow.pop %v1522
  %v1524 = vmul.f32 %v1515, 1.442695
  %v1525 = vpow.pop %v1524
  %v1526 = vpack.c.bf16 %v1521, %v1519
  %v1527 = vpack.c.bf16 %v1525, %v1523
  %v1544 = vunpack.c.l.b16 %v310
  %v1545 = vunpack.c.l.b16 %v311
  %v1546 = vunpack.c.l.b16 %v312
  %v1547 = vunpack.c.l.b16 %v313
  %v1548 = vunpack.c.l.b16 %v314
  %v1549 = vunpack.c.l.b16 %v315
  %v1550 = vunpack.c.l.b16 %v316
  %v1551 = vunpack.c.l.b16 %v317
  %v1552 = vunpack.c.l.b16 %v318
  %v1553 = vunpack.c.l.b16 %v319
  %v1554 = vunpack.c.l.b16 %v320
  %v1555 = vunpack.c.l.b16 %v321
  %v1556 = vunpack.c.l.b16 %v322
  %v1557 = vunpack.c.l.b16 %v323
  %v1558 = vunpack.c.l.b16 %v324
  %v1559 = vunpack.c.l.b16 %v325
  %v1560 = vpack.c.b16 %v1545, %v1544
  %v1561 = vpack.c.b16 %v1547, %v1546
  %v1562 = vpack.c.b16 %v1549, %v1548
  %v1563 = vpack.c.b16 %v1551, %v1550
  %v1564 = vpack.c.b16 %v1553, %v1552
  %v1565 = vpack.c.b16 %v1555, %v1554
  %v1566 = vpack.c.b16 %v1557, %v1556
  %v1567 = vpack.c.b16 %v1559, %v1558
  %1576 = vmatprep.subr.bf16.mxu0 0
  %1577 = vmatpush1.bf16.msra.mxu0 %v1560
  %1578 = vmatprep.subr.bf16.mxu0 0
  %1579 = vmatpush1.bf16.msra.mxu0 %v1561
  %1580 = vmatprep.subr.bf16.mxu0 0
  %1581 = vmatpush1.bf16.msra.mxu0 %v1562
  %1582 = vmatprep.subr.bf16.mxu0 0
  %1583 = vmatpush1.bf16.msra.mxu0 %v1563
  %1584 = vmatprep.subr.bf16.mxu0 0
  %1585 = vmatpush1.bf16.msra.mxu0 %v1564
  %1586 = vmatprep.subr.bf16.mxu0 0
  %1587 = vmatpush1.bf16.msra.mxu0 %v1565
  %1588 = vmatprep.subr.bf16.mxu0 0
  %1589 = vmatpush1.bf16.msra.mxu0 %v1566
  %1590 = vmatprep.subr.bf16.mxu0 0
  %1591 = vmatpush1.bf16.msra.mxu0 %v1567
  %1592 = vmatprep.subr.bf16.mxu0 0
  %1593 = vmatpush1.bf16.msra.mxu0 0
  %1594 = vmatprep.subr.bf16.mxu0 0
  %1595 = vmatpush1.bf16.msra.mxu0 0
  %1596 = vmatprep.subr.bf16.mxu0 0
  %1597 = vmatpush1.bf16.msra.mxu0 0
  %1598 = vmatprep.subr.bf16.mxu0 0
  %1599 = vmatpush1.bf16.msra.mxu0 0
  %1600 = vmatprep.subr.bf16.mxu0 0
  %1601 = vmatpush1.bf16.msra.mxu0 0
  %1602 = vmatprep.subr.bf16.mxu0 0
  %1603 = vmatpush1.bf16.msra.mxu0 0
  %1604 = vmatprep.subr.bf16.mxu0 0
  %1605 = vmatpush1.bf16.msra.mxu0 0
  %1606 = vmatprep.subr.bf16.mxu0 0
  %1607 = vmatpush1.bf16.msra.mxu0 0
  %1608 = vmatprep.mubr.bf16.mxu0 0
  %1609 = vmatmul.mubr.bf16.gmra.mrb[0].mxu0 %v1526
  %v1610 = vpop.f32.mrb[0].mxu0
  %v1611 = vadd.f32 1e-20, %v1610
  %v1612 = vpop.f32.mrb[0].mxu0
  %v1613 = vpop.f32.mrb[0].mxu0
  %v1614 = vadd.f32 1e-20, %v1613
  %v1615 = vpop.f32.mrb[0].mxu0
  %1616 = vmatprep.mubr.bf16.mxu0 0
  %1617 = vmatmul.mubr.bf16.gmra.mrb[0].mxu0 %v1527
  %v1618 = vpop.f32.mrb[0].mxu0
  %v1619 = vadd.f32 1e-20, %v1618
  %v1620 = vpop.f32.mrb[0].mxu0
  %v1621 = vpop.f32.mrb[0].mxu0
  %v1622 = vadd.f32 1e-20, %v1621
  %v1623 = vpop.f32.mrb[0].mxu0
  %1624 = vdwg.mxu0
  %v1625 = vrcp.pop %v1611
  %v1626 = vrcp.pop %v1614
  %v1627 = vrcp.pop %v1619
  %v1628 = vrcp.pop %v1622
  %v1629 = vmul.f32 %v1519, %v1625
  %v1630 = vmul.f32 %v1521, %v1626
  %v1631 = vmul.f32 %v1523, %v1627
  %v1632 = vmul.f32 %v1525, %v1628
  %v1633 = vpack.c.bf16 %v1630, %v1629
  %v1634 = vpack.c.bf16 %v1632, %v1631
  %v1635 = vpack.c.bf16 %v1414, %v1413
  %v1636 = vpack.c.bf16 %v1416, %v1415
  %v1637 = vpack.c.bf16 %v1418, %v1417
  %v1638 = vpack.c.bf16 %v1420, %v1419
  %v1639 = vpack.c.bf16 %v1422, %v1421
  %v1640 = vpack.c.bf16 %v1424, %v1423
  %v1641 = vpack.c.bf16 %v1426, %v1425
  %v1642 = vpack.c.bf16 %v1428, %v1427
  %1643 = vmatprep.subr.bf16.mxu0 0
  %1644 = vmatpush1.bf16.msra.mxu0 %v1635
  %1645 = vmatprep.subr.bf16.mxu0 0
  %1646 = vmatpush1.bf16.msra.mxu0 %v1636
  %1647 = vmatprep.subr.bf16.mxu0 0
  %1648 = vmatpush1.bf16.msra.mxu0 %v1637
  %1649 = vmatprep.subr.bf16.mxu0 0
  %1650 = vmatpush1.bf16.msra.mxu0 %v1638
  %1651 = vmatprep.subr.bf16.mxu0 0
  %1652 = vmatpush1.bf16.msra.mxu0 %v1639
  %1653 = vmatprep.subr.bf16.mxu0 0
  %1654 = vmatpush1.bf16.msra.mxu0 %v1640
  %1655 = vmatprep.subr.bf16.mxu0 0
  %1656 = vmatpush1.bf16.msra.mxu0 %v1641
  %1657 = vmatprep.subr.bf16.mxu0 0
  %1658 = vmatpush1.bf16.msra.mxu0 %v1642
  %1659 = vmatprep.subr.bf16.mxu0 0
  %1660 = vmatpush1.bf16.msra.mxu0 0
  %1661 = vmatprep.subr.bf16.mxu0 0
  %1662 = vmatpush1.bf16.msra.mxu0 0
  %1663 = vmatprep.subr.bf16.mxu0 0
  %1664 = vmatpush1.bf16.msra.mxu0 0
  %1665 = vmatprep.subr.bf16.mxu0 0
  %1666 = vmatpush1.bf16.msra.mxu0 0
  %1667 = vmatprep.subr.bf16.mxu0 0
  %1668 = vmatpush1.bf16.msra.mxu0 0
  %1669 = vmatprep.subr.bf16.mxu0 0
  %1670 = vmatpush1.bf16.msra.mxu0 0
  %1671 = vmatprep.subr.bf16.mxu0 0
  %1672 = vmatpush1.bf16.msra.mxu0 0
  %1673 = vmatprep.subr.bf16.mxu0 0
  %1674 = vmatpush1.bf16.msra.mxu0 0
  %1675 = vmatprep.mubr.bf16.mxu0 0
  %1676 = vmatmul.mubr.bf16.gmra.mrb[0].mxu0 %v1633
  %v1677 = vpop.f32.mrb[0].mxu0
  %v1678 = vadd.f32 0.0, %v1677
  %v1679 = vpop.f32.mrb[0].mxu0
  %v1680 = vpop.f32.mrb[0].mxu0
  %v1681 = vadd.f32 0.0, %v1680
  %v1682 = vpop.f32.mrb[0].mxu0
  %1683 = vmatprep.mubr.bf16.mxu0 0
  %1684 = vmatmul.mubr.bf16.gmra.mrb[0].mxu0 %v1634
  %v1685 = vpop.f32.mrb[0].mxu0
  %v1686 = vadd.f32 0.0, %v1685
  %v1687 = vpop.f32.mrb[0].mxu0
  %v1688 = vpop.f32.mrb[0].mxu0
  %v1689 = vadd.f32 0.0, %v1688
  %v1690 = vpop.f32.mrb[0].mxu0
  %1691 = vdwg.mxu0
  %v1692 = vpack.c.bf16 %v1681, %v1678
  %v1693 = vpack.c.bf16 %v1689, %v1686
  %v1695 = vlaneseq
  %v1696 = vshrl.u32 %v1695, 7
  %v1697 = vsub.s32 0, %v1696
  %v1698 = vrot.slane %v143, %v1697
  %v1704 = vunpack.c.l.b16 %v139
  %v1705 = vunpack.c.l.b16 %v140
  %v1706 = vunpack.c.l.b16 %v141
  %v1707 = vunpack.c.l.b16 %v142
  %v1708 = vpack.c.b16 %v1705, %v1704
  %v1709 = vpack.c.b16 %v1707, %v1706
  %v1713 = vsel %vm466, %v1692, 0
  %v1716 = vsel %vm466, %v1693, 0
  %1718 = vmatprep.subr.bf16.mxu0 0
  %1719 = vmatpush1.bf16.msra.mxu0 %v1708
  %1720 = vmatprep.subr.bf16.mxu0 0
  %1721 = vmatpush1.bf16.msra.mxu0 %v1709
  %1722 = vmatprep.subr.bf16.mxu0 0
  %1723 = vmatpush1.bf16.msra.mxu0 0
  %1724 = vmatprep.subr.bf16.mxu0 0
  %1725 = vmatpush1.bf16.msra.mxu0 0
  %1726 = vmatprep.subr.bf16.mxu0 0
  %1727 = vmatpush1.bf16.msra.mxu0 0
  %1728 = vmatprep.subr.bf16.mxu0 0
  %1729 = vmatpush1.bf16.msra.mxu0 0
  %1730 = vmatprep.subr.bf16.mxu0 0
  %1731 = vmatpush1.bf16.msra.mxu0 0
  %1732 = vmatprep.subr.bf16.mxu0 0
  %1733 = vmatpush1.bf16.msra.mxu0 0
  %1734 = vmatprep.subr.bf16.mxu0 0
  %1735 = vmatpush1.bf16.msra.mxu0 0
  %1736 = vmatprep.subr.bf16.mxu0 0
  %1737 = vmatpush1.bf16.msra.mxu0 0
  %1738 = vmatprep.subr.bf16.mxu0 0
  %1739 = vmatpush1.bf16.msra.mxu0 0
  %1740 = vmatprep.subr.bf16.mxu0 0
  %1741 = vmatpush1.bf16.msra.mxu0 0
  %1742 = vmatprep.subr.bf16.mxu0 0
  %1743 = vmatpush1.bf16.msra.mxu0 0
  %1744 = vmatprep.subr.bf16.mxu0 0
  %1745 = vmatpush1.bf16.msra.mxu0 0
  %1746 = vmatprep.subr.bf16.mxu0 0
  %1747 = vmatpush1.bf16.msra.mxu0 0
  %1748 = vmatprep.subr.bf16.mxu0 0
  %1749 = vmatpush1.bf16.msra.mxu0 0
  %1750 = vmatprep.mubr.bf16.mxu0 0
  %1751 = vmatmul.mubr.bf16.gmra.mrb[0].mxu0 %v1713
  %v1752 = vpop.f32.mrb[0].mxu0
  %v1753 = vadd.f32 %v1698, %v1752
  %v1754 = vpop.f32.mrb[0].mxu0
  %v1755 = vpop.f32.mrb[0].mxu0
  %v1756 = vadd.f32 %v1698, %v1755
  %v1757 = vpop.f32.mrb[0].mxu0
  %1758 = vmatprep.mubr.bf16.mxu0 0
  %1759 = vmatmul.mubr.bf16.gmra.mrb[0].mxu0 %v1716
  %v1760 = vpop.f32.mrb[0].mxu0
  %v1761 = vadd.f32 %v1698, %v1760
  %v1762 = vpop.f32.mrb[0].mxu0
  %v1763 = vpop.f32.mrb[0].mxu0
  %v1764 = vadd.f32 %v1698, %v1763
  %v1765 = vpop.f32.mrb[0].mxu0
  %1766 = vdwg.mxu0
  %v1767 = vmul.f32 %v1753, %v508
  %v1768 = vmul.f32 %v1756, %v511
  %v1769 = vmul.f32 %v1761, %v516
  %v1770 = vmul.f32 %v1764, %v519
  %v1771 = vadd.f32 %v414, %v1767
  %v1772 = vadd.f32 %v415, %v1768
  %v1773 = vadd.f32 %v416, %v1769
  %v1774 = vadd.f32 %v417, %v1770
  %v1775 = vsel %vm466, %v1771, 0.0
  %1776 = vadd.xlane.f32.xlu0 %v1775
  %v1777 = vpop.xlane.xlu0 %1776
  %v1778 = vsel %vm466, %v1772, 0.0
  %1779 = vadd.xlane.f32.xlu0 %v1778
  %v1780 = vpop.xlane.xlu0 %1779
  %v1781 = vsel %vm466, %v1773, 0.0
  %1782 = vadd.xlane.f32.xlu0 %v1781
  %v1783 = vpop.xlane.xlu0 %1782
  %v1784 = vsel %vm466, %v1774, 0.0
  %1785 = vadd.xlane.f32.xlu0 %v1784
  %v1786 = vpop.xlane.xlu0 %1785
  %v1787 = vmul.f32 %v1777, %v869
  %v1788 = vmul.f32 %v1780, %v869
  %v1789 = vmul.f32 %v1783, %v869
  %v1790 = vmul.f32 %v1786, %v869
  %v1791 = vsub.f32 %v1771, %v1787
  %v1792 = vsub.f32 %v1772, %v1788
  %v1793 = vsub.f32 %v1773, %v1789
  %v1794 = vsub.f32 %v1774, %v1790
  %v1795 = vmul.f32 %v1791, %v1791
  %v1796 = vmul.f32 %v1792, %v1792
  %v1797 = vmul.f32 %v1793, %v1793
  %v1798 = vmul.f32 %v1794, %v1794
  %v1799 = vsel %vm466, %v1795, 0.0
  %1800 = vadd.xlane.f32.xlu0 %v1799
  %v1801 = vpop.xlane.xlu0 %1800
  %v1802 = vsel %vm466, %v1796, 0.0
  %1803 = vadd.xlane.f32.xlu0 %v1802
  %v1804 = vpop.xlane.xlu0 %1803
  %v1805 = vsel %vm466, %v1797, 0.0
  %1806 = vadd.xlane.f32.xlu0 %v1805
  %v1807 = vpop.xlane.xlu0 %1806
  %v1808 = vsel %vm466, %v1798, 0.0
  %1809 = vadd.xlane.f32.xlu0 %v1808
  %v1810 = vpop.xlane.xlu0 %1809
  %v1811 = vmul.f32 %v1801, %v869
  %v1812 = vmul.f32 %v1804, %v869
  %v1813 = vmul.f32 %v1807, %v869
  %v1814 = vmul.f32 %v1810, %v869
  %v1815 = vadd.f32 %v1811, 1e-06
  %v1816 = vadd.f32 %v1812, 1e-06
  %v1817 = vadd.f32 %v1813, 1e-06
  %v1818 = vadd.f32 %v1814, 1e-06
  %v1819 = vrsqrt.pop %v1815
  %v1820 = vrsqrt.pop %v1816
  %v1821 = vrsqrt.pop %v1817
  %v1822 = vrsqrt.pop %v1818
  %v1823 = vmul.f32 %v1791, %v1819
  %v1824 = vmul.f32 %v1792, %v1820
  %v1825 = vmul.f32 %v1793, %v1821
  %v1826 = vmul.f32 %v1794, %v1822
  %v1827 = vadd.f32 %v709, 1.0
  %v1828 = vadd.f32 %v712, 1.0
  %v1829 = vadd.f32 %v717, 1.0
  %v1830 = vadd.f32 %v720, 1.0
  %v1831 = vmul.f32 %v1823, %v1827
  %v1832 = vmul.f32 %v1824, %v1828
  %v1833 = vmul.f32 %v1825, %v1829
  %v1834 = vmul.f32 %v1826, %v1830
  %v1835 = vadd.f32 %v1831, %v843
  %v1836 = vadd.f32 %v1832, %v846
  %v1837 = vadd.f32 %v1833, %v851
  %v1838 = vadd.f32 %v1834, %v854
  %v1839 = vpack.c.bf16 %v1836, %v1835
  %v1840 = vpack.c.bf16 %v1838, %v1837
  %v1842 = vlaneseq
  %v1843 = vshrl.u32 %v1842, 7
  %v1844 = vsub.s32 0, %v1843
  %v1845 = vrot.slane %v148, %v1844
  %v1851 = vunpack.c.l.b16 %v144
  %v1852 = vunpack.c.l.b16 %v145
  %v1853 = vunpack.c.l.b16 %v146
  %v1854 = vunpack.c.l.b16 %v147
  %v1855 = vpack.c.b16 %v1852, %v1851
  %v1856 = vpack.c.b16 %v1854, %v1853
  %v1860 = vsel %vm466, %v1839, 0
  %v1863 = vsel %vm466, %v1840, 0
  %1865 = vmatprep.subr.bf16.mxu0 0
  %1866 = vmatpush1.bf16.msra.mxu0 %v1855
  %1867 = vmatprep.subr.bf16.mxu0 0
  %1868 = vmatpush1.bf16.msra.mxu0 %v1856
  %1869 = vmatprep.subr.bf16.mxu0 0
  %1870 = vmatpush1.bf16.msra.mxu0 0
  %1871 = vmatprep.subr.bf16.mxu0 0
  %1872 = vmatpush1.bf16.msra.mxu0 0
  %1873 = vmatprep.subr.bf16.mxu0 0
  %1874 = vmatpush1.bf16.msra.mxu0 0
  %1875 = vmatprep.subr.bf16.mxu0 0
  %1876 = vmatpush1.bf16.msra.mxu0 0
  %1877 = vmatprep.subr.bf16.mxu0 0
  %1878 = vmatpush1.bf16.msra.mxu0 0
  %1879 = vmatprep.subr.bf16.mxu0 0
  %1880 = vmatpush1.bf16.msra.mxu0 0
  %1881 = vmatprep.subr.bf16.mxu0 0
  %1882 = vmatpush1.bf16.msra.mxu0 0
  %1883 = vmatprep.subr.bf16.mxu0 0
  %1884 = vmatpush1.bf16.msra.mxu0 0
  %1885 = vmatprep.subr.bf16.mxu0 0
  %1886 = vmatpush1.bf16.msra.mxu0 0
  %1887 = vmatprep.subr.bf16.mxu0 0
  %1888 = vmatpush1.bf16.msra.mxu0 0
  %1889 = vmatprep.subr.bf16.mxu0 0
  %1890 = vmatpush1.bf16.msra.mxu0 0
  %1891 = vmatprep.subr.bf16.mxu0 0
  %1892 = vmatpush1.bf16.msra.mxu0 0
  %1893 = vmatprep.subr.bf16.mxu0 0
  %1894 = vmatpush1.bf16.msra.mxu0 0
  %1895 = vmatprep.subr.bf16.mxu0 0
  %1896 = vmatpush1.bf16.msra.mxu0 0
  %1897 = vmatprep.mubr.bf16.mxu0 0
  %1898 = vmatmul.mubr.bf16.gmra.mrb[0].mxu0 %v1860
  %v1899 = vpop.f32.mrb[0].mxu0
  %v1900 = vadd.f32 %v1845, %v1899
  %v1901 = vpop.f32.mrb[0].mxu0
  %v1902 = vpop.f32.mrb[0].mxu0
  %v1903 = vadd.f32 %v1845, %v1902
  %v1904 = vpop.f32.mrb[0].mxu0
  %1905 = vmatprep.mubr.bf16.mxu0 0
  %1906 = vmatmul.mubr.bf16.gmra.mrb[0].mxu0 %v1863
  %v1907 = vpop.f32.mrb[0].mxu0
  %v1908 = vadd.f32 %v1845, %v1907
  %v1909 = vpop.f32.mrb[0].mxu0
  %v1910 = vpop.f32.mrb[0].mxu0
  %v1911 = vadd.f32 %v1845, %v1910
  %v1912 = vpop.f32.mrb[0].mxu0
  %1913 = vdwg.mxu0
  %v1914 = vmul.f32 %v1900, %v1900
  %v1915 = vmul.f32 %v1903, %v1903
  %v1916 = vmul.f32 %v1908, %v1908
  %v1917 = vmul.f32 %v1911, %v1911
  %v1918 = vmul.f32 %v1900, %v1914
  %v1919 = vmul.f32 %v1903, %v1915
  %v1920 = vmul.f32 %v1908, %v1916
  %v1921 = vmul.f32 %v1911, %v1917
  %v1922 = vmul.f32 %v1918, 0.044715
  %v1923 = vmul.f32 %v1919, 0.044715
  %v1924 = vmul.f32 %v1920, 0.044715
  %v1925 = vmul.f32 %v1921, 0.044715
  %v1926 = vadd.f32 %v1900, %v1922
  %v1927 = vadd.f32 %v1903, %v1923
  %v1928 = vadd.f32 %v1908, %v1924
  %v1929 = vadd.f32 %v1911, %v1925
  %v1930 = vmul.f32 %v1926, 0.7978846
  %v1931 = vmul.f32 %v1927, 0.7978846
  %v1932 = vmul.f32 %v1928, 0.7978846
  %v1933 = vmul.f32 %v1929, 0.7978846
  %v1934 = vtanh.pop %v1930
  %v1935 = vtanh.pop %v1931
  %v1936 = vtanh.pop %v1932
  %v1937 = vtanh.pop %v1933
  %v1938 = vadd.f32 %v1934, 1.0
  %v1939 = vadd.f32 %v1935, 1.0
  %v1940 = vadd.f32 %v1936, 1.0
  %v1941 = vadd.f32 %v1937, 1.0
  %v1942 = vmul.f32 %v1938, 0.5
  %v1943 = vmul.f32 %v1939, 0.5
  %v1944 = vmul.f32 %v1940, 0.5
  %v1945 = vmul.f32 %v1941, 0.5
  %v1946 = vmul.f32 %v1900, %v1942
  %v1947 = vmul.f32 %v1903, %v1943
  %v1948 = vmul.f32 %v1908, %v1944
  %v1949 = vmul.f32 %v1911, %v1945
  %v1950 = vpack.c.bf16 %v1947, %v1946
  %v1951 = vpack.c.bf16 %v1949, %v1948
  %v1953 = vlaneseq
  %v1954 = vshrl.u32 %v1953, 7
  %v1955 = vsub.s32 0, %v1954
  %v1956 = vrot.slane %v165, %v1955
  %v1974 = vunpack.c.l.b16 %v149
  %v1975 = vunpack.c.l.b16 %v150
  %v1976 = vunpack.c.l.b16 %v151
  %v1977 = vunpack.c.l.b16 %v152
  %v1978 = vunpack.c.l.b16 %v153
  %v1979 = vunpack.c.l.b16 %v154
  %v1980 = vunpack.c.l.b16 %v155
  %v1981 = vunpack.c.l.b16 %v156
  %v1982 = vunpack.c.l.b16 %v157
  %v1983 = vunpack.c.l.b16 %v158
  %v1984 = vunpack.c.l.b16 %v159
  %v1985 = vunpack.c.l.b16 %v160
  %v1986 = vunpack.c.l.b16 %v161
  %v1987 = vunpack.c.l.b16 %v162
  %v1988 = vunpack.c.l.b16 %v163
  %v1989 = vunpack.c.l.b16 %v164
  %v1990 = vpack.c.b16 %v1975, %v1974
  %v1991 = vpack.c.b16 %v1977, %v1976
  %v1992 = vpack.c.b16 %v1979, %v1978
  %v1993 = vpack.c.b16 %v1981, %v1980
  %v1994 = vpack.c.b16 %v1983, %v1982
  %v1995 = vpack.c.b16 %v1985, %v1984
  %v1996 = vpack.c.b16 %v1987, %v1986
  %v1997 = vpack.c.b16 %v1989, %v1988
  %2006 = vmatprep.subr.bf16.mxu0 0
  %2007 = vmatpush1.bf16.msra.mxu0 %v1990
  %2008 = vmatprep.subr.bf16.mxu0 0
  %2009 = vmatpush1.bf16.msra.mxu0 %v1991
  %2010 = vmatprep.subr.bf16.mxu0 0
  %2011 = vmatpush1.bf16.msra.mxu0 %v1992
  %2012 = vmatprep.subr.bf16.mxu0 0
  %2013 = vmatpush1.bf16.msra.mxu0 %v1993
  %2014 = vmatprep.subr.bf16.mxu0 0
  %2015 = vmatpush1.bf16.msra.mxu0 %v1994
  %2016 = vmatprep.subr.bf16.mxu0 0
  %2017 = vmatpush1.bf16.msra.mxu0 %v1995
  %2018 = vmatprep.subr.bf16.mxu0 0
  %2019 = vmatpush1.bf16.msra.mxu0 %v1996
  %2020 = vmatprep.subr.bf16.mxu0 0
  %2021 = vmatpush1.bf16.msra.mxu0 %v1997
  %2022 = vmatprep.subr.bf16.mxu0 0
  %2023 = vmatpush1.bf16.msra.mxu0 0
  %2024 = vmatprep.subr.bf16.mxu0 0
  %2025 = vmatpush1.bf16.msra.mxu0 0
  %2026 = vmatprep.subr.bf16.mxu0 0
  %2027 = vmatpush1.bf16.msra.mxu0 0
  %2028 = vmatprep.subr.bf16.mxu0 0
  %2029 = vmatpush1.bf16.msra.mxu0 0
  %2030 = vmatprep.subr.bf16.mxu0 0
  %2031 = vmatpush1.bf16.msra.mxu0 0
  %2032 = vmatprep.subr.bf16.mxu0 0
  %2033 = vmatpush1.bf16.msra.mxu0 0
  %2034 = vmatprep.subr.bf16.mxu0 0
  %2035 = vmatpush1.bf16.msra.mxu0 0
  %2036 = vmatprep.subr.bf16.mxu0 0
  %2037 = vmatpush1.bf16.msra.mxu0 0
  %2038 = vmatprep.mubr.bf16.mxu0 0
  %2039 = vmatmul.mubr.bf16.gmra.mrb[0].mxu0 %v1950
  %v2040 = vpop.f32.mrb[0].mxu0
  %v2041 = vadd.f32 %v1956, %v2040
  %v2042 = vpop.f32.mrb[0].mxu0
  %v2043 = vpop.f32.mrb[0].mxu0
  %v2044 = vadd.f32 %v1956, %v2043
  %v2045 = vpop.f32.mrb[0].mxu0
  %2046 = vmatprep.mubr.bf16.mxu0 0
  %2047 = vmatmul.mubr.bf16.gmra.mrb[0].mxu0 %v1951
  %v2048 = vpop.f32.mrb[0].mxu0
  %v2049 = vadd.f32 %v1956, %v2048
  %v2050 = vpop.f32.mrb[0].mxu0
  %v2051 = vpop.f32.mrb[0].mxu0
  %v2052 = vadd.f32 %v1956, %v2051
  %v2053 = vpop.f32.mrb[0].mxu0
  %2054 = vdwg.mxu0
  %v2055 = vmul.f32 %v2041, %v575
  %v2056 = vmul.f32 %v2044, %v578
  %v2057 = vmul.f32 %v2049, %v583
  %v2058 = vmul.f32 %v2052, %v586
  %v2059 = vadd.f32 %v1771, %v2055
  %v2060 = vadd.f32 %v1772, %v2056
  %v2061 = vadd.f32 %v1773, %v2057
  %v2062 = vadd.f32 %v1774, %v2058
  %v2064 = vlaneseq
  %v2065 = vshrl.u32 %v2064, 7
  %v2066 = vsub.s32 0, %v2065
  %v2067 = vrot.slane %v197, %v2066
  %v2073 = vunpack.c.l.b16 %v167
  %v2074 = vunpack.c.l.b16 %v168
  %v2075 = vunpack.c.l.b16 %v169
  %v2076 = vunpack.c.l.b16 %v170
  %v2077 = vpack.c.b16 %v2074, %v2073
  %v2078 = vpack.c.b16 %v2076, %v2075
  %2081 = vmatprep.subr.bf16.mxu0 0
  %2082 = vmatpush1.bf16.msra.mxu0 %v2077
  %2083 = vmatprep.subr.bf16.mxu0 0
  %2084 = vmatpush1.bf16.msra.mxu0 %v2078
  %2085 = vmatprep.subr.bf16.mxu0 0
  %2086 = vmatpush1.bf16.msra.mxu0 0
  %2087 = vmatprep.subr.bf16.mxu0 0
  %2088 = vmatpush1.bf16.msra.mxu0 0
  %2089 = vmatprep.subr.bf16.mxu0 0
  %2090 = vmatpush1.bf16.msra.mxu0 0
  %2091 = vmatprep.subr.bf16.mxu0 0
  %2092 = vmatpush1.bf16.msra.mxu0 0
  %2093 = vmatprep.subr.bf16.mxu0 0
  %2094 = vmatpush1.bf16.msra.mxu0 0
  %2095 = vmatprep.subr.bf16.mxu0 0
  %2096 = vmatpush1.bf16.msra.mxu0 0
  %2097 = vmatprep.subr.bf16.mxu0 0
  %2098 = vmatpush1.bf16.msra.mxu0 0
  %2099 = vmatprep.subr.bf16.mxu0 0
  %2100 = vmatpush1.bf16.msra.mxu0 0
  %2101 = vmatprep.subr.bf16.mxu0 0
  %2102 = vmatpush1.bf16.msra.mxu0 0
  %2103 = vmatprep.subr.bf16.mxu0 0
  %2104 = vmatpush1.bf16.msra.mxu0 0
  %2105 = vmatprep.subr.bf16.mxu0 0
  %2106 = vmatpush1.bf16.msra.mxu0 0
  %2107 = vmatprep.subr.bf16.mxu0 0
  %2108 = vmatpush1.bf16.msra.mxu0 0
  %2109 = vmatprep.subr.bf16.mxu0 0
  %2110 = vmatpush1.bf16.msra.mxu0 0
  %2111 = vmatprep.subr.bf16.mxu0 0
  %2112 = vmatpush1.bf16.msra.mxu0 0
  %2113 = vmatprep.mubr.bf16.mxu0 0
  %2114 = vmatmul.mubr.bf16.gmra.mrb[0].mxu0 %v468
  %v2115 = vpop.f32.mrb[0].mxu0
  %v2116 = vadd.f32 %v2067, %v2115
  %v2117 = vpop.f32.mrb[0].mxu0
  %v2118 = vpop.f32.mrb[0].mxu0
  %v2119 = vadd.f32 %v2067, %v2118
  %v2120 = vpop.f32.mrb[0].mxu0
  %2121 = vmatprep.mubr.bf16.mxu0 0
  %2122 = vmatmul.mubr.bf16.gmra.mrb[0].mxu0 %v471
  %v2123 = vpop.f32.mrb[0].mxu0
  %v2124 = vadd.f32 %v2067, %v2123
  %v2125 = vpop.f32.mrb[0].mxu0
  %v2126 = vpop.f32.mrb[0].mxu0
  %v2127 = vadd.f32 %v2067, %v2126
  %v2128 = vpop.f32.mrb[0].mxu0
  %2129 = vdwg.mxu0
  %v2131 = vlaneseq
  %v2132 = vshrl.u32 %v2131, 7
  %v2133 = vsub.s32 0, %v2132
  %v2134 = vrot.slane %v199, %v2133
  %v2140 = vunpack.c.l.b16 %v172
  %v2141 = vunpack.c.l.b16 %v173
  %v2142 = vunpack.c.l.b16 %v174
  %v2143 = vunpack.c.l.b16 %v175
  %v2144 = vpack.c.b16 %v2141, %v2140
  %v2145 = vpack.c.b16 %v2143, %v2142
  %2148 = vmatprep.subr.bf16.mxu0 0
  %2149 = vmatpush1.bf16.msra.mxu0 %v2144
  %2150 = vmatprep.subr.bf16.mxu0 0
  %2151 = vmatpush1.bf16.msra.mxu0 %v2145
  %2152 = vmatprep.subr.bf16.mxu0 0
  %2153 = vmatpush1.bf16.msra.mxu0 0
  %2154 = vmatprep.subr.bf16.mxu0 0
  %2155 = vmatpush1.bf16.msra.mxu0 0
  %2156 = vmatprep.subr.bf16.mxu0 0
  %2157 = vmatpush1.bf16.msra.mxu0 0
  %2158 = vmatprep.subr.bf16.mxu0 0
  %2159 = vmatpush1.bf16.msra.mxu0 0
  %2160 = vmatprep.subr.bf16.mxu0 0
  %2161 = vmatpush1.bf16.msra.mxu0 0
  %2162 = vmatprep.subr.bf16.mxu0 0
  %2163 = vmatpush1.bf16.msra.mxu0 0
  %2164 = vmatprep.subr.bf16.mxu0 0
  %2165 = vmatpush1.bf16.msra.mxu0 0
  %2166 = vmatprep.subr.bf16.mxu0 0
  %2167 = vmatpush1.bf16.msra.mxu0 0
  %2168 = vmatprep.subr.bf16.mxu0 0
  %2169 = vmatpush1.bf16.msra.mxu0 0
  %2170 = vmatprep.subr.bf16.mxu0 0
  %2171 = vmatpush1.bf16.msra.mxu0 0
  %2172 = vmatprep.subr.bf16.mxu0 0
  %2173 = vmatpush1.bf16.msra.mxu0 0
  %2174 = vmatprep.subr.bf16.mxu0 0
  %2175 = vmatpush1.bf16.msra.mxu0 0
  %2176 = vmatprep.subr.bf16.mxu0 0
  %2177 = vmatpush1.bf16.msra.mxu0 0
  %2178 = vmatprep.subr.bf16.mxu0 0
  %2179 = vmatpush1.bf16.msra.mxu0 0
  %2180 = vmatprep.mubr.bf16.mxu0 0
  %2181 = vmatmul.mubr.bf16.gmra.mrb[0].mxu0 %v468
  %v2182 = vpop.f32.mrb[0].mxu0
  %v2183 = vadd.f32 %v2134, %v2182
  %v2184 = vpop.f32.mrb[0].mxu0
  %v2185 = vpop.f32.mrb[0].mxu0
  %v2186 = vadd.f32 %v2134, %v2185
  %v2187 = vpop.f32.mrb[0].mxu0
  %2188 = vmatprep.mubr.bf16.mxu0 0
  %2189 = vmatmul.mubr.bf16.gmra.mrb[0].mxu0 %v471
  %v2190 = vpop.f32.mrb[0].mxu0
  %v2191 = vadd.f32 %v2134, %v2190
  %v2192 = vpop.f32.mrb[0].mxu0
  %v2193 = vpop.f32.mrb[0].mxu0
  %v2194 = vadd.f32 %v2134, %v2193
  %v2195 = vpop.f32.mrb[0].mxu0
  %2196 = vdwg.mxu0
  %v2198 = vlaneseq
  %v2199 = vshrl.u32 %v2198, 7
  %v2200 = vsub.s32 0, %v2199
  %v2201 = vrot.slane %v201, %v2200
  %v2207 = vunpack.c.l.b16 %v177
  %v2208 = vunpack.c.l.b16 %v178
  %v2209 = vunpack.c.l.b16 %v179
  %v2210 = vunpack.c.l.b16 %v180
  %v2211 = vpack.c.b16 %v2208, %v2207
  %v2212 = vpack.c.b16 %v2210, %v2209
  %2215 = vmatprep.subr.bf16.mxu0 0
  %2216 = vmatpush1.bf16.msra.mxu0 %v2211
  %2217 = vmatprep.subr.bf16.mxu0 0
  %2218 = vmatpush1.bf16.msra.mxu0 %v2212
  %2219 = vmatprep.subr.bf16.mxu0 0
  %2220 = vmatpush1.bf16.msra.mxu0 0
  %2221 = vmatprep.subr.bf16.mxu0 0
  %2222 = vmatpush1.bf16.msra.mxu0 0
  %2223 = vmatprep.subr.bf16.mxu0 0
  %2224 = vmatpush1.bf16.msra.mxu0 0
  %2225 = vmatprep.subr.bf16.mxu0 0
  %2226 = vmatpush1.bf16.msra.mxu0 0
  %2227 = vmatprep.subr.bf16.mxu0 0
  %2228 = vmatpush1.bf16.msra.mxu0 0
  %2229 = vmatprep.subr.bf16.mxu0 0
  %2230 = vmatpush1.bf16.msra.mxu0 0
  %2231 = vmatprep.subr.bf16.mxu0 0
  %2232 = vmatpush1.bf16.msra.mxu0 0
  %2233 = vmatprep.subr.bf16.mxu0 0
  %2234 = vmatpush1.bf16.msra.mxu0 0
  %2235 = vmatprep.subr.bf16.mxu0 0
  %2236 = vmatpush1.bf16.msra.mxu0 0
  %2237 = vmatprep.subr.bf16.mxu0 0
  %2238 = vmatpush1.bf16.msra.mxu0 0
  %2239 = vmatprep.subr.bf16.mxu0 0
  %2240 = vmatpush1.bf16.msra.mxu0 0
  %2241 = vmatprep.subr.bf16.mxu0 0
  %2242 = vmatpush1.bf16.msra.mxu0 0
  %2243 = vmatprep.subr.bf16.mxu0 0
  %2244 = vmatpush1.bf16.msra.mxu0 0
  %2245 = vmatprep.subr.bf16.mxu0 0
  %2246 = vmatpush1.bf16.msra.mxu0 0
  %2247 = vmatprep.mubr.bf16.mxu0 0
  %2248 = vmatmul.mubr.bf16.gmra.mrb[0].mxu0 %v468
  %v2249 = vpop.f32.mrb[0].mxu0
  %v2250 = vadd.f32 %v2201, %v2249
  %v2251 = vpop.f32.mrb[0].mxu0
  %v2252 = vpop.f32.mrb[0].mxu0
  %v2253 = vadd.f32 %v2201, %v2252
  %v2254 = vpop.f32.mrb[0].mxu0
  %2255 = vmatprep.mubr.bf16.mxu0 0
  %2256 = vmatmul.mubr.bf16.gmra.mrb[0].mxu0 %v471
  %v2257 = vpop.f32.mrb[0].mxu0
  %v2258 = vadd.f32 %v2201, %v2257
  %v2259 = vpop.f32.mrb[0].mxu0
  %v2260 = vpop.f32.mrb[0].mxu0
  %v2261 = vadd.f32 %v2201, %v2260
  %v2262 = vpop.f32.mrb[0].mxu0
  %2263 = vdwg.mxu0
  %v2265 = vlaneseq
  %v2266 = vshrl.u32 %v2265, 7
  %v2267 = vsub.s32 0, %v2266
  %v2268 = vrot.slane %v203, %v2267
  %v2274 = vunpack.c.l.b16 %v182
  %v2275 = vunpack.c.l.b16 %v183
  %v2276 = vunpack.c.l.b16 %v184
  %v2277 = vunpack.c.l.b16 %v185
  %v2278 = vpack.c.b16 %v2275, %v2274
  %v2279 = vpack.c.b16 %v2277, %v2276
  %2282 = vmatprep.subr.bf16.mxu0 0
  %2283 = vmatpush1.bf16.msra.mxu0 %v2278
  %2284 = vmatprep.subr.bf16.mxu0 0
  %2285 = vmatpush1.bf16.msra.mxu0 %v2279
  %2286 = vmatprep.subr.bf16.mxu0 0
  %2287 = vmatpush1.bf16.msra.mxu0 0
  %2288 = vmatprep.subr.bf16.mxu0 0
  %2289 = vmatpush1.bf16.msra.mxu0 0
  %2290 = vmatprep.subr.bf16.mxu0 0
  %2291 = vmatpush1.bf16.msra.mxu0 0
  %2292 = vmatprep.subr.bf16.mxu0 0
  %2293 = vmatpush1.bf16.msra.mxu0 0
  %2294 = vmatprep.subr.bf16.mxu0 0
  %2295 = vmatpush1.bf16.msra.mxu0 0
  %2296 = vmatprep.subr.bf16.mxu0 0
  %2297 = vmatpush1.bf16.msra.mxu0 0
  %2298 = vmatprep.subr.bf16.mxu0 0
  %2299 = vmatpush1.bf16.msra.mxu0 0
  %2300 = vmatprep.subr.bf16.mxu0 0
  %2301 = vmatpush1.bf16.msra.mxu0 0
  %2302 = vmatprep.subr.bf16.mxu0 0
  %2303 = vmatpush1.bf16.msra.mxu0 0
  %2304 = vmatprep.subr.bf16.mxu0 0
  %2305 = vmatpush1.bf16.msra.mxu0 0
  %2306 = vmatprep.subr.bf16.mxu0 0
  %2307 = vmatpush1.bf16.msra.mxu0 0
  %2308 = vmatprep.subr.bf16.mxu0 0
  %2309 = vmatpush1.bf16.msra.mxu0 0
  %2310 = vmatprep.subr.bf16.mxu0 0
  %2311 = vmatpush1.bf16.msra.mxu0 0
  %2312 = vmatprep.subr.bf16.mxu0 0
  %2313 = vmatpush1.bf16.msra.mxu0 0
  %2314 = vmatprep.mubr.bf16.mxu0 0
  %2315 = vmatmul.mubr.bf16.gmra.mrb[0].mxu0 %v468
  %v2316 = vpop.f32.mrb[0].mxu0
  %v2317 = vadd.f32 %v2268, %v2316
  %v2318 = vpop.f32.mrb[0].mxu0
  %v2319 = vpop.f32.mrb[0].mxu0
  %v2320 = vadd.f32 %v2268, %v2319
  %v2321 = vpop.f32.mrb[0].mxu0
  %2322 = vmatprep.mubr.bf16.mxu0 0
  %2323 = vmatmul.mubr.bf16.gmra.mrb[0].mxu0 %v471
  %v2324 = vpop.f32.mrb[0].mxu0
  %v2325 = vadd.f32 %v2268, %v2324
  %v2326 = vpop.f32.mrb[0].mxu0
  %v2327 = vpop.f32.mrb[0].mxu0
  %v2328 = vadd.f32 %v2268, %v2327
  %v2329 = vpop.f32.mrb[0].mxu0
  %2330 = vdwg.mxu0
  %v2332 = vlaneseq
  %v2333 = vshrl.u32 %v2332, 7
  %v2334 = vsub.s32 0, %v2333
  %v2335 = vrot.slane %v205, %v2334
  %v2341 = vunpack.c.l.b16 %v187
  %v2342 = vunpack.c.l.b16 %v188
  %v2343 = vunpack.c.l.b16 %v189
  %v2344 = vunpack.c.l.b16 %v190
  %v2345 = vpack.c.b16 %v2342, %v2341
  %v2346 = vpack.c.b16 %v2344, %v2343
  %2349 = vmatprep.subr.bf16.mxu0 0
  %2350 = vmatpush1.bf16.msra.mxu0 %v2345
  %2351 = vmatprep.subr.bf16.mxu0 0
  %2352 = vmatpush1.bf16.msra.mxu0 %v2346
  %2353 = vmatprep.subr.bf16.mxu0 0
  %2354 = vmatpush1.bf16.msra.mxu0 0
  %2355 = vmatprep.subr.bf16.mxu0 0
  %2356 = vmatpush1.bf16.msra.mxu0 0
  %2357 = vmatprep.subr.bf16.mxu0 0
  %2358 = vmatpush1.bf16.msra.mxu0 0
  %2359 = vmatprep.subr.bf16.mxu0 0
  %2360 = vmatpush1.bf16.msra.mxu0 0
  %2361 = vmatprep.subr.bf16.mxu0 0
  %2362 = vmatpush1.bf16.msra.mxu0 0
  %2363 = vmatprep.subr.bf16.mxu0 0
  %2364 = vmatpush1.bf16.msra.mxu0 0
  %2365 = vmatprep.subr.bf16.mxu0 0
  %2366 = vmatpush1.bf16.msra.mxu0 0
  %2367 = vmatprep.subr.bf16.mxu0 0
  %2368 = vmatpush1.bf16.msra.mxu0 0
  %2369 = vmatprep.subr.bf16.mxu0 0
  %2370 = vmatpush1.bf16.msra.mxu0 0
  %2371 = vmatprep.subr.bf16.mxu0 0
  %2372 = vmatpush1.bf16.msra.mxu0 0
  %2373 = vmatprep.subr.bf16.mxu0 0
  %2374 = vmatpush1.bf16.msra.mxu0 0
  %2375 = vmatprep.subr.bf16.mxu0 0
  %2376 = vmatpush1.bf16.msra.mxu0 0
  %2377 = vmatprep.subr.bf16.mxu0 0
  %2378 = vmatpush1.bf16.msra.mxu0 0
  %2379 = vmatprep.subr.bf16.mxu0 0
  %2380 = vmatpush1.bf16.msra.mxu0 0
  %2381 = vmatprep.mubr.bf16.mxu0 0
  %2382 = vmatmul.mubr.bf16.gmra.mrb[0].mxu0 %v468
  %v2383 = vpop.f32.mrb[0].mxu0
  %v2384 = vadd.f32 %v2335, %v2383
  %v2385 = vpop.f32.mrb[0].mxu0
  %v2386 = vpop.f32.mrb[0].mxu0
  %v2387 = vadd.f32 %v2335, %v2386
  %v2388 = vpop.f32.mrb[0].mxu0
  %2389 = vmatprep.mubr.bf16.mxu0 0
  %2390 = vmatmul.mubr.bf16.gmra.mrb[0].mxu0 %v471
  %v2391 = vpop.f32.mrb[0].mxu0
  %v2392 = vadd.f32 %v2335, %v2391
  %v2393 = vpop.f32.mrb[0].mxu0
  %v2394 = vpop.f32.mrb[0].mxu0
  %v2395 = vadd.f32 %v2335, %v2394
  %v2396 = vpop.f32.mrb[0].mxu0
  %2397 = vdwg.mxu0
  %v2399 = vlaneseq
  %v2400 = vshrl.u32 %v2399, 7
  %v2401 = vsub.s32 0, %v2400
  %v2402 = vrot.slane %v207, %v2401
  %v2408 = vunpack.c.l.b16 %v192
  %v2409 = vunpack.c.l.b16 %v193
  %v2410 = vunpack.c.l.b16 %v194
  %v2411 = vunpack.c.l.b16 %v195
  %v2412 = vpack.c.b16 %v2409, %v2408
  %v2413 = vpack.c.b16 %v2411, %v2410
  %2416 = vmatprep.subr.bf16.mxu0 0
  %2417 = vmatpush1.bf16.msra.mxu0 %v2412
  %2418 = vmatprep.subr.bf16.mxu0 0
  %2419 = vmatpush1.bf16.msra.mxu0 %v2413
  %2420 = vmatprep.subr.bf16.mxu0 0
  %2421 = vmatpush1.bf16.msra.mxu0 0
  %2422 = vmatprep.subr.bf16.mxu0 0
  %2423 = vmatpush1.bf16.msra.mxu0 0
  %2424 = vmatprep.subr.bf16.mxu0 0
  %2425 = vmatpush1.bf16.msra.mxu0 0
  %2426 = vmatprep.subr.bf16.mxu0 0
  %2427 = vmatpush1.bf16.msra.mxu0 0
  %2428 = vmatprep.subr.bf16.mxu0 0
  %2429 = vmatpush1.bf16.msra.mxu0 0
  %2430 = vmatprep.subr.bf16.mxu0 0
  %2431 = vmatpush1.bf16.msra.mxu0 0
  %2432 = vmatprep.subr.bf16.mxu0 0
  %2433 = vmatpush1.bf16.msra.mxu0 0
  %2434 = vmatprep.subr.bf16.mxu0 0
  %2435 = vmatpush1.bf16.msra.mxu0 0
  %2436 = vmatprep.subr.bf16.mxu0 0
  %2437 = vmatpush1.bf16.msra.mxu0 0
  %2438 = vmatprep.subr.bf16.mxu0 0
  %2439 = vmatpush1.bf16.msra.mxu0 0
  %2440 = vmatprep.subr.bf16.mxu0 0
  %2441 = vmatpush1.bf16.msra.mxu0 0
  %2442 = vmatprep.subr.bf16.mxu0 0
  %2443 = vmatpush1.bf16.msra.mxu0 0
  %2444 = vmatprep.subr.bf16.mxu0 0
  %2445 = vmatpush1.bf16.msra.mxu0 0
  %2446 = vmatprep.subr.bf16.mxu0 0
  %2447 = vmatpush1.bf16.msra.mxu0 0
  %2448 = vmatprep.mubr.bf16.mxu0 0
  %2449 = vmatmul.mubr.bf16.gmra.mrb[0].mxu0 %v468
  %v2450 = vpop.f32.mrb[0].mxu0
  %v2451 = vadd.f32 %v2402, %v2450
  %v2452 = vpop.f32.mrb[0].mxu0
  %v2453 = vpop.f32.mrb[0].mxu0
  %v2454 = vadd.f32 %v2402, %v2453
  %v2455 = vpop.f32.mrb[0].mxu0
  %2456 = vmatprep.mubr.bf16.mxu0 0
  %2457 = vmatmul.mubr.bf16.gmra.mrb[0].mxu0 %v471
  %v2458 = vpop.f32.mrb[0].mxu0
  %v2459 = vadd.f32 %v2402, %v2458
  %v2460 = vpop.f32.mrb[0].mxu0
  %v2461 = vpop.f32.mrb[0].mxu0
  %v2462 = vadd.f32 %v2402, %v2461
  %v2463 = vpop.f32.mrb[0].mxu0
  %2464 = vdwg.mxu0
  %v2465 = vsel %vm466, %v2059, 0.0
  %2466 = vadd.xlane.f32.xlu0 %v2465
  %v2467 = vpop.xlane.xlu0 %2466
  %v2468 = vsel %vm466, %v2060, 0.0
  %2469 = vadd.xlane.f32.xlu0 %v2468
  %v2470 = vpop.xlane.xlu0 %2469
  %v2471 = vsel %vm466, %v2061, 0.0
  %2472 = vadd.xlane.f32.xlu0 %v2471
  %v2473 = vpop.xlane.xlu0 %2472
  %v2474 = vsel %vm466, %v2062, 0.0
  %2475 = vadd.xlane.f32.xlu0 %v2474
  %v2476 = vpop.xlane.xlu0 %2475
  %v2477 = vmul.f32 %v2467, %v869
  %v2478 = vmul.f32 %v2470, %v869
  %v2479 = vmul.f32 %v2473, %v869
  %v2480 = vmul.f32 %v2476, %v869
  %v2481 = vsub.f32 %v2059, %v2477
  %v2482 = vsub.f32 %v2060, %v2478
  %v2483 = vsub.f32 %v2061, %v2479
  %v2484 = vsub.f32 %v2062, %v2480
  %v2485 = vmul.f32 %v2481, %v2481
  %v2486 = vmul.f32 %v2482, %v2482
  %v2487 = vmul.f32 %v2483, %v2483
  %v2488 = vmul.f32 %v2484, %v2484
  %v2489 = vsel %vm466, %v2485, 0.0
  %2490 = vadd.xlane.f32.xlu0 %v2489
  %v2491 = vpop.xlane.xlu0 %2490
  %v2492 = vsel %vm466, %v2486, 0.0
  %2493 = vadd.xlane.f32.xlu0 %v2492
  %v2494 = vpop.xlane.xlu0 %2493
  %v2495 = vsel %vm466, %v2487, 0.0
  %2496 = vadd.xlane.f32.xlu0 %v2495
  %v2497 = vpop.xlane.xlu0 %2496
  %v2498 = vsel %vm466, %v2488, 0.0
  %2499 = vadd.xlane.f32.xlu0 %v2498
  %v2500 = vpop.xlane.xlu0 %2499
  %v2501 = vmul.f32 %v2491, %v869
  %v2502 = vmul.f32 %v2494, %v869
  %v2503 = vmul.f32 %v2497, %v869
  %v2504 = vmul.f32 %v2500, %v869
  %v2505 = vadd.f32 %v2501, 1e-06
  %v2506 = vadd.f32 %v2502, 1e-06
  %v2507 = vadd.f32 %v2503, 1e-06
  %v2508 = vadd.f32 %v2504, 1e-06
  %v2509 = vrsqrt.pop %v2505
  %v2510 = vrsqrt.pop %v2506
  %v2511 = vrsqrt.pop %v2507
  %v2512 = vrsqrt.pop %v2508
  %v2513 = vmul.f32 %v2481, %v2509
  %v2514 = vmul.f32 %v2482, %v2510
  %v2515 = vmul.f32 %v2483, %v2511
  %v2516 = vmul.f32 %v2484, %v2512
  %v2517 = vadd.f32 %v2250, 1.0
  %v2518 = vadd.f32 %v2253, 1.0
  %v2519 = vadd.f32 %v2258, 1.0
  %v2520 = vadd.f32 %v2261, 1.0
  %v2521 = vmul.f32 %v2513, %v2517
  %v2522 = vmul.f32 %v2514, %v2518
  %v2523 = vmul.f32 %v2515, %v2519
  %v2524 = vmul.f32 %v2516, %v2520
  %v2525 = vadd.f32 %v2521, %v2384
  %v2526 = vadd.f32 %v2522, %v2387
  %v2527 = vadd.f32 %v2523, %v2392
  %v2528 = vadd.f32 %v2524, %v2395
  %v2529 = vpack.c.bf16 %v2526, %v2525
  %v2530 = vpack.c.bf16 %v2528, %v2527
  %v2532 = vlaneseq
  %v2533 = vshrl.u32 %v2532, 7
  %v2534 = vsub.s32 0, %v2533
  %v2535 = vrot.slane %v214, %v2534
  %v2541 = vunpack.c.l.b16 %v209
  %v2542 = vunpack.c.l.b16 %v210
  %v2543 = vunpack.c.l.b16 %v211
  %v2544 = vunpack.c.l.b16 %v212
  %v2545 = vpack.c.b16 %v2542, %v2541
  %v2546 = vpack.c.b16 %v2544, %v2543
  %v2550 = vsel %vm466, %v2529, 0
  %v2553 = vsel %vm466, %v2530, 0
  %2555 = vmatprep.subr.bf16.mxu0 0
  %2556 = vmatpush1.bf16.msra.mxu0 %v2545
  %2557 = vmatprep.subr.bf16.mxu0 0
  %2558 = vmatpush1.bf16.msra.mxu0 %v2546
  %2559 = vmatprep.subr.bf16.mxu0 0
  %2560 = vmatpush1.bf16.msra.mxu0 0
  %2561 = vmatprep.subr.bf16.mxu0 0
  %2562 = vmatpush1.bf16.msra.mxu0 0
  %2563 = vmatprep.subr.bf16.mxu0 0
  %2564 = vmatpush1.bf16.msra.mxu0 0
  %2565 = vmatprep.subr.bf16.mxu0 0
  %2566 = vmatpush1.bf16.msra.mxu0 0
  %2567 = vmatprep.subr.bf16.mxu0 0
  %2568 = vmatpush1.bf16.msra.mxu0 0
  %2569 = vmatprep.subr.bf16.mxu0 0
  %2570 = vmatpush1.bf16.msra.mxu0 0
  %2571 = vmatprep.subr.bf16.mxu0 0
  %2572 = vmatpush1.bf16.msra.mxu0 0
  %2573 = vmatprep.subr.bf16.mxu0 0
  %2574 = vmatpush1.bf16.msra.mxu0 0
  %2575 = vmatprep.subr.bf16.mxu0 0
  %2576 = vmatpush1.bf16.msra.mxu0 0
  %2577 = vmatprep.subr.bf16.mxu0 0
  %2578 = vmatpush1.bf16.msra.mxu0 0
  %2579 = vmatprep.subr.bf16.mxu0 0
  %2580 = vmatpush1.bf16.msra.mxu0 0
  %2581 = vmatprep.subr.bf16.mxu0 0
  %2582 = vmatpush1.bf16.msra.mxu0 0
  %2583 = vmatprep.subr.bf16.mxu0 0
  %2584 = vmatpush1.bf16.msra.mxu0 0
  %2585 = vmatprep.subr.bf16.mxu0 0
  %2586 = vmatpush1.bf16.msra.mxu0 0
  %2587 = vmatprep.mubr.bf16.mxu0 0
  %2588 = vmatmul.mubr.bf16.gmra.mrb[0].mxu0 %v2550
  %v2589 = vpop.f32.mrb[0].mxu0
  %v2590 = vadd.f32 %v2535, %v2589
  %v2591 = vpop.f32.mrb[0].mxu0
  %v2592 = vpop.f32.mrb[0].mxu0
  %v2593 = vadd.f32 %v2535, %v2592
  %v2594 = vpop.f32.mrb[0].mxu0
  %2595 = vmatprep.mubr.bf16.mxu0 0
  %2596 = vmatmul.mubr.bf16.gmra.mrb[0].mxu0 %v2553
  %v2597 = vpop.f32.mrb[0].mxu0
  %v2598 = vadd.f32 %v2535, %v2597
  %v2599 = vpop.f32.mrb[0].mxu0
  %v2600 = vpop.f32.mrb[0].mxu0
  %v2601 = vadd.f32 %v2535, %v2600
  %v2602 = vpop.f32.mrb[0].mxu0
  %2603 = vdwg.mxu0
  %v2604 = vmul.f32 %v2590, 0.088388346
  %v2605 = vmul.f32 %v2593, 0.088388346
  %v2606 = vmul.f32 %v2598, 0.088388346
  %v2607 = vmul.f32 %v2601, 0.088388346
  %v2609 = vlaneseq
  %v2610 = vshrl.u32 %v2609, 7
  %v2611 = vsub.s32 0, %v2610
  %v2612 = vrot.slane %v221, %v2611
  %v2618 = vunpack.c.l.b16 %v216
  %v2619 = vunpack.c.l.b16 %v217
  %v2620 = vunpack.c.l.b16 %v218
  %v2621 = vunpack.c.l.b16 %v219
  %v2622 = vpack.c.b16 %v2619, %v2618
  %v2623 = vpack.c.b16 %v2621, %v2620
  %2626 = vmatprep.subr.bf16.mxu0 0
  %2627 = vmatpush1.bf16.msra.mxu0 %v2622
  %2628 = vmatprep.subr.bf16.mxu0 0
  %2629 = vmatpush1.bf16.msra.mxu0 %v2623
  %2630 = vmatprep.subr.bf16.mxu0 0
  %2631 = vmatpush1.bf16.msra.mxu0 0
  %2632 = vmatprep.subr.bf16.mxu0 0
  %2633 = vmatpush1.bf16.msra.mxu0 0
  %2634 = vmatprep.subr.bf16.mxu0 0
  %2635 = vmatpush1.bf16.msra.mxu0 0
  %2636 = vmatprep.subr.bf16.mxu0 0
  %2637 = vmatpush1.bf16.msra.mxu0 0
  %2638 = vmatprep.subr.bf16.mxu0 0
  %2639 = vmatpush1.bf16.msra.mxu0 0
  %2640 = vmatprep.subr.bf16.mxu0 0
  %2641 = vmatpush1.bf16.msra.mxu0 0
  %2642 = vmatprep.subr.bf16.mxu0 0
  %2643 = vmatpush1.bf16.msra.mxu0 0
  %2644 = vmatprep.subr.bf16.mxu0 0
  %2645 = vmatpush1.bf16.msra.mxu0 0
  %2646 = vmatprep.subr.bf16.mxu0 0
  %2647 = vmatpush1.bf16.msra.mxu0 0
  %2648 = vmatprep.subr.bf16.mxu0 0
  %2649 = vmatpush1.bf16.msra.mxu0 0
  %2650 = vmatprep.subr.bf16.mxu0 0
  %2651 = vmatpush1.bf16.msra.mxu0 0
  %2652 = vmatprep.subr.bf16.mxu0 0
  %2653 = vmatpush1.bf16.msra.mxu0 0
  %2654 = vmatprep.subr.bf16.mxu0 0
  %2655 = vmatpush1.bf16.msra.mxu0 0
  %2656 = vmatprep.subr.bf16.mxu0 0
  %2657 = vmatpush1.bf16.msra.mxu0 0
  %2658 = vmatprep.mubr.bf16.mxu0 0
  %2659 = vmatmul.mubr.bf16.gmra.mrb[0].mxu0 %v2550
  %v2660 = vpop.f32.mrb[0].mxu0
  %v2661 = vadd.f32 %v2612, %v2660
  %v2662 = vpop.f32.mrb[0].mxu0
  %v2663 = vpop.f32.mrb[0].mxu0
  %v2664 = vadd.f32 %v2612, %v2663
  %v2665 = vpop.f32.mrb[0].mxu0
  %2666 = vmatprep.mubr.bf16.mxu0 0
  %2667 = vmatmul.mubr.bf16.gmra.mrb[0].mxu0 %v2553
  %v2668 = vpop.f32.mrb[0].mxu0
  %v2669 = vadd.f32 %v2612, %v2668
  %v2670 = vpop.f32.mrb[0].mxu0
  %v2671 = vpop.f32.mrb[0].mxu0
  %v2672 = vadd.f32 %v2612, %v2671
  %v2673 = vpop.f32.mrb[0].mxu0
  %2674 = vdwg.mxu0
  %v2676 = vlaneseq
  %v2677 = vshrl.u32 %v2676, 7
  %v2678 = vsub.s32 0, %v2677
  %v2679 = vrot.slane %v228, %v2678
  %v2685 = vunpack.c.l.b16 %v223
  %v2686 = vunpack.c.l.b16 %v224
  %v2687 = vunpack.c.l.b16 %v225
  %v2688 = vunpack.c.l.b16 %v226
  %v2689 = vpack.c.b16 %v2686, %v2685
  %v2690 = vpack.c.b16 %v2688, %v2687
  %2693 = vmatprep.subr.bf16.mxu0 0
  %2694 = vmatpush1.bf16.msra.mxu0 %v2689
  %2695 = vmatprep.subr.bf16.mxu0 0
  %2696 = vmatpush1.bf16.msra.mxu0 %v2690
  %2697 = vmatprep.subr.bf16.mxu0 0
  %2698 = vmatpush1.bf16.msra.mxu0 0
  %2699 = vmatprep.subr.bf16.mxu0 0
  %2700 = vmatpush1.bf16.msra.mxu0 0
  %2701 = vmatprep.subr.bf16.mxu0 0
  %2702 = vmatpush1.bf16.msra.mxu0 0
  %2703 = vmatprep.subr.bf16.mxu0 0
  %2704 = vmatpush1.bf16.msra.mxu0 0
  %2705 = vmatprep.subr.bf16.mxu0 0
  %2706 = vmatpush1.bf16.msra.mxu0 0
  %2707 = vmatprep.subr.bf16.mxu0 0
  %2708 = vmatpush1.bf16.msra.mxu0 0
  %2709 = vmatprep.subr.bf16.mxu0 0
  %2710 = vmatpush1.bf16.msra.mxu0 0
  %2711 = vmatprep.subr.bf16.mxu0 0
  %2712 = vmatpush1.bf16.msra.mxu0 0
  %2713 = vmatprep.subr.bf16.mxu0 0
  %2714 = vmatpush1.bf16.msra.mxu0 0
  %2715 = vmatprep.subr.bf16.mxu0 0
  %2716 = vmatpush1.bf16.msra.mxu0 0
  %2717 = vmatprep.subr.bf16.mxu0 0
  %2718 = vmatpush1.bf16.msra.mxu0 0
  %2719 = vmatprep.subr.bf16.mxu0 0
  %2720 = vmatpush1.bf16.msra.mxu0 0
  %2721 = vmatprep.subr.bf16.mxu0 0
  %2722 = vmatpush1.bf16.msra.mxu0 0
  %2723 = vmatprep.subr.bf16.mxu0 0
  %2724 = vmatpush1.bf16.msra.mxu0 0
  %2725 = vmatprep.mubr.bf16.mxu0 0
  %2726 = vmatmul.mubr.bf16.gmra.mrb[0].mxu0 %v2550
  %v2727 = vpop.f32.mrb[0].mxu0
  %v2728 = vadd.f32 %v2679, %v2727
  %v2729 = vpop.f32.mrb[0].mxu0
  %v2730 = vpop.f32.mrb[0].mxu0
  %v2731 = vadd.f32 %v2679, %v2730
  %v2732 = vpop.f32.mrb[0].mxu0
  %2733 = vmatprep.mubr.bf16.mxu0 0
  %2734 = vmatmul.mubr.bf16.gmra.mrb[0].mxu0 %v2553
  %v2735 = vpop.f32.mrb[0].mxu0
  %v2736 = vadd.f32 %v2679, %v2735
  %v2737 = vpop.f32.mrb[0].mxu0
  %v2738 = vpop.f32.mrb[0].mxu0
  %v2739 = vadd.f32 %v2679, %v2738
  %v2740 = vpop.f32.mrb[0].mxu0
  %2741 = vdwg.mxu0
  %v2742 = vpack.c.bf16 %v2664, %v2661
  %v2743 = vpack.c.bf16 %v2672, %v2669
  %2744 = vmatprep.subr.bf16.mxu0 0
  %2745 = vmatpush1.bf16.msra.mxu0 %v2742
  %2746 = vmatprep.subr.bf16.mxu0 0
  %2747 = vmatpush1.bf16.msra.mxu0 %v2743
  %2748 = vmatprep.subr.bf16.mxu0 0
  %2749 = vmatpush1.bf16.msra.mxu0 0
  %2750 = vmatprep.subr.bf16.mxu0 0
  %2751 = vmatpush1.bf16.msra.mxu0 0
  %2752 = vmatprep.subr.bf16.mxu0 0
  %2753 = vmatpush1.bf16.msra.mxu0 0
  %2754 = vmatprep.subr.bf16.mxu0 0
  %2755 = vmatpush1.bf16.msra.mxu0 0
  %2756 = vmatprep.subr.bf16.mxu0 0
  %2757 = vmatpush1.bf16.msra.mxu0 0
  %2758 = vmatprep.subr.bf16.mxu0 0
  %2759 = vmatpush1.bf16.msra.mxu0 0
  %2760 = vmatprep.subr.bf16.mxu0 0
  %2761 = vmatpush1.bf16.msra.mxu0 0
  %2762 = vmatprep.subr.bf16.mxu0 0
  %2763 = vmatpush1.bf16.msra.mxu0 0
  %2764 = vmatprep.subr.bf16.mxu0 0
  %2765 = vmatpush1.bf16.msra.mxu0 0
  %2766 = vmatprep.subr.bf16.mxu0 0
  %2767 = vmatpush1.bf16.msra.mxu0 0
  %2768 = vmatprep.subr.bf16.mxu0 0
  %2769 = vmatpush1.bf16.msra.mxu0 0
  %2770 = vmatprep.subr.bf16.mxu0 0
  %2771 = vmatpush1.bf16.msra.mxu0 0
  %2772 = vmatprep.subr.bf16.mxu0 0
  %2773 = vmatpush1.bf16.msra.mxu0 0
  %2774 = vmatprep.subr.bf16.mxu0 0
  %2775 = vmatpush1.bf16.msra.mxu0 0
  %2776 = vmatprep.mubr.bf16.mxu0 0
  %2777 = vmatmul.mubr.bf16.gmra.mrb[0].mxu0 %v1178
  %v2778 = vpop.f32.mrb[0].mxu0
  %v2779 = vadd.f32 0.0, %v2778
  %v2780 = vpop.f32.mrb[0].mxu0
  %v2781 = vpop.f32.mrb[0].mxu0
  %v2782 = vadd.f32 0.0, %v2781
  %v2783 = vpop.f32.mrb[0].mxu0
  %2784 = vmatprep.mubr.bf16.mxu0 0
  %2785 = vmatmul.mubr.bf16.gmra.mrb[0].mxu0 %v1181
  %v2786 = vpop.f32.mrb[0].mxu0
  %v2787 = vadd.f32 0.0, %v2786
  %v2788 = vpop.f32.mrb[0].mxu0
  %v2789 = vpop.f32.mrb[0].mxu0
  %v2790 = vadd.f32 0.0, %v2789
  %v2791 = vpop.f32.mrb[0].mxu0
  %2792 = vmatprep.mubr.bf16.mxu0 0
  %2793 = vmatmul.mubr.bf16.gmra.mrb[0].mxu0 %v1184
  %v2794 = vpop.f32.mrb[0].mxu0
  %v2795 = vadd.f32 0.0, %v2794
  %v2796 = vpop.f32.mrb[0].mxu0
  %v2797 = vpop.f32.mrb[0].mxu0
  %v2798 = vadd.f32 0.0, %v2797
  %v2799 = vpop.f32.mrb[0].mxu0
  %2800 = vmatprep.mubr.bf16.mxu0 0
  %2801 = vmatmul.mubr.bf16.gmra.mrb[0].mxu0 %v1187
  %v2802 = vpop.f32.mrb[0].mxu0
  %v2803 = vadd.f32 0.0, %v2802
  %v2804 = vpop.f32.mrb[0].mxu0
  %v2805 = vpop.f32.mrb[0].mxu0
  %v2806 = vadd.f32 0.0, %v2805
  %v2807 = vpop.f32.mrb[0].mxu0
  %2808 = vmatprep.mubr.bf16.mxu0 0
  %2809 = vmatmul.mubr.bf16.gmra.mrb[0].mxu0 %v1190
  %v2810 = vpop.f32.mrb[0].mxu0
  %v2811 = vadd.f32 0.0, %v2810
  %v2812 = vpop.f32.mrb[0].mxu0
  %v2813 = vpop.f32.mrb[0].mxu0
  %v2814 = vadd.f32 0.0, %v2813
  %v2815 = vpop.f32.mrb[0].mxu0
  %2816 = vmatprep.mubr.bf16.mxu0 0
  %2817 = vmatmul.mubr.bf16.gmra.mrb[0].mxu0 %v1193
  %v2818 = vpop.f32.mrb[0].mxu0
  %v2819 = vadd.f32 0.0, %v2818
  %v2820 = vpop.f32.mrb[0].mxu0
  %v2821 = vpop.f32.mrb[0].mxu0
  %v2822 = vadd.f32 0.0, %v2821
  %v2823 = vpop.f32.mrb[0].mxu0
  %2824 = vmatprep.mubr.bf16.mxu0 0
  %2825 = vmatmul.mubr.bf16.gmra.mrb[0].mxu0 %v1196
  %v2826 = vpop.f32.mrb[0].mxu0
  %v2827 = vadd.f32 0.0, %v2826
  %v2828 = vpop.f32.mrb[0].mxu0
  %v2829 = vpop.f32.mrb[0].mxu0
  %v2830 = vadd.f32 0.0, %v2829
  %v2831 = vpop.f32.mrb[0].mxu0
  %2832 = vmatprep.mubr.bf16.mxu0 0
  %2833 = vmatmul.mubr.bf16.gmra.mrb[0].mxu0 %v1199
  %v2834 = vpop.f32.mrb[0].mxu0
  %v2835 = vadd.f32 0.0, %v2834
  %v2836 = vpop.f32.mrb[0].mxu0
  %v2837 = vpop.f32.mrb[0].mxu0
  %v2838 = vadd.f32 0.0, %v2837
  %v2839 = vpop.f32.mrb[0].mxu0
  %2840 = vdwg.mxu0
  %v2841 = vmul.f32 %v2779, %v294
  %v2842 = vmul.f32 %v2782, %v295
  %v2843 = vmul.f32 %v2787, %v296
  %v2844 = vmul.f32 %v2790, %v297
  %v2845 = vmul.f32 %v2795, %v298
  %v2846 = vmul.f32 %v2798, %v299
  %v2847 = vmul.f32 %v2803, %v300
  %v2848 = vmul.f32 %v2806, %v301
  %v2849 = vmul.f32 %v2811, %v302
  %v2850 = vmul.f32 %v2814, %v303
  %v2851 = vmul.f32 %v2819, %v304
  %v2852 = vmul.f32 %v2822, %v305
  %v2853 = vmul.f32 %v2827, %v306
  %v2854 = vmul.f32 %v2830, %v307
  %v2855 = vmul.f32 %v2835, %v308
  %v2856 = vmul.f32 %v2838, %v309
  %v2857 = vpack.c.bf16 %v2731, %v2728
  %v2858 = vpack.c.bf16 %v2739, %v2736
  %2859 = vmatprep.subr.bf16.mxu0 0
  %2860 = vmatpush1.bf16.msra.mxu0 %v2857
  %2861 = vmatprep.subr.bf16.mxu0 0
  %2862 = vmatpush1.bf16.msra.mxu0 %v2858
  %2863 = vmatprep.subr.bf16.mxu0 0
  %2864 = vmatpush1.bf16.msra.mxu0 0
  %2865 = vmatprep.subr.bf16.mxu0 0
  %2866 = vmatpush1.bf16.msra.mxu0 0
  %2867 = vmatprep.subr.bf16.mxu0 0
  %2868 = vmatpush1.bf16.msra.mxu0 0
  %2869 = vmatprep.subr.bf16.mxu0 0
  %2870 = vmatpush1.bf16.msra.mxu0 0
  %2871 = vmatprep.subr.bf16.mxu0 0
  %2872 = vmatpush1.bf16.msra.mxu0 0
  %2873 = vmatprep.subr.bf16.mxu0 0
  %2874 = vmatpush1.bf16.msra.mxu0 0
  %2875 = vmatprep.subr.bf16.mxu0 0
  %2876 = vmatpush1.bf16.msra.mxu0 0
  %2877 = vmatprep.subr.bf16.mxu0 0
  %2878 = vmatpush1.bf16.msra.mxu0 0
  %2879 = vmatprep.subr.bf16.mxu0 0
  %2880 = vmatpush1.bf16.msra.mxu0 0
  %2881 = vmatprep.subr.bf16.mxu0 0
  %2882 = vmatpush1.bf16.msra.mxu0 0
  %2883 = vmatprep.subr.bf16.mxu0 0
  %2884 = vmatpush1.bf16.msra.mxu0 0
  %2885 = vmatprep.subr.bf16.mxu0 0
  %2886 = vmatpush1.bf16.msra.mxu0 0
  %2887 = vmatprep.subr.bf16.mxu0 0
  %2888 = vmatpush1.bf16.msra.mxu0 0
  %2889 = vmatprep.subr.bf16.mxu0 0
  %2890 = vmatpush1.bf16.msra.mxu0 0
  %2891 = vmatprep.mubr.bf16.mxu0 0
  %2892 = vmatmul.mubr.bf16.gmra.mrb[0].mxu0 %v1178
  %v2893 = vpop.f32.mrb[0].mxu0
  %v2894 = vadd.f32 0.0, %v2893
  %v2895 = vpop.f32.mrb[0].mxu0
  %v2896 = vpop.f32.mrb[0].mxu0
  %v2897 = vadd.f32 0.0, %v2896
  %v2898 = vpop.f32.mrb[0].mxu0
  %2899 = vmatprep.mubr.bf16.mxu0 0
  %2900 = vmatmul.mubr.bf16.gmra.mrb[0].mxu0 %v1181
  %v2901 = vpop.f32.mrb[0].mxu0
  %v2902 = vadd.f32 0.0, %v2901
  %v2903 = vpop.f32.mrb[0].mxu0
  %v2904 = vpop.f32.mrb[0].mxu0
  %v2905 = vadd.f32 0.0, %v2904
  %v2906 = vpop.f32.mrb[0].mxu0
  %2907 = vmatprep.mubr.bf16.mxu0 0
  %2908 = vmatmul.mubr.bf16.gmra.mrb[0].mxu0 %v1184
  %v2909 = vpop.f32.mrb[0].mxu0
  %v2910 = vadd.f32 0.0, %v2909
  %v2911 = vpop.f32.mrb[0].mxu0
  %v2912 = vpop.f32.mrb[0].mxu0
  %v2913 = vadd.f32 0.0, %v2912
  %v2914 = vpop.f32.mrb[0].mxu0
  %2915 = vmatprep.mubr.bf16.mxu0 0
  %2916 = vmatmul.mubr.bf16.gmra.mrb[0].mxu0 %v1187
  %v2917 = vpop.f32.mrb[0].mxu0
  %v2918 = vadd.f32 0.0, %v2917
  %v2919 = vpop.f32.mrb[0].mxu0
  %v2920 = vpop.f32.mrb[0].mxu0
  %v2921 = vadd.f32 0.0, %v2920
  %v2922 = vpop.f32.mrb[0].mxu0
  %2923 = vmatprep.mubr.bf16.mxu0 0
  %2924 = vmatmul.mubr.bf16.gmra.mrb[0].mxu0 %v1190
  %v2925 = vpop.f32.mrb[0].mxu0
  %v2926 = vadd.f32 0.0, %v2925
  %v2927 = vpop.f32.mrb[0].mxu0
  %v2928 = vpop.f32.mrb[0].mxu0
  %v2929 = vadd.f32 0.0, %v2928
  %v2930 = vpop.f32.mrb[0].mxu0
  %2931 = vmatprep.mubr.bf16.mxu0 0
  %2932 = vmatmul.mubr.bf16.gmra.mrb[0].mxu0 %v1193
  %v2933 = vpop.f32.mrb[0].mxu0
  %v2934 = vadd.f32 0.0, %v2933
  %v2935 = vpop.f32.mrb[0].mxu0
  %v2936 = vpop.f32.mrb[0].mxu0
  %v2937 = vadd.f32 0.0, %v2936
  %v2938 = vpop.f32.mrb[0].mxu0
  %2939 = vmatprep.mubr.bf16.mxu0 0
  %2940 = vmatmul.mubr.bf16.gmra.mrb[0].mxu0 %v1196
  %v2941 = vpop.f32.mrb[0].mxu0
  %v2942 = vadd.f32 0.0, %v2941
  %v2943 = vpop.f32.mrb[0].mxu0
  %v2944 = vpop.f32.mrb[0].mxu0
  %v2945 = vadd.f32 0.0, %v2944
  %v2946 = vpop.f32.mrb[0].mxu0
  %2947 = vmatprep.mubr.bf16.mxu0 0
  %2948 = vmatmul.mubr.bf16.gmra.mrb[0].mxu0 %v1199
  %v2949 = vpop.f32.mrb[0].mxu0
  %v2950 = vadd.f32 0.0, %v2949
  %v2951 = vpop.f32.mrb[0].mxu0
  %v2952 = vpop.f32.mrb[0].mxu0
  %v2953 = vadd.f32 0.0, %v2952
  %v2954 = vpop.f32.mrb[0].mxu0
  %2955 = vdwg.mxu0
  %v2956 = vmul.f32 %v2894, %v294
  %v2957 = vmul.f32 %v2897, %v295
  %v2958 = vmul.f32 %v2902, %v296
  %v2959 = vmul.f32 %v2905, %v297
  %v2960 = vmul.f32 %v2910, %v298
  %v2961 = vmul.f32 %v2913, %v299
  %v2962 = vmul.f32 %v2918, %v300
  %v2963 = vmul.f32 %v2921, %v301
  %v2964 = vmul.f32 %v2926, %v302
  %v2965 = vmul.f32 %v2929, %v303
  %v2966 = vmul.f32 %v2934, %v304
  %v2967 = vmul.f32 %v2937, %v305
  %v2968 = vmul.f32 %v2942, %v306
  %v2969 = vmul.f32 %v2945, %v307
  %v2970 = vmul.f32 %v2950, %v308
  %v2971 = vmul.f32 %v2953, %v309
  %v2972 = vpack.c.bf16 %v2605, %v2604
  %v2973 = vpack.c.bf16 %v2607, %v2606
  %v2974 = vpack.c.bf16 %v2842, %v2841
  %v2975 = vpack.c.bf16 %v2844, %v2843
  %v2976 = vpack.c.bf16 %v2846, %v2845
  %v2977 = vpack.c.bf16 %v2848, %v2847
  %v2978 = vpack.c.bf16 %v2850, %v2849
  %v2979 = vpack.c.bf16 %v2852, %v2851
  %v2980 = vpack.c.bf16 %v2854, %v2853
  %v2981 = vpack.c.bf16 %v2856, %v2855
  %v2983 = vsel %vm466, %v2972, 0
  %v2986 = vsel %vm466, %v2973, 0
  %v2989 = vsel %vm466, %v2974, 0
  %v2992 = vsel %vm466, %v2975, 0
  %v2995 = vsel %vm466, %v2976, 0
  %v2998 = vsel %vm466, %v2977, 0
  %v3001 = vsel %vm466, %v2978, 0
  %v3004 = vsel %vm466, %v2979, 0
  %v3007 = vsel %vm466, %v2980, 0
  %v3010 = vsel %vm466, %v2981, 0
  %3012 = vmatprep.subr.bf16.mxu0 0
  %3013 = vmatpush1.bf16.xpose.msra.mxu0 %v2989
  %3014 = vmatprep.subr.bf16.mxu0 0
  %3015 = vmatpush1.bf16.xpose.msra.mxu0 %v2992
  %3016 = vmatprep.subr.bf16.mxu0 0
  %3017 = vmatpush1.bf16.xpose.msra.mxu0 %v2995
  %3018 = vmatprep.subr.bf16.mxu0 0
  %3019 = vmatpush1.bf16.xpose.msra.mxu0 %v2998
  %3020 = vmatprep.subr.bf16.mxu0 0
  %3021 = vmatpush1.bf16.xpose.msra.mxu0 %v3001
  %3022 = vmatprep.subr.bf16.mxu0 0
  %3023 = vmatpush1.bf16.xpose.msra.mxu0 %v3004
  %3024 = vmatprep.subr.bf16.mxu0 0
  %3025 = vmatpush1.bf16.xpose.msra.mxu0 %v3007
  %3026 = vmatprep.subr.bf16.mxu0 0
  %3027 = vmatpush1.bf16.xpose.msra.mxu0 %v3010
  %3028 = vmatprep.subr.bf16.mxu0 0
  %3029 = vmatpush1.bf16.xpose.msra.mxu0 0
  %3030 = vmatprep.subr.bf16.mxu0 0
  %3031 = vmatpush1.bf16.xpose.msra.mxu0 0
  %3032 = vmatprep.subr.bf16.mxu0 0
  %3033 = vmatpush1.bf16.xpose.msra.mxu0 0
  %3034 = vmatprep.subr.bf16.mxu0 0
  %3035 = vmatpush1.bf16.xpose.msra.mxu0 0
  %3036 = vmatprep.subr.bf16.mxu0 0
  %3037 = vmatpush1.bf16.xpose.msra.mxu0 0
  %3038 = vmatprep.subr.bf16.mxu0 0
  %3039 = vmatpush1.bf16.xpose.msra.mxu0 0
  %3040 = vmatprep.subr.bf16.mxu0 0
  %3041 = vmatpush1.bf16.xpose.msra.mxu0 0
  %3042 = vmatprep.subr.bf16.mxu0 0
  %3043 = vmatpush1.bf16.xpose.msra.mxu0 0
  %3044 = vmatprep.mubr.bf16.mxu0 0
  %3045 = vmatmul.mubr.bf16.gmra.mrb[0].mxu0 %v2983
  %v3046 = vpop.f32.mrb[0].mxu0
  %v3047 = vadd.f32 %v274, %v3046
  %v3048 = vpop.f32.mrb[0].mxu0
  %v3049 = vpop.f32.mrb[0].mxu0
  %v3050 = vadd.f32 %v275, %v3049
  %v3051 = vpop.f32.mrb[0].mxu0
  %3052 = vmatprep.mubr.bf16.mxu0 0
  %3053 = vmatmul.mubr.bf16.gmra.mrb[0].mxu0 %v2986
  %v3054 = vpop.f32.mrb[0].mxu0
  %v3055 = vadd.f32 %v276, %v3054
  %v3056 = vpop.f32.mrb[0].mxu0
  %v3057 = vpop.f32.mrb[0].mxu0
  %v3058 = vadd.f32 %v277, %v3057
  %v3059 = vpop.f32.mrb[0].mxu0
  %3060 = vdwg.mxu0
  %v3061 = vmul.f32 %v3047, 1.442695
  %v3062 = vpow.pop %v3061
  %v3063 = vmul.f32 %v3050, 1.442695
  %v3064 = vpow.pop %v3063
  %v3065 = vmul.f32 %v3055, 1.442695
  %v3066 = vpow.pop %v3065
  %v3067 = vmul.f32 %v3058, 1.442695
  %v3068 = vpow.pop %v3067
  %v3069 = vpack.c.bf16 %v3064, %v3062
  %v3070 = vpack.c.bf16 %v3068, %v3066
  %3071 = vmatprep.subr.bf16.mxu0 0
  %3072 = vmatpush1.bf16.msra.mxu0 %v1560
  %3073 = vmatprep.subr.bf16.mxu0 0
  %3074 = vmatpush1.bf16.msra.mxu0 %v1561
  %3075 = vmatprep.subr.bf16.mxu0 0
  %3076 = vmatpush1.bf16.msra.mxu0 %v1562
  %3077 = vmatprep.subr.bf16.mxu0 0
  %3078 = vmatpush1.bf16.msra.mxu0 %v1563
  %3079 = vmatprep.subr.bf16.mxu0 0
  %3080 = vmatpush1.bf16.msra.mxu0 %v1564
  %3081 = vmatprep.subr.bf16.mxu0 0
  %3082 = vmatpush1.bf16.msra.mxu0 %v1565
  %3083 = vmatprep.subr.bf16.mxu0 0
  %3084 = vmatpush1.bf16.msra.mxu0 %v1566
  %3085 = vmatprep.subr.bf16.mxu0 0
  %3086 = vmatpush1.bf16.msra.mxu0 %v1567
  %3087 = vmatprep.subr.bf16.mxu0 0
  %3088 = vmatpush1.bf16.msra.mxu0 0
  %3089 = vmatprep.subr.bf16.mxu0 0
  %3090 = vmatpush1.bf16.msra.mxu0 0
  %3091 = vmatprep.subr.bf16.mxu0 0
  %3092 = vmatpush1.bf16.msra.mxu0 0
  %3093 = vmatprep.subr.bf16.mxu0 0
  %3094 = vmatpush1.bf16.msra.mxu0 0
  %3095 = vmatprep.subr.bf16.mxu0 0
  %3096 = vmatpush1.bf16.msra.mxu0 0
  %3097 = vmatprep.subr.bf16.mxu0 0
  %3098 = vmatpush1.bf16.msra.mxu0 0
  %3099 = vmatprep.subr.bf16.mxu0 0
  %3100 = vmatpush1.bf16.msra.mxu0 0
  %3101 = vmatprep.subr.bf16.mxu0 0
  %3102 = vmatpush1.bf16.msra.mxu0 0
  %3103 = vmatprep.mubr.bf16.mxu0 0
  %3104 = vmatmul.mubr.bf16.gmra.mrb[0].mxu0 %v3069
  %v3105 = vpop.f32.mrb[0].mxu0
  %v3106 = vadd.f32 1e-20, %v3105
  %v3107 = vpop.f32.mrb[0].mxu0
  %v3108 = vpop.f32.mrb[0].mxu0
  %v3109 = vadd.f32 1e-20, %v3108
  %v3110 = vpop.f32.mrb[0].mxu0
  %3111 = vmatprep.mubr.bf16.mxu0 0
  %3112 = vmatmul.mubr.bf16.gmra.mrb[0].mxu0 %v3070
  %v3113 = vpop.f32.mrb[0].mxu0
  %v3114 = vadd.f32 1e-20, %v3113
  %v3115 = vpop.f32.mrb[0].mxu0
  %v3116 = vpop.f32.mrb[0].mxu0
  %v3117 = vadd.f32 1e-20, %v3116
  %v3118 = vpop.f32.mrb[0].mxu0
  %3119 = vdwg.mxu0
  %v3120 = vrcp.pop %v3106
  %v3121 = vrcp.pop %v3109
  %v3122 = vrcp.pop %v3114
  %v3123 = vrcp.pop %v3117
  %v3124 = vmul.f32 %v3062, %v3120
  %v3125 = vmul.f32 %v3064, %v3121
  %v3126 = vmul.f32 %v3066, %v3122
  %v3127 = vmul.f32 %v3068, %v3123
  %v3128 = vpack.c.bf16 %v3125, %v3124
  %v3129 = vpack.c.bf16 %v3127, %v3126
  %v3130 = vpack.c.bf16 %v2957, %v2956
  %v3131 = vpack.c.bf16 %v2959, %v2958
  %v3132 = vpack.c.bf16 %v2961, %v2960
  %v3133 = vpack.c.bf16 %v2963, %v2962
  %v3134 = vpack.c.bf16 %v2965, %v2964
  %v3135 = vpack.c.bf16 %v2967, %v2966
  %v3136 = vpack.c.bf16 %v2969, %v2968
  %v3137 = vpack.c.bf16 %v2971, %v2970
  %3138 = vmatprep.subr.bf16.mxu0 0
  %3139 = vmatpush1.bf16.msra.mxu0 %v3130
  %3140 = vmatprep.subr.bf16.mxu0 0
  %3141 = vmatpush1.bf16.msra.mxu0 %v3131
  %3142 = vmatprep.subr.bf16.mxu0 0
  %3143 = vmatpush1.bf16.msra.mxu0 %v3132
  %3144 = vmatprep.subr.bf16.mxu0 0
  %3145 = vmatpush1.bf16.msra.mxu0 %v3133
  %3146 = vmatprep.subr.bf16.mxu0 0
  %3147 = vmatpush1.bf16.msra.mxu0 %v3134
  %3148 = vmatprep.subr.bf16.mxu0 0
  %3149 = vmatpush1.bf16.msra.mxu0 %v3135
  %3150 = vmatprep.subr.bf16.mxu0 0
  %3151 = vmatpush1.bf16.msra.mxu0 %v3136
  %3152 = vmatprep.subr.bf16.mxu0 0
  %3153 = vmatpush1.bf16.msra.mxu0 %v3137
  %3154 = vmatprep.subr.bf16.mxu0 0
  %3155 = vmatpush1.bf16.msra.mxu0 0
  %3156 = vmatprep.subr.bf16.mxu0 0
  %3157 = vmatpush1.bf16.msra.mxu0 0
  %3158 = vmatprep.subr.bf16.mxu0 0
  %3159 = vmatpush1.bf16.msra.mxu0 0
  %3160 = vmatprep.subr.bf16.mxu0 0
  %3161 = vmatpush1.bf16.msra.mxu0 0
  %3162 = vmatprep.subr.bf16.mxu0 0
  %3163 = vmatpush1.bf16.msra.mxu0 0
  %3164 = vmatprep.subr.bf16.mxu0 0
  %3165 = vmatpush1.bf16.msra.mxu0 0
  %3166 = vmatprep.subr.bf16.mxu0 0
  %3167 = vmatpush1.bf16.msra.mxu0 0
  %3168 = vmatprep.subr.bf16.mxu0 0
  %3169 = vmatpush1.bf16.msra.mxu0 0
  %3170 = vmatprep.mubr.bf16.mxu0 0
  %3171 = vmatmul.mubr.bf16.gmra.mrb[0].mxu0 %v3128
  %v3172 = vpop.f32.mrb[0].mxu0
  %v3173 = vadd.f32 0.0, %v3172
  %v3174 = vpop.f32.mrb[0].mxu0
  %v3175 = vpop.f32.mrb[0].mxu0
  %v3176 = vadd.f32 0.0, %v3175
  %v3177 = vpop.f32.mrb[0].mxu0
  %3178 = vmatprep.mubr.bf16.mxu0 0
  %3179 = vmatmul.mubr.bf16.gmra.mrb[0].mxu0 %v3129
  %v3180 = vpop.f32.mrb[0].mxu0
  %v3181 = vadd.f32 0.0, %v3180
  %v3182 = vpop.f32.mrb[0].mxu0
  %v3183 = vpop.f32.mrb[0].mxu0
  %v3184 = vadd.f32 0.0, %v3183
  %v3185 = vpop.f32.mrb[0].mxu0
  %3186 = vdwg.mxu0
  %v3187 = vpack.c.bf16 %v3176, %v3173
  %v3188 = vpack.c.bf16 %v3184, %v3181
  %v3190 = vlaneseq
  %v3191 = vshrl.u32 %v3190, 7
  %v3192 = vsub.s32 0, %v3191
  %v3193 = vrot.slane %v235, %v3192
  %v3199 = vunpack.c.l.b16 %v230
  %v3200 = vunpack.c.l.b16 %v231
  %v3201 = vunpack.c.l.b16 %v232
  %v3202 = vunpack.c.l.b16 %v233
  %v3203 = vpack.c.b16 %v3200, %v3199
  %v3204 = vpack.c.b16 %v3202, %v3201
  %v3208 = vsel %vm466, %v3187, 0
  %v3211 = vsel %vm466, %v3188, 0
  %3213 = vmatprep.subr.bf16.mxu0 0
  %3214 = vmatpush1.bf16.msra.mxu0 %v3203
  %3215 = vmatprep.subr.bf16.mxu0 0
  %3216 = vmatpush1.bf16.msra.mxu0 %v3204
  %3217 = vmatprep.subr.bf16.mxu0 0
  %3218 = vmatpush1.bf16.msra.mxu0 0
  %3219 = vmatprep.subr.bf16.mxu0 0
  %3220 = vmatpush1.bf16.msra.mxu0 0
  %3221 = vmatprep.subr.bf16.mxu0 0
  %3222 = vmatpush1.bf16.msra.mxu0 0
  %3223 = vmatprep.subr.bf16.mxu0 0
  %3224 = vmatpush1.bf16.msra.mxu0 0
  %3225 = vmatprep.subr.bf16.mxu0 0
  %3226 = vmatpush1.bf16.msra.mxu0 0
  %3227 = vmatprep.subr.bf16.mxu0 0
  %3228 = vmatpush1.bf16.msra.mxu0 0
  %3229 = vmatprep.subr.bf16.mxu0 0
  %3230 = vmatpush1.bf16.msra.mxu0 0
  %3231 = vmatprep.subr.bf16.mxu0 0
  %3232 = vmatpush1.bf16.msra.mxu0 0
  %3233 = vmatprep.subr.bf16.mxu0 0
  %3234 = vmatpush1.bf16.msra.mxu0 0
  %3235 = vmatprep.subr.bf16.mxu0 0
  %3236 = vmatpush1.bf16.msra.mxu0 0
  %3237 = vmatprep.subr.bf16.mxu0 0
  %3238 = vmatpush1.bf16.msra.mxu0 0
  %3239 = vmatprep.subr.bf16.mxu0 0
  %3240 = vmatpush1.bf16.msra.mxu0 0
  %3241 = vmatprep.subr.bf16.mxu0 0
  %3242 = vmatpush1.bf16.msra.mxu0 0
  %3243 = vmatprep.subr.bf16.mxu0 0
  %3244 = vmatpush1.bf16.msra.mxu0 0
  %3245 = vmatprep.mubr.bf16.mxu0 0
  %3246 = vmatmul.mubr.bf16.gmra.mrb[0].mxu0 %v3208
  %v3247 = vpop.f32.mrb[0].mxu0
  %v3248 = vadd.f32 %v3193, %v3247
  %v3249 = vpop.f32.mrb[0].mxu0
  %v3250 = vpop.f32.mrb[0].mxu0
  %v3251 = vadd.f32 %v3193, %v3250
  %v3252 = vpop.f32.mrb[0].mxu0
  %3253 = vmatprep.mubr.bf16.mxu0 0
  %3254 = vmatmul.mubr.bf16.gmra.mrb[0].mxu0 %v3211
  %v3255 = vpop.f32.mrb[0].mxu0
  %v3256 = vadd.f32 %v3193, %v3255
  %v3257 = vpop.f32.mrb[0].mxu0
  %v3258 = vpop.f32.mrb[0].mxu0
  %v3259 = vadd.f32 %v3193, %v3258
  %v3260 = vpop.f32.mrb[0].mxu0
  %3261 = vdwg.mxu0
  %v3262 = vmul.f32 %v3248, %v2116
  %v3263 = vmul.f32 %v3251, %v2119
  %v3264 = vmul.f32 %v3256, %v2124
  %v3265 = vmul.f32 %v3259, %v2127
  %v3266 = vadd.f32 %v2059, %v3262
  %v3267 = vadd.f32 %v2060, %v3263
  %v3268 = vadd.f32 %v2061, %v3264
  %v3269 = vadd.f32 %v2062, %v3265
  %v3270 = vsel %vm466, %v3266, 0.0
  %3271 = vadd.xlane.f32.xlu0 %v3270
  %v3272 = vpop.xlane.xlu0 %3271
  %v3273 = vsel %vm466, %v3267, 0.0
  %3274 = vadd.xlane.f32.xlu0 %v3273
  %v3275 = vpop.xlane.xlu0 %3274
  %v3276 = vsel %vm466, %v3268, 0.0
  %3277 = vadd.xlane.f32.xlu0 %v3276
  %v3278 = vpop.xlane.xlu0 %3277
  %v3279 = vsel %vm466, %v3269, 0.0
  %3280 = vadd.xlane.f32.xlu0 %v3279
  %v3281 = vpop.xlane.xlu0 %3280
  %v3282 = vmul.f32 %v3272, %v869
  %v3283 = vmul.f32 %v3275, %v869
  %v3284 = vmul.f32 %v3278, %v869
  %v3285 = vmul.f32 %v3281, %v869
  %v3286 = vsub.f32 %v3266, %v3282
  %v3287 = vsub.f32 %v3267, %v3283
  %v3288 = vsub.f32 %v3268, %v3284
  %v3289 = vsub.f32 %v3269, %v3285
  %v3290 = vmul.f32 %v3286, %v3286
  %v3291 = vmul.f32 %v3287, %v3287
  %v3292 = vmul.f32 %v3288, %v3288
  %v3293 = vmul.f32 %v3289, %v3289
  %v3294 = vsel %vm466, %v3290, 0.0
  %3295 = vadd.xlane.f32.xlu0 %v3294
  %v3296 = vpop.xlane.xlu0 %3295
  %v3297 = vsel %vm466, %v3291, 0.0
  %3298 = vadd.xlane.f32.xlu0 %v3297
  %v3299 = vpop.xlane.xlu0 %3298
  %v3300 = vsel %vm466, %v3292, 0.0
  %3301 = vadd.xlane.f32.xlu0 %v3300
  %v3302 = vpop.xlane.xlu0 %3301
  %v3303 = vsel %vm466, %v3293, 0.0
  %3304 = vadd.xlane.f32.xlu0 %v3303
  %v3305 = vpop.xlane.xlu0 %3304
  %v3306 = vmul.f32 %v3296, %v869
  %v3307 = vmul.f32 %v3299, %v869
  %v3308 = vmul.f32 %v3302, %v869
  %v3309 = vmul.f32 %v3305, %v869
  %v3310 = vadd.f32 %v3306, 1e-06
  %v3311 = vadd.f32 %v3307, 1e-06
  %v3312 = vadd.f32 %v3308, 1e-06
  %v3313 = vadd.f32 %v3309, 1e-06
  %v3314 = vrsqrt.pop %v3310
  %v3315 = vrsqrt.pop %v3311
  %v3316 = vrsqrt.pop %v3312
  %v3317 = vrsqrt.pop %v3313
  %v3318 = vmul.f32 %v3286, %v3314
  %v3319 = vmul.f32 %v3287, %v3315
  %v3320 = vmul.f32 %v3288, %v3316
  %v3321 = vmul.f32 %v3289, %v3317
  %v3322 = vadd.f32 %v2317, 1.0
  %v3323 = vadd.f32 %v2320, 1.0
  %v3324 = vadd.f32 %v2325, 1.0
  %v3325 = vadd.f32 %v2328, 1.0
  %v3326 = vmul.f32 %v3318, %v3322
  %v3327 = vmul.f32 %v3319, %v3323
  %v3328 = vmul.f32 %v3320, %v3324
  %v3329 = vmul.f32 %v3321, %v3325
  %v3330 = vadd.f32 %v3326, %v2451
  %v3331 = vadd.f32 %v3327, %v2454
  %v3332 = vadd.f32 %v3328, %v2459
  %v3333 = vadd.f32 %v3329, %v2462
  %v3334 = vpack.c.bf16 %v3331, %v3330
  %v3335 = vpack.c.bf16 %v3333, %v3332
  %v3337 = vlaneseq
  %v3338 = vshrl.u32 %v3337, 7
  %v3339 = vsub.s32 0, %v3338
  %v3340 = vrot.slane %v242, %v3339
  %v3346 = vunpack.c.l.b16 %v237
  %v3347 = vunpack.c.l.b16 %v238
  %v3348 = vunpack.c.l.b16 %v239
  %v3349 = vunpack.c.l.b16 %v240
  %v3350 = vpack.c.b16 %v3347, %v3346
  %v3351 = vpack.c.b16 %v3349, %v3348
  %v3355 = vsel %vm466, %v3334, 0
  %v3358 = vsel %vm466, %v3335, 0
  %3360 = vmatprep.subr.bf16.mxu0 0
  %3361 = vmatpush1.bf16.msra.mxu0 %v3350
  %3362 = vmatprep.subr.bf16.mxu0 0
  %3363 = vmatpush1.bf16.msra.mxu0 %v3351
  %3364 = vmatprep.subr.bf16.mxu0 0
  %3365 = vmatpush1.bf16.msra.mxu0 0
  %3366 = vmatprep.subr.bf16.mxu0 0
  %3367 = vmatpush1.bf16.msra.mxu0 0
  %3368 = vmatprep.subr.bf16.mxu0 0
  %3369 = vmatpush1.bf16.msra.mxu0 0
  %3370 = vmatprep.subr.bf16.mxu0 0
  %3371 = vmatpush1.bf16.msra.mxu0 0
  %3372 = vmatprep.subr.bf16.mxu0 0
  %3373 = vmatpush1.bf16.msra.mxu0 0
  %3374 = vmatprep.subr.bf16.mxu0 0
  %3375 = vmatpush1.bf16.msra.mxu0 0
  %3376 = vmatprep.subr.bf16.mxu0 0
  %3377 = vmatpush1.bf16.msra.mxu0 0
  %3378 = vmatprep.subr.bf16.mxu0 0
  %3379 = vmatpush1.bf16.msra.mxu0 0
  %3380 = vmatprep.subr.bf16.mxu0 0
  %3381 = vmatpush1.bf16.msra.mxu0 0
  %3382 = vmatprep.subr.bf16.mxu0 0
  %3383 = vmatpush1.bf16.msra.mxu0 0
  %3384 = vmatprep.subr.bf16.mxu0 0
  %3385 = vmatpush1.bf16.msra.mxu0 0
  %3386 = vmatprep.subr.bf16.mxu0 0
  %3387 = vmatpush1.bf16.msra.mxu0 0
  %3388 = vmatprep.subr.bf16.mxu0 0
  %3389 = vmatpush1.bf16.msra.mxu0 0
  %3390 = vmatprep.subr.bf16.mxu0 0
  %3391 = vmatpush1.bf16.msra.mxu0 0
  %3392 = vmatprep.mubr.bf16.mxu0 0
  %3393 = vmatmul.mubr.bf16.gmra.mrb[0].mxu0 %v3355
  %v3394 = vpop.f32.mrb[0].mxu0
  %v3395 = vadd.f32 %v3340, %v3394
  %v3396 = vpop.f32.mrb[0].mxu0
  %v3397 = vpop.f32.mrb[0].mxu0
  %v3398 = vadd.f32 %v3340, %v3397
  %v3399 = vpop.f32.mrb[0].mxu0
  %3400 = vmatprep.mubr.bf16.mxu0 0
  %3401 = vmatmul.mubr.bf16.gmra.mrb[0].mxu0 %v3358
  %v3402 = vpop.f32.mrb[0].mxu0
  %v3403 = vadd.f32 %v3340, %v3402
  %v3404 = vpop.f32.mrb[0].mxu0
  %v3405 = vpop.f32.mrb[0].mxu0
  %v3406 = vadd.f32 %v3340, %v3405
  %v3407 = vpop.f32.mrb[0].mxu0
  %3408 = vdwg.mxu0
  %v3409 = vmul.f32 %v3395, %v3395
  %v3410 = vmul.f32 %v3398, %v3398
  %v3411 = vmul.f32 %v3403, %v3403
  %v3412 = vmul.f32 %v3406, %v3406
  %v3413 = vmul.f32 %v3395, %v3409
  %v3414 = vmul.f32 %v3398, %v3410
  %v3415 = vmul.f32 %v3403, %v3411
  %v3416 = vmul.f32 %v3406, %v3412
  %v3417 = vmul.f32 %v3413, 0.044715
  %v3418 = vmul.f32 %v3414, 0.044715
  %v3419 = vmul.f32 %v3415, 0.044715
  %v3420 = vmul.f32 %v3416, 0.044715
  %v3421 = vadd.f32 %v3395, %v3417
  %v3422 = vadd.f32 %v3398, %v3418
  %v3423 = vadd.f32 %v3403, %v3419
  %v3424 = vadd.f32 %v3406, %v3420
  %v3425 = vmul.f32 %v3421, 0.7978846
  %v3426 = vmul.f32 %v3422, 0.7978846
  %v3427 = vmul.f32 %v3423, 0.7978846
  %v3428 = vmul.f32 %v3424, 0.7978846
  %v3429 = vtanh.pop %v3425
  %v3430 = vtanh.pop %v3426
  %v3431 = vtanh.pop %v3427
  %v3432 = vtanh.pop %v3428
  %v3433 = vadd.f32 %v3429, 1.0
  %v3434 = vadd.f32 %v3430, 1.0
  %v3435 = vadd.f32 %v3431, 1.0
  %v3436 = vadd.f32 %v3432, 1.0
  %v3437 = vmul.f32 %v3433, 0.5
  %v3438 = vmul.f32 %v3434, 0.5
  %v3439 = vmul.f32 %v3435, 0.5
  %v3440 = vmul.f32 %v3436, 0.5
  %v3441 = vmul.f32 %v3395, %v3437
  %v3442 = vmul.f32 %v3398, %v3438
  %v3443 = vmul.f32 %v3403, %v3439
  %v3444 = vmul.f32 %v3406, %v3440
  %v3445 = vpack.c.bf16 %v3442, %v3441
  %v3446 = vpack.c.bf16 %v3444, %v3443
  %v3448 = vlaneseq
  %v3449 = vshrl.u32 %v3448, 7
  %v3450 = vsub.s32 0, %v3449
  %v3451 = vrot.slane %v261, %v3450
  %v3469 = vunpack.c.l.b16 %v244
  %v3470 = vunpack.c.l.b16 %v245
  %v3471 = vunpack.c.l.b16 %v246
  %v3472 = vunpack.c.l.b16 %v247
  %v3473 = vunpack.c.l.b16 %v248
  %v3474 = vunpack.c.l.b16 %v249
  %v3475 = vunpack.c.l.b16 %v250
  %v3476 = vunpack.c.l.b16 %v251
  %v3477 = vunpack.c.l.b16 %v252
  %v3478 = vunpack.c.l.b16 %v253
  %v3479 = vunpack.c.l.b16 %v254
  %v3480 = vunpack.c.l.b16 %v255
  %v3481 = vunpack.c.l.b16 %v256
  %v3482 = vunpack.c.l.b16 %v257
  %v3483 = vunpack.c.l.b16 %v258
  %v3484 = vunpack.c.l.b16 %v259
  %v3485 = vpack.c.b16 %v3470, %v3469
  %v3486 = vpack.c.b16 %v3472, %v3471
  %v3487 = vpack.c.b16 %v3474, %v3473
  %v3488 = vpack.c.b16 %v3476, %v3475
  %v3489 = vpack.c.b16 %v3478, %v3477
  %v3490 = vpack.c.b16 %v3480, %v3479
  %v3491 = vpack.c.b16 %v3482, %v3481
  %v3492 = vpack.c.b16 %v3484, %v3483
  %3501 = vmatprep.subr.bf16.mxu0 0
  %3502 = vmatpush1.bf16.msra.mxu0 %v3485
  %3503 = vmatprep.subr.bf16.mxu0 0
  %3504 = vmatpush1.bf16.msra.mxu0 %v3486
  %3505 = vmatprep.subr.bf16.mxu0 0
  %3506 = vmatpush1.bf16.msra.mxu0 %v3487
  %3507 = vmatprep.subr.bf16.mxu0 0
  %3508 = vmatpush1.bf16.msra.mxu0 %v3488
  %3509 = vmatprep.subr.bf16.mxu0 0
  %3510 = vmatpush1.bf16.msra.mxu0 %v3489
  %3511 = vmatprep.subr.bf16.mxu0 0
  %3512 = vmatpush1.bf16.msra.mxu0 %v3490
  %3513 = vmatprep.subr.bf16.mxu0 0
  %3514 = vmatpush1.bf16.msra.mxu0 %v3491
  %3515 = vmatprep.subr.bf16.mxu0 0
  %3516 = vmatpush1.bf16.msra.mxu0 %v3492
  %3517 = vmatprep.subr.bf16.mxu0 0
  %3518 = vmatpush1.bf16.msra.mxu0 0
  %3519 = vmatprep.subr.bf16.mxu0 0
  %3520 = vmatpush1.bf16.msra.mxu0 0
  %3521 = vmatprep.subr.bf16.mxu0 0
  %3522 = vmatpush1.bf16.msra.mxu0 0
  %3523 = vmatprep.subr.bf16.mxu0 0
  %3524 = vmatpush1.bf16.msra.mxu0 0
  %3525 = vmatprep.subr.bf16.mxu0 0
  %3526 = vmatpush1.bf16.msra.mxu0 0
  %3527 = vmatprep.subr.bf16.mxu0 0
  %3528 = vmatpush1.bf16.msra.mxu0 0
  %3529 = vmatprep.subr.bf16.mxu0 0
  %3530 = vmatpush1.bf16.msra.mxu0 0
  %3531 = vmatprep.subr.bf16.mxu0 0
  %3532 = vmatpush1.bf16.msra.mxu0 0
  %3533 = vmatprep.mubr.bf16.mxu0 0
  %3534 = vmatmul.mubr.bf16.gmra.mrb[0].mxu0 %v3445
  %v3535 = vpop.f32.mrb[0].mxu0
  %v3536 = vadd.f32 %v3451, %v3535
  %v3537 = vpop.f32.mrb[0].mxu0
  %v3538 = vpop.f32.mrb[0].mxu0
  %v3539 = vadd.f32 %v3451, %v3538
  %v3540 = vpop.f32.mrb[0].mxu0
  %3541 = vmatprep.mubr.bf16.mxu0 0
  %3542 = vmatmul.mubr.bf16.gmra.mrb[0].mxu0 %v3446
  %v3543 = vpop.f32.mrb[0].mxu0
  %v3544 = vadd.f32 %v3451, %v3543
  %v3545 = vpop.f32.mrb[0].mxu0
  %v3546 = vpop.f32.mrb[0].mxu0
  %v3547 = vadd.f32 %v3451, %v3546
  %v3548 = vpop.f32.mrb[0].mxu0
  %3549 = vdwg.mxu0
  %v3550 = vmul.f32 %v3536, %v2183
  %v3551 = vmul.f32 %v3539, %v2186
  %v3552 = vmul.f32 %v3544, %v2191
  %v3553 = vmul.f32 %v3547, %v2194
  %v3554 = vadd.f32 %v3266, %v3550
  %v3555 = vadd.f32 %v3267, %v3551
  %v3556 = vadd.f32 %v3268, %v3552
  %v3557 = vadd.f32 %v3269, %v3553
  %v3559 = vlaneseq
  %v3560 = vshrl.u32 %v3559, 7
  %v3561 = vsub.s32 0, %v3560
  %v3562 = vrot.slane %v336, %v3561
  %v3568 = vunpack.c.l.b16 %v327
  %v3569 = vunpack.c.l.b16 %v328
  %v3570 = vunpack.c.l.b16 %v329
  %v3571 = vunpack.c.l.b16 %v330
  %v3572 = vpack.c.b16 %v3569, %v3568
  %v3573 = vpack.c.b16 %v3571, %v3570
  %3576 = vmatprep.subr.bf16.mxu0 0
  %3577 = vmatpush1.bf16.msra.mxu0 %v3572
  %3578 = vmatprep.subr.bf16.mxu0 0
  %3579 = vmatpush1.bf16.msra.mxu0 %v3573
  %3580 = vmatprep.subr.bf16.mxu0 0
  %3581 = vmatpush1.bf16.msra.mxu0 0
  %3582 = vmatprep.subr.bf16.mxu0 0
  %3583 = vmatpush1.bf16.msra.mxu0 0
  %3584 = vmatprep.subr.bf16.mxu0 0
  %3585 = vmatpush1.bf16.msra.mxu0 0
  %3586 = vmatprep.subr.bf16.mxu0 0
  %3587 = vmatpush1.bf16.msra.mxu0 0
  %3588 = vmatprep.subr.bf16.mxu0 0
  %3589 = vmatpush1.bf16.msra.mxu0 0
  %3590 = vmatprep.subr.bf16.mxu0 0
  %3591 = vmatpush1.bf16.msra.mxu0 0
  %3592 = vmatprep.subr.bf16.mxu0 0
  %3593 = vmatpush1.bf16.msra.mxu0 0
  %3594 = vmatprep.subr.bf16.mxu0 0
  %3595 = vmatpush1.bf16.msra.mxu0 0
  %3596 = vmatprep.subr.bf16.mxu0 0
  %3597 = vmatpush1.bf16.msra.mxu0 0
  %3598 = vmatprep.subr.bf16.mxu0 0
  %3599 = vmatpush1.bf16.msra.mxu0 0
  %3600 = vmatprep.subr.bf16.mxu0 0
  %3601 = vmatpush1.bf16.msra.mxu0 0
  %3602 = vmatprep.subr.bf16.mxu0 0
  %3603 = vmatpush1.bf16.msra.mxu0 0
  %3604 = vmatprep.subr.bf16.mxu0 0
  %3605 = vmatpush1.bf16.msra.mxu0 0
  %3606 = vmatprep.subr.bf16.mxu0 0
  %3607 = vmatpush1.bf16.msra.mxu0 0
  %3608 = vmatprep.mubr.bf16.mxu0 0
  %3609 = vmatmul.mubr.bf16.gmra.mrb[0].mxu0 %v468
  %v3610 = vpop.f32.mrb[0].mxu0
  %v3611 = vadd.f32 %v3562, %v3610
  %v3612 = vpop.f32.mrb[0].mxu0
  %v3613 = vpop.f32.mrb[0].mxu0
  %v3614 = vadd.f32 %v3562, %v3613
  %v3615 = vpop.f32.mrb[0].mxu0
  %3616 = vmatprep.mubr.bf16.mxu0 0
  %3617 = vmatmul.mubr.bf16.gmra.mrb[0].mxu0 %v471
  %v3618 = vpop.f32.mrb[0].mxu0
  %v3619 = vadd.f32 %v3562, %v3618
  %v3620 = vpop.f32.mrb[0].mxu0
  %v3621 = vpop.f32.mrb[0].mxu0
  %v3622 = vadd.f32 %v3562, %v3621
  %v3623 = vpop.f32.mrb[0].mxu0
  %3624 = vdwg.mxu0
  %v3626 = vlaneseq
  %v3627 = vshrl.u32 %v3626, 7
  %v3628 = vsub.s32 0, %v3627
  %v3629 = vrot.slane %v338, %v3628
  %v3635 = vunpack.c.l.b16 %v332
  %v3636 = vunpack.c.l.b16 %v333
  %v3637 = vunpack.c.l.b16 %v334
  %v3638 = vunpack.c.l.b16 %v335
  %v3639 = vpack.c.b16 %v3636, %v3635
  %v3640 = vpack.c.b16 %v3638, %v3637
  %3643 = vmatprep.subr.bf16.mxu0 0
  %3644 = vmatpush1.bf16.msra.mxu0 %v3639
  %3645 = vmatprep.subr.bf16.mxu0 0
  %3646 = vmatpush1.bf16.msra.mxu0 %v3640
  %3647 = vmatprep.subr.bf16.mxu0 0
  %3648 = vmatpush1.bf16.msra.mxu0 0
  %3649 = vmatprep.subr.bf16.mxu0 0
  %3650 = vmatpush1.bf16.msra.mxu0 0
  %3651 = vmatprep.subr.bf16.mxu0 0
  %3652 = vmatpush1.bf16.msra.mxu0 0
  %3653 = vmatprep.subr.bf16.mxu0 0
  %3654 = vmatpush1.bf16.msra.mxu0 0
  %3655 = vmatprep.subr.bf16.mxu0 0
  %3656 = vmatpush1.bf16.msra.mxu0 0
  %3657 = vmatprep.subr.bf16.mxu0 0
  %3658 = vmatpush1.bf16.msra.mxu0 0
  %3659 = vmatprep.subr.bf16.mxu0 0
  %3660 = vmatpush1.bf16.msra.mxu0 0
  %3661 = vmatprep.subr.bf16.mxu0 0
  %3662 = vmatpush1.bf16.msra.mxu0 0
  %3663 = vmatprep.subr.bf16.mxu0 0
  %3664 = vmatpush1.bf16.msra.mxu0 0
  %3665 = vmatprep.subr.bf16.mxu0 0
  %3666 = vmatpush1.bf16.msra.mxu0 0
  %3667 = vmatprep.subr.bf16.mxu0 0
  %3668 = vmatpush1.bf16.msra.mxu0 0
  %3669 = vmatprep.subr.bf16.mxu0 0
  %3670 = vmatpush1.bf16.msra.mxu0 0
  %3671 = vmatprep.subr.bf16.mxu0 0
  %3672 = vmatpush1.bf16.msra.mxu0 0
  %3673 = vmatprep.subr.bf16.mxu0 0
  %3674 = vmatpush1.bf16.msra.mxu0 0
  %3675 = vmatprep.mubr.bf16.mxu0 0
  %3676 = vmatmul.mubr.bf16.gmra.mrb[0].mxu0 %v468
  %v3677 = vpop.f32.mrb[0].mxu0
  %v3678 = vadd.f32 %v3629, %v3677
  %v3679 = vpop.f32.mrb[0].mxu0
  %v3680 = vpop.f32.mrb[0].mxu0
  %v3681 = vadd.f32 %v3629, %v3680
  %v3682 = vpop.f32.mrb[0].mxu0
  %3683 = vmatprep.mubr.bf16.mxu0 0
  %3684 = vmatmul.mubr.bf16.gmra.mrb[0].mxu0 %v471
  %v3685 = vpop.f32.mrb[0].mxu0
  %v3686 = vadd.f32 %v3629, %v3685
  %v3687 = vpop.f32.mrb[0].mxu0
  %v3688 = vpop.f32.mrb[0].mxu0
  %v3689 = vadd.f32 %v3629, %v3688
  %v3690 = vpop.f32.mrb[0].mxu0
  %3691 = vdwg.mxu0
  %v3692 = vsel %vm466, %v3554, 0.0
  %3693 = vadd.xlane.f32.xlu0 %v3692
  %v3694 = vpop.xlane.xlu0 %3693
  %v3695 = vsel %vm466, %v3555, 0.0
  %3696 = vadd.xlane.f32.xlu0 %v3695
  %v3697 = vpop.xlane.xlu0 %3696
  %v3698 = vsel %vm466, %v3556, 0.0
  %3699 = vadd.xlane.f32.xlu0 %v3698
  %v3700 = vpop.xlane.xlu0 %3699
  %v3701 = vsel %vm466, %v3557, 0.0
  %3702 = vadd.xlane.f32.xlu0 %v3701
  %v3703 = vpop.xlane.xlu0 %3702
  %v3704 = vmul.f32 %v3694, %v869
  %v3705 = vmul.f32 %v3697, %v869
  %v3706 = vmul.f32 %v3700, %v869
  %v3707 = vmul.f32 %v3703, %v869
  %v3708 = vsub.f32 %v3554, %v3704
  %v3709 = vsub.f32 %v3555, %v3705
  %v3710 = vsub.f32 %v3556, %v3706
  %v3711 = vsub.f32 %v3557, %v3707
  %v3712 = vmul.f32 %v3708, %v3708
  %v3713 = vmul.f32 %v3709, %v3709
  %v3714 = vmul.f32 %v3710, %v3710
  %v3715 = vmul.f32 %v3711, %v3711
  %v3716 = vsel %vm466, %v3712, 0.0
  %3717 = vadd.xlane.f32.xlu0 %v3716
  %v3718 = vpop.xlane.xlu0 %3717
  %v3719 = vsel %vm466, %v3713, 0.0
  %3720 = vadd.xlane.f32.xlu0 %v3719
  %v3721 = vpop.xlane.xlu0 %3720
  %v3722 = vsel %vm466, %v3714, 0.0
  %3723 = vadd.xlane.f32.xlu0 %v3722
  %v3724 = vpop.xlane.xlu0 %3723
  %v3725 = vsel %vm466, %v3715, 0.0
  %3726 = vadd.xlane.f32.xlu0 %v3725
  %v3727 = vpop.xlane.xlu0 %3726
  %v3728 = vmul.f32 %v3718, %v869
  %v3729 = vmul.f32 %v3721, %v869
  %v3730 = vmul.f32 %v3724, %v869
  %v3731 = vmul.f32 %v3727, %v869
  %v3732 = vadd.f32 %v3728, 1e-06
  %v3733 = vadd.f32 %v3729, 1e-06
  %v3734 = vadd.f32 %v3730, 1e-06
  %v3735 = vadd.f32 %v3731, 1e-06
  %v3736 = vrsqrt.pop %v3732
  %v3737 = vrsqrt.pop %v3733
  %v3738 = vrsqrt.pop %v3734
  %v3739 = vrsqrt.pop %v3735
  %v3740 = vmul.f32 %v3708, %v3736
  %v3741 = vmul.f32 %v3709, %v3737
  %v3742 = vmul.f32 %v3710, %v3738
  %v3743 = vmul.f32 %v3711, %v3739
  %v3744 = vadd.f32 %v3611, 1.0
  %v3745 = vadd.f32 %v3614, 1.0
  %v3746 = vadd.f32 %v3619, 1.0
  %v3747 = vadd.f32 %v3622, 1.0
  %v3748 = vmul.f32 %v3740, %v3744
  %v3749 = vmul.f32 %v3741, %v3745
  %v3750 = vmul.f32 %v3742, %v3746
  %v3751 = vmul.f32 %v3743, %v3747
  %v3752 = vadd.f32 %v3748, %v3678
  %v3753 = vadd.f32 %v3749, %v3681
  %v3754 = vadd.f32 %v3750, %v3686
  %v3755 = vadd.f32 %v3751, %v3689
  %v3756 = vpack.c.bf16 %v3753, %v3752
  %v3757 = vpack.c.bf16 %v3755, %v3754
  %v3759 = vlaneseq
  %v3760 = vshrl.u32 %v3759, 7
  %v3761 = vsub.s32 0, %v3760
  %v3762 = vrot.slane %v343, %v3761
  %v3768 = vunpack.c.l.b16 %v339
  %v3769 = vunpack.c.l.b16 %v340
  %v3770 = vunpack.c.l.b16 %v341
  %v3771 = vunpack.c.l.b16 %v342
  %v3772 = vpack.c.b16 %v3769, %v3768
  %v3773 = vpack.c.b16 %v3771, %v3770
  %v3777 = vsel %vm466, %v3756, 0
  %v3780 = vsel %vm466, %v3757, 0
  %3782 = vmatprep.subr.bf16.mxu0 0
  %3783 = vmatpush1.bf16.msra.mxu0 %v3772
  %3784 = vmatprep.subr.bf16.mxu0 0
  %3785 = vmatpush1.bf16.msra.mxu0 %v3773
  %3786 = vmatprep.subr.bf16.mxu0 0
  %3787 = vmatpush1.bf16.msra.mxu0 0
  %3788 = vmatprep.subr.bf16.mxu0 0
  %3789 = vmatpush1.bf16.msra.mxu0 0
  %3790 = vmatprep.subr.bf16.mxu0 0
  %3791 = vmatpush1.bf16.msra.mxu0 0
  %3792 = vmatprep.subr.bf16.mxu0 0
  %3793 = vmatpush1.bf16.msra.mxu0 0
  %3794 = vmatprep.subr.bf16.mxu0 0
  %3795 = vmatpush1.bf16.msra.mxu0 0
  %3796 = vmatprep.subr.bf16.mxu0 0
  %3797 = vmatpush1.bf16.msra.mxu0 0
  %3798 = vmatprep.subr.bf16.mxu0 0
  %3799 = vmatpush1.bf16.msra.mxu0 0
  %3800 = vmatprep.subr.bf16.mxu0 0
  %3801 = vmatpush1.bf16.msra.mxu0 0
  %3802 = vmatprep.subr.bf16.mxu0 0
  %3803 = vmatpush1.bf16.msra.mxu0 0
  %3804 = vmatprep.subr.bf16.mxu0 0
  %3805 = vmatpush1.bf16.msra.mxu0 0
  %3806 = vmatprep.subr.bf16.mxu0 0
  %3807 = vmatpush1.bf16.msra.mxu0 0
  %3808 = vmatprep.subr.bf16.mxu0 0
  %3809 = vmatpush1.bf16.msra.mxu0 0
  %3810 = vmatprep.subr.bf16.mxu0 0
  %3811 = vmatpush1.bf16.msra.mxu0 0
  %3812 = vmatprep.subr.bf16.mxu0 0
  %3813 = vmatpush1.bf16.msra.mxu0 0
  %3814 = vmatprep.mubr.bf16.mxu0 0
  %3815 = vmatmul.mubr.bf16.gmra.mrb[0].mxu0 %v3777
  %v3816 = vpop.f32.mrb[0].mxu0
  %v3817 = vadd.f32 %v3762, %v3816
  %v3818 = vpop.f32.mrb[0].mxu0
  %v3819 = vpop.f32.mrb[0].mxu0
  %v3820 = vadd.f32 %v3762, %v3819
  %v3821 = vpop.f32.mrb[0].mxu0
  %3822 = vmatprep.mubr.bf16.mxu0 0
  %3823 = vmatmul.mubr.bf16.gmra.mrb[0].mxu0 %v3780
  %v3824 = vpop.f32.mrb[0].mxu0
  %v3825 = vadd.f32 %v3762, %v3824
  %v3826 = vpop.f32.mrb[0].mxu0
  %v3827 = vpop.f32.mrb[0].mxu0
  %v3828 = vadd.f32 %v3762, %v3827
  %v3829 = vpop.f32.mrb[0].mxu0
  %3830 = vdwg.mxu0
  %3831 = vst [vmem:[%s26] sm:$0xff] %v3817
  %3832 = vst [vmem:[%s26 + $0x8] sm:$0xff] %v3820
  %3833 = vst [vmem:[%s26 + $0x10] sm:$0xff] %v3825
  %3834 = vst [vmem:[%s26 + $0x18] sm:$0xff] %v3828
  // Predicated region
  $region106: #{var_forward_pallas.1} parent=0 // pred_check
    _
  $region107: #{var_forward_pallas.1} parent=0 // pred_check_branch
    %3836 = sbr.rel (0) target = $region109
  $region108: #{var_forward_pallas.1} parent=0 // pred_region
    _
  $region109: #{var_forward_pallas.1} parent=0 // pred_fallthru
    _
  // Predicated region
  $region110: #{var_forward_pallas.1} parent=0 // pred_check
    _
  $region111: #{var_forward_pallas.1} parent=0 // pred_check_branch
    %3838 = sbr.rel (0) target = $region113
  $region112: #{var_forward_pallas.1} parent=0 // pred_region
    _
  $region113: #{var_forward_pallas.1} parent=0 // pred_fallthru
    _

</llo_original>
